<compile_context>
chip_gen: v7x
topology: tpu7x:2x2x1
jax: 0.10.0
libtpu: 0.0.40
codegen_flags: <defaults>
</compile_context>

<pallas_src>
import functools
import math

import jax
import jax.numpy as jnp
from jax import lax
from jax.experimental import pallas as pl
from jax.experimental.pallas import tpu as pltpu

# ----------------------------- config (small synthetic BERT) -----------------
VOCAB = 100
MAX_POS = 64
TYPE_VOCAB = 2
HIDDEN = 32
NUM_HEADS = 2
HEAD_DIM = HIDDEN // NUM_HEADS
INTERMEDIATE = 64
NUM_LAYERS = 2
OUT_SLOT = 10
OUT_INT = 5
LN_EPS = 1e-12
LANE = 128          # lane-dense width for QKV slab, FFN intermediate and head outputs


# ----------------------------- in-kernel helpers ------------------------------
def _layernorm(x, g, b, eps):
    mu = jnp.mean(x, axis=-1, keepdims=True)
    xc = x - mu
    var = jnp.mean(xc * xc, axis=-1, keepdims=True)
    return xc * lax.rsqrt(var + eps) * g + b


def _gelu(x):
    # TODO(synk): HF BERT uses exact erf-GELU; tanh approximation used here.
    c = math.sqrt(2.0 / math.pi)
    return 0.5 * x * (1.0 + jnp.tanh(c * (x + 0.044715 * x * x * x)))


# ----------------------------- fused forward kernel ---------------------------
def _joint_bert_kernel(
    x_ref, mask_ref, emb_g_ref, emb_b_ref,
    qkv_w_ref, qkv_b_ref,
    ao_w_ref, ao_b_ref, ao_g_ref, ao_lb_ref,
    i_w_ref, i_b_ref, o_w_ref, o_b_ref, o_g_ref, o_lb_ref,
    pool_w_ref, pool_b_ref, slot_w_ref, slot_b_ref, int_w_ref, int_b_ref,
    slots_ref, intent_ref,
    *, S, num_heads, head_dim, num_layers, eps):
    hidden = num_heads * head_dim

    # --- embedding LayerNorm (input already f32) ---
    x = _layernorm(x_ref[...], emb_g_ref[...], emb_b_ref[...], eps)        # (S, H)
    m = mask_ref[0]                                                        # (1, S) additive key mask

    # --- encoder layers (fully unrolled; all weights VMEM-resident at toy size) ---
    # TODO(synk): at realistic BERT sizes add a layer grid axis + Buffered(2)
    # weight streaming instead of keeping every layer's weights resident.
    for l in range(num_layers):
        # One lane-dense fused QKV matmul (96 real lanes padded to 128); bf16 MXU.
        qkv = jnp.dot(x.astype(jnp.bfloat16), qkv_w_ref[l],
                      preferred_element_type=jnp.float32) + qkv_b_ref[l]   # (S, 128)

        acc = jnp.zeros((S, hidden), jnp.float32)
        for h in range(num_heads):
            q_h = qkv[:, h * head_dim:(h + 1) * head_dim].astype(jnp.bfloat16)
            k_h = qkv[:, hidden + h * head_dim:
                      hidden + (h + 1) * head_dim].astype(jnp.bfloat16)
            v_h = qkv[:, 2 * hidden + h * head_dim:
                      2 * hidden + (h + 1) * head_dim].astype(jnp.bfloat16)
            # 1/sqrt(D) is folded into the Q weights host-side; contract K's feature
            # dim in place (no explicit transpose -> no XLU relayout).
            s = lax.dot_general(q_h, k_h, (((1,), (1,)), ((), ())),
                                preferred_element_type=jnp.float32) + m    # (S, S)
            s = s - jnp.max(s, axis=-1, keepdims=True)
            p = jnp.exp(s)
            p = p * pl.reciprocal(jnp.sum(p, axis=-1, keepdims=True), approx=True)
            ctx = jnp.dot(p.astype(jnp.bfloat16), v_h,
                          preferred_element_type=jnp.float32)              # (S, D)
            # Fold this head's rows of the attention-output projection here so the
            # head merge never concatenates along the lane dimension.
            acc = acc + jnp.dot(ctx.astype(jnp.bfloat16), ao_w_ref[l, h],
                                preferred_element_type=jnp.float32)
        x = _layernorm(acc + ao_b_ref[l] + x, ao_g_ref[l], ao_lb_ref[l], eps)

        # FFN: lane-dense (H,128) in-proj, zero-padded lanes are killed by zero
        # rows of the padded (128,H) out-proj.
        inter = _gelu(jnp.dot(x.astype(jnp.bfloat16), i_w_ref[l],
                              preferred_element_type=jnp.float32) + i_b_ref[l])   # (S, 128)
        out = jnp.dot(inter.astype(jnp.bfloat16), o_w_ref[l],
                      preferred_element_type=jnp.float32) + o_b_ref[l]
        x = _layernorm(out + x, o_g_ref[l], o_lb_ref[l], eps)

    # --- slot head: lane-dense (padded to 128 lanes; wrapper slices to OUT_SLOT) ---
    xb = x.astype(jnp.bfloat16)
    slots_ref[...] = (jnp.dot(xb, slot_w_ref[...],
                              preferred_element_type=jnp.float32)
                      + slot_b_ref[...]).astype(slots_ref.dtype)

    # --- pooler (tanh) + intent head for every row of this batch; the wrapper picks
    #     the CLS row. At S=8 this is one vreg of extra sublanes and keeps stores aligned.
    pooled = jnp.tanh(jnp.dot(xb, pool_w_ref[...],
                              preferred_element_type=jnp.float32) + pool_b_ref[...])
    intent_ref[...] = (jnp.dot(pooled.astype(jnp.bfloat16), int_w_ref[...],
                               preferred_element_type=jnp.float32)
                       + int_b_ref[...]).astype(intent_ref.dtype)


# ----------------------------- parameter init ---------------------------------
def init_params(key):
    def nrm(key, shape, std=0.02):
        return (std * jax.random.normal(key, shape)).astype(jnp.float32)

    keys = iter(jax.random.split(key, 256))
    p = {
        "word_emb": nrm(next(keys), (VOCAB, HIDDEN)),
        "pos_emb": nrm(next(keys), (MAX_POS, HIDDEN)),
        "type_emb": nrm(next(keys), (TYPE_VOCAB, HIDDEN)),
        "emb_ln_g": jnp.ones((HIDDEN,), jnp.float32),
        "emb_ln_b": jnp.zeros((HIDDEN,), jnp.float32),
        "layers": [],
        "pool_w": nrm(next(keys), (HIDDEN, HIDDEN)),
        "pool_b": jnp.zeros((HIDDEN,), jnp.float32),
        "slot_w": nrm(next(keys), (HIDDEN, OUT_SLOT)),
        "slot_b": jnp.zeros((OUT_SLOT,), jnp.float32),
        "int_w": nrm(next(keys), (HIDDEN, OUT_INT)),
        "int_b": jnp.zeros((OUT_INT,), jnp.float32),
    }
    for _ in range(NUM_LAYERS):
        p["layers"].append({
            "q_w": nrm(next(keys), (HIDDEN, HIDDEN)), "q_b": jnp.zeros((HIDDEN,), jnp.float32),
            "k_w": nrm(next(keys), (HIDDEN, HIDDEN)), "k_b": jnp.zeros((HIDDEN,), jnp.float32),
            "v_w": nrm(next(keys), (HIDDEN, HIDDEN)), "v_b": jnp.zeros((HIDDEN,), jnp.float32),
            "ao_w": nrm(next(keys), (HIDDEN, HIDDEN)), "ao_b": jnp.zeros((HIDDEN,), jnp.float32),
            "ao_ln_g": jnp.ones((HIDDEN,), jnp.float32), "ao_ln_b": jnp.zeros((HIDDEN,), jnp.float32),
            "i_w": nrm(next(keys), (HIDDEN, INTERMEDIATE)), "i_b": jnp.zeros((INTERMEDIATE,), jnp.float32),
            "o_w": nrm(next(keys), (INTERMEDIATE, HIDDEN)), "o_b": jnp.zeros((HIDDEN,), jnp.float32),
            "o_ln_g": jnp.ones((HIDDEN,), jnp.float32), "o_ln_b": jnp.zeros((HIDDEN,), jnp.float32),
        })
    return p


# ----------------------------- forward pass ------------------------------------
def joint_bert_forward(params, utterances, attentions, token_type_ids):
    B, S = utterances.shape
    H, nH, D, L, I = HIDDEN, NUM_HEADS, HEAD_DIM, NUM_LAYERS, INTERMEDIATE
    assert S <= MAX_POS, "sequence length exceeds max position embeddings"

    # --- embedding gather (glue; no clean Pallas gather for tiny tables) ---
    we = jnp.take(params["word_emb"], utterances, axis=0)           # (B, S, H)
    pe = params["pos_emb"][:S][None, :, :]                          # (1, S, H)
    te = jnp.take(params["type_emb"], token_type_ids, axis=0)       # (B, S, H)
    x_emb = (we + pe + te).astype(jnp.float32).reshape(B * S, H)

    # additive attention (key) mask per batch: (B, 1, S)
    add_mask = ((1.0 - attentions.astype(jnp.float32)) * -1e9).reshape(B, 1, S)

    # --- host-side weight packing: stacked layer axis, lane-dense slabs, bf16 ---
    def stack(name):
        return jnp.stack([lp[name] for lp in params["layers"]], axis=0)

    scale = 1.0 / math.sqrt(D)
    q_w = stack("q_w") * scale                                       # fold 1/sqrt(D) into Q
    q_b = stack("q_b") * scale
    qkv_w = jnp.concatenate([q_w, stack("k_w"), stack("v_w")], axis=-1)       # (L, H, 3H)
    qkv_b = jnp.concatenate([q_b, stack("k_b"), stack("v_b")], axis=-1)       # (L, 3H)
    qkv_w = jnp.pad(qkv_w, ((0, 0), (0, 0), (0, LANE - 3 * H))).astype(jnp.bfloat16)
    qkv_b = jnp.pad(qkv_b, ((0, 0), (0, LANE - 3 * H))).reshape(L, 1, LANE)

    ao_w = stack("ao_w").reshape(L, nH, D, H).astype(jnp.bfloat16)   # per-head input rows
    ao_b = stack("ao_b").reshape(L, 1, H)
    ao_g = stack("ao_ln_g").reshape(L, 1, H)
    ao_lb = stack("ao_ln_b").reshape(L, 1, H)

    i_w = jnp.pad(stack("i_w"), ((0, 0), (0, 0), (0, LANE - I))).astype(jnp.bfloat16)  # (L, H, 128)
    i_b = jnp.pad(stack("i_b"), ((0, 0), (0, LANE - I))).reshape(L, 1, LANE)
    o_w = jnp.pad(stack("o_w"), ((0, 0), (0, LANE - I), (0, 0))).astype(jnp.bfloat16)  # (L, 128, H)
    o_b = stack("o_b").reshape(L, 1, H)
    o_g = stack("o_ln_g").reshape(L, 1, H)
    o_lb = stack("o_ln_b").reshape(L, 1, H)

    pool_w = params["pool_w"].astype(jnp.bfloat16)
    pool_b = params["pool_b"].reshape(1, H)
    slot_w = jnp.pad(params["slot_w"], ((0, 0), (0, LANE - OUT_SLOT))).astype(jnp.bfloat16)
    slot_b = jnp.pad(params["slot_b"], ((0, LANE - OUT_SLOT),)).reshape(1, LANE)
    int_w = jnp.pad(params["int_w"], ((0, 0), (0, LANE - OUT_INT))).astype(jnp.bfloat16)
    int_b = jnp.pad(params["int_b"], ((0, LANE - OUT_INT),)).reshape(1, LANE)

    operands = (x_emb, add_mask,
                params["emb_ln_g"].reshape(1, H), params["emb_ln_b"].reshape(1, H),
                qkv_w, qkv_b, ao_w, ao_b, ao_g, ao_lb,
                i_w, i_b, o_w, o_b, o_g, o_lb,
                pool_w, pool_b, slot_w, slot_b, int_w, int_b)

    # constant-index BlockSpec (weights stay VMEM-resident across grid steps)
    def const_spec(a):
        return pl.BlockSpec(a.shape, lambda b, _n=a.ndim: (0,) * _n)

    in_specs = [
        pl.BlockSpec((S, H), lambda b: (b, 0)),            # this batch's rows
        pl.BlockSpec((1, 1, S), lambda b: (b, 0, 0)),      # this batch's additive key mask
    ] + [const_spec(a) for a in operands[2:]]

    out_specs = (pl.BlockSpec((S, LANE), lambda b: (b, 0)),
                 pl.BlockSpec((S, LANE), lambda b: (b, 0)))

    # --- advisory cost estimate so XLA overlaps the gathers/packing with the kernel ---
    BS = B * S
    flops_layer = (2 * BS * H * (3 * H)                    # fused QKV
                   + 4 * B * nH * S * S * D                # scores + ctx
                   + 2 * BS * H * H                        # per-head attn-out fold
                   + 2 * BS * H * I + 2 * BS * I * H)      # FFN
    flops = (L * flops_layer
             + 2 * BS * H * LANE                           # slot head (padded)
             + 2 * BS * H * H + 2 * BS * H * LANE)         # pooler + intent head
    transcendentals = L * (B * nH * S * S + BS * I) + BS * H
    bytes_accessed = (sum(int(a.size) * a.dtype.itemsize for a in operands)
                      + 2 * BS * LANE * 4)

    kernel = functools.partial(_joint_bert_kernel, S=S, num_heads=nH,
                               head_dim=D, num_layers=L, eps=LN_EPS)

    slots_pad, intent_pad = pl.pallas_call(
        kernel,
        grid=(B,),
        out_shape=(jax.ShapeDtypeStruct((B * S, LANE), jnp.float32),
                   jax.ShapeDtypeStruct((B * S, LANE), jnp.float32)),
        in_specs=in_specs,
        out_specs=out_specs,
        compiler_params=pltpu.CompilerParams(dimension_semantics=("parallel",)),
        cost_estimate=pl.CostEstimate(flops=flops, transcendentals=transcendentals,
                                      bytes_accessed=bytes_accessed),
    )(*operands)

    # tiny host-side slice / permute (never make S the kernel's lane dim)
    slots = slots_pad[:, :OUT_SLOT].reshape(B, S, OUT_SLOT).transpose(0, 2, 1)  # (B, out_slot, S)
    intent = intent_pad.reshape(B, S, LANE)[:, 0, :OUT_INT]                     # (B, out_int)
    return slots, intent


# ----------------------------- main ---------------------------------------------
if __name__ == "__main__":
    B, S = 2, 8
    key = jax.random.PRNGKey(0)
    k_par, k_tok, k_len = jax.random.split(key, 3)

    params = init_params(k_par)
    utterances = jax.random.randint(k_tok, (B, S), 0, VOCAB, dtype=jnp.int32)
    # simple padding mask: first row full length, second row has last 3 tokens padded
    attentions = jnp.array([[1] * S, [1] * (S - 3) + [0] * 3], dtype=jnp.int32)
    token_type_ids = jnp.zeros((B, S), dtype=jnp.int32)

    fwd = jax.jit(joint_bert_forward)
    slots, intent = fwd(params, utterances, attentions, token_type_ids)
    jax.block_until_ready((slots, intent))

    assert slots.shape == (B, OUT_SLOT, S), slots.shape
    assert intent.shape == (B, OUT_INT), intent.shape
    assert bool(jnp.all(jnp.isfinite(slots))) and bool(jnp.all(jnp.isfinite(intent)))
    print("KERNEL_OK")
</pallas_src>

<mosaic_0001>
module attributes {stable_mosaic.version = 11 : i64} {
  func.func @_joint_bert_kernel(%arg0: i32, %arg1: memref<8x32xf32, #tpu.memory_space<vmem>>, %arg2: memref<1x1x8xf32, #tpu.memory_space<vmem>>, %arg3: memref<1x32xf32, #tpu.memory_space<vmem>>, %arg4: memref<1x32xf32, #tpu.memory_space<vmem>>, %arg5: memref<2x32x128xbf16, #tpu.memory_space<vmem>>, %arg6: memref<2x1x128xf32, #tpu.memory_space<vmem>>, %arg7: memref<2x2x16x32xbf16, #tpu.memory_space<vmem>>, %arg8: memref<2x1x32xf32, #tpu.memory_space<vmem>>, %arg9: memref<2x1x32xf32, #tpu.memory_space<vmem>>, %arg10: memref<2x1x32xf32, #tpu.memory_space<vmem>>, %arg11: memref<2x32x128xbf16, #tpu.memory_space<vmem>>, %arg12: memref<2x1x128xf32, #tpu.memory_space<vmem>>, %arg13: memref<2x128x32xbf16, #tpu.memory_space<vmem>>, %arg14: memref<2x1x32xf32, #tpu.memory_space<vmem>>, %arg15: memref<2x1x32xf32, #tpu.memory_space<vmem>>, %arg16: memref<2x1x32xf32, #tpu.memory_space<vmem>>, %arg17: memref<32x32xbf16, #tpu.memory_space<vmem>>, %arg18: memref<1x32xf32, #tpu.memory_space<vmem>>, %arg19: memref<32x128xbf16, #tpu.memory_space<vmem>>, %arg20: memref<1x128xf32, #tpu.memory_space<vmem>>, %arg21: memref<32x128xbf16, #tpu.memory_space<vmem>>, %arg22: memref<1x128xf32, #tpu.memory_space<vmem>>, %arg23: memref<8x128xf32, #tpu.memory_space<vmem>>, %arg24: memref<8x128xf32, #tpu.memory_space<vmem>>) attributes {dimension_semantics = [#tpu.dimension_semantics<parallel>], iteration_bounds = array<i64: 2>, scalar_prefetch = 0 : i64, scratch_operands = 0 : i64, tpu.core_type = #tpu.core_type<tc>, window_params = [{transform_indices = @transform_0, window_bounds = array<i64: 8, 32>}, {transform_indices = @transform_1, window_bounds = array<i64: 1, 1, 8>}, {pipeline_mode = #tpu.pipeline_mode<synchronous>, transform_indices = @transform_2, window_bounds = array<i64: 1, 32>}, {pipeline_mode = #tpu.pipeline_mode<synchronous>, transform_indices = @transform_3, window_bounds = array<i64: 1, 32>}, {pipeline_mode = #tpu.pipeline_mode<synchronous>, transform_indices = @transform_4, window_bounds = array<i64: 2, 32, 128>}, {pipeline_mode = #tpu.pipeline_mode<synchronous>, transform_indices = @transform_5, window_bounds = array<i64: 2, 1, 128>}, {pipeline_mode = #tpu.pipeline_mode<synchronous>, transform_indices = @transform_6, window_bounds = array<i64: 2, 2, 16, 32>}, {pipeline_mode = #tpu.pipeline_mode<synchronous>, transform_indices = @transform_7, window_bounds = array<i64: 2, 1, 32>}, {pipeline_mode = #tpu.pipeline_mode<synchronous>, transform_indices = @transform_8, window_bounds = array<i64: 2, 1, 32>}, {pipeline_mode = #tpu.pipeline_mode<synchronous>, transform_indices = @transform_9, window_bounds = array<i64: 2, 1, 32>}, {pipeline_mode = #tpu.pipeline_mode<synchronous>, transform_indices = @transform_10, window_bounds = array<i64: 2, 32, 128>}, {pipeline_mode = #tpu.pipeline_mode<synchronous>, transform_indices = @transform_11, window_bounds = array<i64: 2, 1, 128>}, {pipeline_mode = #tpu.pipeline_mode<synchronous>, transform_indices = @transform_12, window_bounds = array<i64: 2, 128, 32>}, {pipeline_mode = #tpu.pipeline_mode<synchronous>, transform_indices = @transform_13, window_bounds = array<i64: 2, 1, 32>}, {pipeline_mode = #tpu.pipeline_mode<synchronous>, transform_indices = @transform_14, window_bounds = array<i64: 2, 1, 32>}, {pipeline_mode = #tpu.pipeline_mode<synchronous>, transform_indices = @transform_15, window_bounds = array<i64: 2, 1, 32>}, {pipeline_mode = #tpu.pipeline_mode<synchronous>, transform_indices = @transform_16, window_bounds = array<i64: 32, 32>}, {pipeline_mode = #tpu.pipeline_mode<synchronous>, transform_indices = @transform_17, window_bounds = array<i64: 1, 32>}, {pipeline_mode = #tpu.pipeline_mode<synchronous>, transform_indices = @transform_18, window_bounds = array<i64: 32, 128>}, {pipeline_mode = #tpu.pipeline_mode<synchronous>, transform_indices = @transform_19, window_bounds = array<i64: 1, 128>}, {pipeline_mode = #tpu.pipeline_mode<synchronous>, transform_indices = @transform_20, window_bounds = array<i64: 32, 128>}, {pipeline_mode = #tpu.pipeline_mode<synchronous>, transform_indices = @transform_21, window_bounds = array<i64: 1, 128>}, {transform_indices = @transform_22, window_bounds = array<i64: 8, 128>}, {transform_indices = @transform_23, window_bounds = array<i64: 8, 128>}]} {
    %c0 = arith.constant 0 : index
    %c0_0 = arith.constant 0 : index
    %0 = vector.load %arg1[%c0, %c0_0] : memref<8x32xf32, #tpu.memory_space<vmem>>, vector<8x32xf32>
    %c0_1 = arith.constant 0 : index
    %c0_2 = arith.constant 0 : index
    %1 = vector.load %arg3[%c0_1, %c0_2] : memref<1x32xf32, #tpu.memory_space<vmem>>, vector<1x32xf32>
    %c0_3 = arith.constant 0 : index
    %c0_4 = arith.constant 0 : index
    %2 = vector.load %arg4[%c0_3, %c0_4] : memref<1x32xf32, #tpu.memory_space<vmem>>, vector<1x32xf32>
    %cst = arith.constant dense<0.000000e+00> : vector<8xf32>
    %3 = vector.multi_reduction <add>, %0, %cst [1] : vector<8x32xf32> to vector<8xf32>
    %4 = vector.shape_cast %3 : vector<8xf32> to vector<8x1xf32>
    %cst_5 = arith.constant 3.200000e+01 : f32
    %5 = vector.broadcast %cst_5 : f32 to vector<8x1xf32>
    %6 = arith.divf %4, %5 : vector<8x1xf32>
    %7 = vector.broadcast %6 : vector<8x1xf32> to vector<8x32xf32>
    %8 = arith.subf %0, %7 : vector<8x32xf32>
    %9 = arith.mulf %8, %8 : vector<8x32xf32>
    %cst_6 = arith.constant dense<0.000000e+00> : vector<8xf32>
    %10 = vector.multi_reduction <add>, %9, %cst_6 [1] : vector<8x32xf32> to vector<8xf32>
    %11 = vector.shape_cast %10 : vector<8xf32> to vector<8x1xf32>
    %cst_7 = arith.constant 3.200000e+01 : f32
    %12 = vector.broadcast %cst_7 : f32 to vector<8x1xf32>
    %13 = arith.divf %11, %12 : vector<8x1xf32>
    %cst_8 = arith.constant 9.99999996E-13 : f32
    %14 = vector.broadcast %cst_8 : f32 to vector<8x1xf32>
    %15 = arith.addf %13, %14 : vector<8x1xf32>
    %16 = math.rsqrt %15 : vector<8x1xf32>
    %17 = vector.broadcast %16 : vector<8x1xf32> to vector<8x32xf32>
    %18 = arith.mulf %8, %17 : vector<8x32xf32>
    %19 = vector.broadcast %1 : vector<1x32xf32> to vector<8x32xf32>
    %20 = arith.mulf %18, %19 : vector<8x32xf32>
    %21 = vector.broadcast %2 : vector<1x32xf32> to vector<8x32xf32>
    %22 = arith.addf %20, %21 : vector<8x32xf32>
    %c0_9 = arith.constant 0 : index
    %c0_10 = arith.constant 0 : index
    %c0_11 = arith.constant 0 : index
    %23 = vector.load %arg2[%c0_9, %c0_10, %c0_11] : memref<1x1x8xf32, #tpu.memory_space<vmem>>, vector<1x1x8xf32>
    %24 = vector.shape_cast %23 : vector<1x1x8xf32> to vector<1x8xf32>
    %25 = arith.truncf %22 : vector<8x32xf32> to vector<8x32xbf16>
    %c0_12 = arith.constant 0 : index
    %c0_13 = arith.constant 0 : index
    %c0_14 = arith.constant 0 : index
    %26 = vector.load %arg5[%c0_12, %c0_13, %c0_14] : memref<2x32x128xbf16, #tpu.memory_space<vmem>>, vector<1x32x128xbf16>
    %27 = vector.shape_cast %26 : vector<1x32x128xbf16> to vector<32x128xbf16>
    %cst_15 = arith.constant dense<0.000000e+00> : vector<8x128xf32>
    %28 = tpu.matmul %25, %27, %cst_15 {dimension_numbers = #tpu.dot_dimension_numbers<[1], [0], [0], [1], [0, 0, 1, 1], [], []>} : vector<8x32xbf16>, vector<32x128xbf16>, vector<8x128xf32> -> vector<8x128xf32>
    %c0_16 = arith.constant 0 : index
    %c0_17 = arith.constant 0 : index
    %c0_18 = arith.constant 0 : index
    %29 = vector.load %arg6[%c0_16, %c0_17, %c0_18] : memref<2x1x128xf32, #tpu.memory_space<vmem>>, vector<1x1x128xf32>
    %30 = vector.shape_cast %29 : vector<1x1x128xf32> to vector<1x128xf32>
    %31 = vector.broadcast %30 : vector<1x128xf32> to vector<8x128xf32>
    %32 = arith.addf %28, %31 : vector<8x128xf32>
    %cst_19 = arith.constant 0.000000e+00 : f32
    %33 = vector.broadcast %cst_19 : f32 to vector<8x32xf32>
    %34 = vector.extract_strided_slice %32 {offsets = [0, 0], sizes = [8, 16], strides = [1, 1]} : vector<8x128xf32> to vector<8x16xf32>
    %35 = arith.truncf %34 : vector<8x16xf32> to vector<8x16xbf16>
    %36 = vector.extract_strided_slice %32 {offsets = [0, 32], sizes = [8, 16], strides = [1, 1]} : vector<8x128xf32> to vector<8x16xf32>
    %37 = arith.truncf %36 : vector<8x16xf32> to vector<8x16xbf16>
    %38 = vector.extract_strided_slice %32 {offsets = [0, 64], sizes = [8, 16], strides = [1, 1]} : vector<8x128xf32> to vector<8x16xf32>
    %39 = arith.truncf %38 : vector<8x16xf32> to vector<8x16xbf16>
    %cst_20 = arith.constant dense<0.000000e+00> : vector<8x8xf32>
    %40 = tpu.matmul %35, %37, %cst_20 {dimension_numbers = #tpu.dot_dimension_numbers<[1], [1], [0], [0], [0, 0, 1, 0], [], []>} : vector<8x16xbf16>, vector<8x16xbf16>, vector<8x8xf32> -> vector<8x8xf32>
    %41 = vector.broadcast %24 : vector<1x8xf32> to vector<8x8xf32>
    %42 = arith.addf %40, %41 : vector<8x8xf32>
    %cst_21 = arith.constant dense<0xFF800000> : vector<8xf32>
    %43 = vector.multi_reduction <maximumf>, %42, %cst_21 [1] : vector<8x8xf32> to vector<8xf32>
    %44 = vector.shape_cast %43 : vector<8xf32> to vector<8x1xf32>
    %45 = vector.broadcast %44 : vector<8x1xf32> to vector<8x8xf32>
    %46 = arith.subf %42, %45 : vector<8x8xf32>
    %47 = math.exp %46 : vector<8x8xf32>
    %cst_22 = arith.constant dense<0.000000e+00> : vector<8xf32>
    %48 = vector.multi_reduction <add>, %47, %cst_22 [1] : vector<8x8xf32> to vector<8xf32>
    %49 = vector.shape_cast %48 : vector<8xf32> to vector<8x1xf32>
    %50 = tpu.reciprocal %49 {approx = true} : vector<8x1xf32> -> vector<8x1xf32>
    %51 = vector.broadcast %50 : vector<8x1xf32> to vector<8x8xf32>
    %52 = arith.mulf %47, %51 : vector<8x8xf32>
    %53 = arith.truncf %52 : vector<8x8xf32> to vector<8x8xbf16>
    %cst_23 = arith.constant dense<0.000000e+00> : vector<8x16xf32>
    %54 = tpu.matmul %53, %39, %cst_23 {dimension_numbers = #tpu.dot_dimension_numbers<[1], [0], [0], [1], [0, 0, 1, 1], [], []>} : vector<8x8xbf16>, vector<8x16xbf16>, vector<8x16xf32> -> vector<8x16xf32>
    %55 = arith.truncf %54 : vector<8x16xf32> to vector<8x16xbf16>
    %c0_24 = arith.constant 0 : index
    %c0_25 = arith.constant 0 : index
    %c0_26 = arith.constant 0 : index
    %c0_27 = arith.constant 0 : index
    %56 = vector.load %arg7[%c0_24, %c0_25, %c0_26, %c0_27] : memref<2x2x16x32xbf16, #tpu.memory_space<vmem>>, vector<1x1x16x32xbf16>
    %57 = vector.shape_cast %56 : vector<1x1x16x32xbf16> to vector<16x32xbf16>
    %cst_28 = arith.constant dense<0.000000e+00> : vector<8x32xf32>
    %58 = tpu.matmul %55, %57, %cst_28 {dimension_numbers = #tpu.dot_dimension_numbers<[1], [0], [0], [1], [0, 0, 1, 1], [], []>} : vector<8x16xbf16>, vector<16x32xbf16>, vector<8x32xf32> -> vector<8x32xf32>
    %59 = arith.addf %33, %58 : vector<8x32xf32>
    %60 = vector.extract_strided_slice %32 {offsets = [0, 16], sizes = [8, 16], strides = [1, 1]} : vector<8x128xf32> to vector<8x16xf32>
    %61 = arith.truncf %60 : vector<8x16xf32> to vector<8x16xbf16>
    %62 = vector.extract_strided_slice %32 {offsets = [0, 48], sizes = [8, 16], strides = [1, 1]} : vector<8x128xf32> to vector<8x16xf32>
    %63 = arith.truncf %62 : vector<8x16xf32> to vector<8x16xbf16>
    %64 = vector.extract_strided_slice %32 {offsets = [0, 80], sizes = [8, 16], strides = [1, 1]} : vector<8x128xf32> to vector<8x16xf32>
    %65 = arith.truncf %64 : vector<8x16xf32> to vector<8x16xbf16>
    %cst_29 = arith.constant dense<0.000000e+00> : vector<8x8xf32>
    %66 = tpu.matmul %61, %63, %cst_29 {dimension_numbers = #tpu.dot_dimension_numbers<[1], [1], [0], [0], [0, 0, 1, 0], [], []>} : vector<8x16xbf16>, vector<8x16xbf16>, vector<8x8xf32> -> vector<8x8xf32>
    %67 = vector.broadcast %24 : vector<1x8xf32> to vector<8x8xf32>
    %68 = arith.addf %66, %67 : vector<8x8xf32>
    %cst_30 = arith.constant dense<0xFF800000> : vector<8xf32>
    %69 = vector.multi_reduction <maximumf>, %68, %cst_30 [1] : vector<8x8xf32> to vector<8xf32>
    %70 = vector.shape_cast %69 : vector<8xf32> to vector<8x1xf32>
    %71 = vector.broadcast %70 : vector<8x1xf32> to vector<8x8xf32>
    %72 = arith.subf %68, %71 : vector<8x8xf32>
    %73 = math.exp %72 : vector<8x8xf32>
    %cst_31 = arith.constant dense<0.000000e+00> : vector<8xf32>
    %74 = vector.multi_reduction <add>, %73, %cst_31 [1] : vector<8x8xf32> to vector<8xf32>
    %75 = vector.shape_cast %74 : vector<8xf32> to vector<8x1xf32>
    %76 = tpu.reciprocal %75 {approx = true} : vector<8x1xf32> -> vector<8x1xf32>
    %77 = vector.broadcast %76 : vector<8x1xf32> to vector<8x8xf32>
    %78 = arith.mulf %73, %77 : vector<8x8xf32>
    %79 = arith.truncf %78 : vector<8x8xf32> to vector<8x8xbf16>
    %cst_32 = arith.constant dense<0.000000e+00> : vector<8x16xf32>
    %80 = tpu.matmul %79, %65, %cst_32 {dimension_numbers = #tpu.dot_dimension_numbers<[1], [0], [0], [1], [0, 0, 1, 1], [], []>} : vector<8x8xbf16>, vector<8x16xbf16>, vector<8x16xf32> -> vector<8x16xf32>
    %81 = arith.truncf %80 : vector<8x16xf32> to vector<8x16xbf16>
    %c0_33 = arith.constant 0 : index
    %c1 = arith.constant 1 : index
    %c0_34 = arith.constant 0 : index
    %c0_35 = arith.constant 0 : index
    %82 = vector.load %arg7[%c0_33, %c1, %c0_34, %c0_35] : memref<2x2x16x32xbf16, #tpu.memory_space<vmem>>, vector<1x1x16x32xbf16>
    %83 = vector.shape_cast %82 : vector<1x1x16x32xbf16> to vector<16x32xbf16>
    %cst_36 = arith.constant dense<0.000000e+00> : vector<8x32xf32>
    %84 = tpu.matmul %81, %83, %cst_36 {dimension_numbers = #tpu.dot_dimension_numbers<[1], [0], [0], [1], [0, 0, 1, 1], [], []>} : vector<8x16xbf16>, vector<16x32xbf16>, vector<8x32xf32> -> vector<8x32xf32>
    %85 = arith.addf %59, %84 : vector<8x32xf32>
    %c0_37 = arith.constant 0 : index
    %c0_38 = arith.constant 0 : index
    %c0_39 = arith.constant 0 : index
    %86 = vector.load %arg8[%c0_37, %c0_38, %c0_39] : memref<2x1x32xf32, #tpu.memory_space<vmem>>, vector<1x1x32xf32>
    %87 = vector.shape_cast %86 : vector<1x1x32xf32> to vector<1x32xf32>
    %88 = vector.broadcast %87 : vector<1x32xf32> to vector<8x32xf32>
    %89 = arith.addf %85, %88 : vector<8x32xf32>
    %90 = arith.addf %89, %22 : vector<8x32xf32>
    %c0_40 = arith.constant 0 : index
    %c0_41 = arith.constant 0 : index
    %c0_42 = arith.constant 0 : index
    %91 = vector.load %arg9[%c0_40, %c0_41, %c0_42] : memref<2x1x32xf32, #tpu.memory_space<vmem>>, vector<1x1x32xf32>
    %92 = vector.shape_cast %91 : vector<1x1x32xf32> to vector<1x32xf32>
    %c0_43 = arith.constant 0 : index
    %c0_44 = arith.constant 0 : index
    %c0_45 = arith.constant 0 : index
    %93 = vector.load %arg10[%c0_43, %c0_44, %c0_45] : memref<2x1x32xf32, #tpu.memory_space<vmem>>, vector<1x1x32xf32>
    %94 = vector.shape_cast %93 : vector<1x1x32xf32> to vector<1x32xf32>
    %cst_46 = arith.constant dense<0.000000e+00> : vector<8xf32>
    %95 = vector.multi_reduction <add>, %90, %cst_46 [1] : vector<8x32xf32> to vector<8xf32>
    %96 = vector.shape_cast %95 : vector<8xf32> to vector<8x1xf32>
    %cst_47 = arith.constant 3.200000e+01 : f32
    %97 = vector.broadcast %cst_47 : f32 to vector<8x1xf32>
    %98 = arith.divf %96, %97 : vector<8x1xf32>
    %99 = vector.broadcast %98 : vector<8x1xf32> to vector<8x32xf32>
    %100 = arith.subf %90, %99 : vector<8x32xf32>
    %101 = arith.mulf %100, %100 : vector<8x32xf32>
    %cst_48 = arith.constant dense<0.000000e+00> : vector<8xf32>
    %102 = vector.multi_reduction <add>, %101, %cst_48 [1] : vector<8x32xf32> to vector<8xf32>
    %103 = vector.shape_cast %102 : vector<8xf32> to vector<8x1xf32>
    %cst_49 = arith.constant 3.200000e+01 : f32
    %104 = vector.broadcast %cst_49 : f32 to vector<8x1xf32>
    %105 = arith.divf %103, %104 : vector<8x1xf32>
    %cst_50 = arith.constant 9.99999996E-13 : f32
    %106 = vector.broadcast %cst_50 : f32 to vector<8x1xf32>
    %107 = arith.addf %105, %106 : vector<8x1xf32>
    %108 = math.rsqrt %107 : vector<8x1xf32>
    %109 = vector.broadcast %108 : vector<8x1xf32> to vector<8x32xf32>
    %110 = arith.mulf %100, %109 : vector<8x32xf32>
    %111 = vector.broadcast %92 : vector<1x32xf32> to vector<8x32xf32>
    %112 = arith.mulf %110, %111 : vector<8x32xf32>
    %113 = vector.broadcast %94 : vector<1x32xf32> to vector<8x32xf32>
    %114 = arith.addf %112, %113 : vector<8x32xf32>
    %115 = arith.truncf %114 : vector<8x32xf32> to vector<8x32xbf16>
    %c0_51 = arith.constant 0 : index
    %c0_52 = arith.constant 0 : index
    %c0_53 = arith.constant 0 : index
    %116 = vector.load %arg11[%c0_51, %c0_52, %c0_53] : memref<2x32x128xbf16, #tpu.memory_space<vmem>>, vector<1x32x128xbf16>
    %117 = vector.shape_cast %116 : vector<1x32x128xbf16> to vector<32x128xbf16>
    %cst_54 = arith.constant dense<0.000000e+00> : vector<8x128xf32>
    %118 = tpu.matmul %115, %117, %cst_54 {dimension_numbers = #tpu.dot_dimension_numbers<[1], [0], [0], [1], [0, 0, 1, 1], [], []>} : vector<8x32xbf16>, vector<32x128xbf16>, vector<8x128xf32> -> vector<8x128xf32>
    %c0_55 = arith.constant 0 : index
    %c0_56 = arith.constant 0 : index
    %c0_57 = arith.constant 0 : index
    %119 = vector.load %arg12[%c0_55, %c0_56, %c0_57] : memref<2x1x128xf32, #tpu.memory_space<vmem>>, vector<1x1x128xf32>
    %120 = vector.shape_cast %119 : vector<1x1x128xf32> to vector<1x128xf32>
    %121 = vector.broadcast %120 : vector<1x128xf32> to vector<8x128xf32>
    %122 = arith.addf %118, %121 : vector<8x128xf32>
    %cst_58 = arith.constant 5.000000e-01 : f32
    %123 = vector.broadcast %cst_58 : f32 to vector<8x128xf32>
    %124 = arith.mulf %123, %122 : vector<8x128xf32>
    %cst_59 = arith.constant 4.471500e-02 : f32
    %125 = vector.broadcast %cst_59 : f32 to vector<8x128xf32>
    %126 = arith.mulf %125, %122 : vector<8x128xf32>
    %127 = arith.mulf %126, %122 : vector<8x128xf32>
    %128 = arith.mulf %127, %122 : vector<8x128xf32>
    %129 = arith.addf %122, %128 : vector<8x128xf32>
    %cst_60 = arith.constant 0.797884583 : f32
    %130 = vector.broadcast %cst_60 : f32 to vector<8x128xf32>
    %131 = arith.mulf %130, %129 : vector<8x128xf32>
    %132 = math.tanh %131 : vector<8x128xf32>
    %cst_61 = arith.constant 1.000000e+00 : f32
    %133 = vector.broadcast %cst_61 : f32 to vector<8x128xf32>
    %134 = arith.addf %133, %132 : vector<8x128xf32>
    %135 = arith.mulf %124, %134 : vector<8x128xf32>
    %136 = arith.truncf %135 : vector<8x128xf32> to vector<8x128xbf16>
    %c0_62 = arith.constant 0 : index
    %c0_63 = arith.constant 0 : index
    %c0_64 = arith.constant 0 : index
    %137 = vector.load %arg13[%c0_62, %c0_63, %c0_64] : memref<2x128x32xbf16, #tpu.memory_space<vmem>>, vector<1x128x32xbf16>
    %138 = vector.shape_cast %137 : vector<1x128x32xbf16> to vector<128x32xbf16>
    %cst_65 = arith.constant dense<0.000000e+00> : vector<8x32xf32>
    %139 = tpu.matmul %136, %138, %cst_65 {dimension_numbers = #tpu.dot_dimension_numbers<[1], [0], [0], [1], [0, 0, 1, 1], [], []>} : vector<8x128xbf16>, vector<128x32xbf16>, vector<8x32xf32> -> vector<8x32xf32>
    %c0_66 = arith.constant 0 : index
    %c0_67 = arith.constant 0 : index
    %c0_68 = arith.constant 0 : index
    %140 = vector.load %arg14[%c0_66, %c0_67, %c0_68] : memref<2x1x32xf32, #tpu.memory_space<vmem>>, vector<1x1x32xf32>
    %141 = vector.shape_cast %140 : vector<1x1x32xf32> to vector<1x32xf32>
    %142 = vector.broadcast %141 : vector<1x32xf32> to vector<8x32xf32>
    %143 = arith.addf %139, %142 : vector<8x32xf32>
    %144 = arith.addf %143, %114 : vector<8x32xf32>
    %c0_69 = arith.constant 0 : index
    %c0_70 = arith.constant 0 : index
    %c0_71 = arith.constant 0 : index
    %145 = vector.load %arg15[%c0_69, %c0_70, %c0_71] : memref<2x1x32xf32, #tpu.memory_space<vmem>>, vector<1x1x32xf32>
    %146 = vector.shape_cast %145 : vector<1x1x32xf32> to vector<1x32xf32>
    %c0_72 = arith.constant 0 : index
    %c0_73 = arith.constant 0 : index
    %c0_74 = arith.constant 0 : index
    %147 = vector.load %arg16[%c0_72, %c0_73, %c0_74] : memref<2x1x32xf32, #tpu.memory_space<vmem>>, vector<1x1x32xf32>
    %148 = vector.shape_cast %147 : vector<1x1x32xf32> to vector<1x32xf32>
    %cst_75 = arith.constant dense<0.000000e+00> : vector<8xf32>
    %149 = vector.multi_reduction <add>, %144, %cst_75 [1] : vector<8x32xf32> to vector<8xf32>
    %150 = vector.shape_cast %149 : vector<8xf32> to vector<8x1xf32>
    %cst_76 = arith.constant 3.200000e+01 : f32
    %151 = vector.broadcast %cst_76 : f32 to vector<8x1xf32>
    %152 = arith.divf %150, %151 : vector<8x1xf32>
    %153 = vector.broadcast %152 : vector<8x1xf32> to vector<8x32xf32>
    %154 = arith.subf %144, %153 : vector<8x32xf32>
    %155 = arith.mulf %154, %154 : vector<8x32xf32>
    %cst_77 = arith.constant dense<0.000000e+00> : vector<8xf32>
    %156 = vector.multi_reduction <add>, %155, %cst_77 [1] : vector<8x32xf32> to vector<8xf32>
    %157 = vector.shape_cast %156 : vector<8xf32> to vector<8x1xf32>
    %cst_78 = arith.constant 3.200000e+01 : f32
    %158 = vector.broadcast %cst_78 : f32 to vector<8x1xf32>
    %159 = arith.divf %157, %158 : vector<8x1xf32>
    %cst_79 = arith.constant 9.99999996E-13 : f32
    %160 = vector.broadcast %cst_79 : f32 to vector<8x1xf32>
    %161 = arith.addf %159, %160 : vector<8x1xf32>
    %162 = math.rsqrt %161 : vector<8x1xf32>
    %163 = vector.broadcast %162 : vector<8x1xf32> to vector<8x32xf32>
    %164 = arith.mulf %154, %163 : vector<8x32xf32>
    %165 = vector.broadcast %146 : vector<1x32xf32> to vector<8x32xf32>
    %166 = arith.mulf %164, %165 : vector<8x32xf32>
    %167 = vector.broadcast %148 : vector<1x32xf32> to vector<8x32xf32>
    %168 = arith.addf %166, %167 : vector<8x32xf32>
    %169 = arith.truncf %168 : vector<8x32xf32> to vector<8x32xbf16>
    %c1_80 = arith.constant 1 : index
    %c0_81 = arith.constant 0 : index
    %c0_82 = arith.constant 0 : index
    %170 = vector.load %arg5[%c1_80, %c0_81, %c0_82] : memref<2x32x128xbf16, #tpu.memory_space<vmem>>, vector<1x32x128xbf16>
    %171 = vector.shape_cast %170 : vector<1x32x128xbf16> to vector<32x128xbf16>
    %cst_83 = arith.constant dense<0.000000e+00> : vector<8x128xf32>
    %172 = tpu.matmul %169, %171, %cst_83 {dimension_numbers = #tpu.dot_dimension_numbers<[1], [0], [0], [1], [0, 0, 1, 1], [], []>} : vector<8x32xbf16>, vector<32x128xbf16>, vector<8x128xf32> -> vector<8x128xf32>
    %c1_84 = arith.constant 1 : index
    %c0_85 = arith.constant 0 : index
    %c0_86 = arith.constant 0 : index
    %173 = vector.load %arg6[%c1_84, %c0_85, %c0_86] : memref<2x1x128xf32, #tpu.memory_space<vmem>>, vector<1x1x128xf32>
    %174 = vector.shape_cast %173 : vector<1x1x128xf32> to vector<1x128xf32>
    %175 = vector.broadcast %174 : vector<1x128xf32> to vector<8x128xf32>
    %176 = arith.addf %172, %175 : vector<8x128xf32>
    %cst_87 = arith.constant 0.000000e+00 : f32
    %177 = vector.broadcast %cst_87 : f32 to vector<8x32xf32>
    %178 = vector.extract_strided_slice %176 {offsets = [0, 0], sizes = [8, 16], strides = [1, 1]} : vector<8x128xf32> to vector<8x16xf32>
    %179 = arith.truncf %178 : vector<8x16xf32> to vector<8x16xbf16>
    %180 = vector.extract_strided_slice %176 {offsets = [0, 32], sizes = [8, 16], strides = [1, 1]} : vector<8x128xf32> to vector<8x16xf32>
    %181 = arith.truncf %180 : vector<8x16xf32> to vector<8x16xbf16>
    %182 = vector.extract_strided_slice %176 {offsets = [0, 64], sizes = [8, 16], strides = [1, 1]} : vector<8x128xf32> to vector<8x16xf32>
    %183 = arith.truncf %182 : vector<8x16xf32> to vector<8x16xbf16>
    %cst_88 = arith.constant dense<0.000000e+00> : vector<8x8xf32>
    %184 = tpu.matmul %179, %181, %cst_88 {dimension_numbers = #tpu.dot_dimension_numbers<[1], [1], [0], [0], [0, 0, 1, 0], [], []>} : vector<8x16xbf16>, vector<8x16xbf16>, vector<8x8xf32> -> vector<8x8xf32>
    %185 = vector.broadcast %24 : vector<1x8xf32> to vector<8x8xf32>
    %186 = arith.addf %184, %185 : vector<8x8xf32>
    %cst_89 = arith.constant dense<0xFF800000> : vector<8xf32>
    %187 = vector.multi_reduction <maximumf>, %186, %cst_89 [1] : vector<8x8xf32> to vector<8xf32>
    %188 = vector.shape_cast %187 : vector<8xf32> to vector<8x1xf32>
    %189 = vector.broadcast %188 : vector<8x1xf32> to vector<8x8xf32>
    %190 = arith.subf %186, %189 : vector<8x8xf32>
    %191 = math.exp %190 : vector<8x8xf32>
    %cst_90 = arith.constant dense<0.000000e+00> : vector<8xf32>
    %192 = vector.multi_reduction <add>, %191, %cst_90 [1] : vector<8x8xf32> to vector<8xf32>
    %193 = vector.shape_cast %192 : vector<8xf32> to vector<8x1xf32>
    %194 = tpu.reciprocal %193 {approx = true} : vector<8x1xf32> -> vector<8x1xf32>
    %195 = vector.broadcast %194 : vector<8x1xf32> to vector<8x8xf32>
    %196 = arith.mulf %191, %195 : vector<8x8xf32>
    %197 = arith.truncf %196 : vector<8x8xf32> to vector<8x8xbf16>
    %cst_91 = arith.constant dense<0.000000e+00> : vector<8x16xf32>
    %198 = tpu.matmul %197, %183, %cst_91 {dimension_numbers = #tpu.dot_dimension_numbers<[1], [0], [0], [1], [0, 0, 1, 1], [], []>} : vector<8x8xbf16>, vector<8x16xbf16>, vector<8x16xf32> -> vector<8x16xf32>
    %199 = arith.truncf %198 : vector<8x16xf32> to vector<8x16xbf16>
    %c1_92 = arith.constant 1 : index
    %c0_93 = arith.constant 0 : index
    %c0_94 = arith.constant 0 : index
    %c0_95 = arith.constant 0 : index
    %200 = vector.load %arg7[%c1_92, %c0_93, %c0_94, %c0_95] : memref<2x2x16x32xbf16, #tpu.memory_space<vmem>>, vector<1x1x16x32xbf16>
    %201 = vector.shape_cast %200 : vector<1x1x16x32xbf16> to vector<16x32xbf16>
    %cst_96 = arith.constant dense<0.000000e+00> : vector<8x32xf32>
    %202 = tpu.matmul %199, %201, %cst_96 {dimension_numbers = #tpu.dot_dimension_numbers<[1], [0], [0], [1], [0, 0, 1, 1], [], []>} : vector<8x16xbf16>, vector<16x32xbf16>, vector<8x32xf32> -> vector<8x32xf32>
    %203 = arith.addf %177, %202 : vector<8x32xf32>
    %204 = vector.extract_strided_slice %176 {offsets = [0, 16], sizes = [8, 16], strides = [1, 1]} : vector<8x128xf32> to vector<8x16xf32>
    %205 = arith.truncf %204 : vector<8x16xf32> to vector<8x16xbf16>
    %206 = vector.extract_strided_slice %176 {offsets = [0, 48], sizes = [8, 16], strides = [1, 1]} : vector<8x128xf32> to vector<8x16xf32>
    %207 = arith.truncf %206 : vector<8x16xf32> to vector<8x16xbf16>
    %208 = vector.extract_strided_slice %176 {offsets = [0, 80], sizes = [8, 16], strides = [1, 1]} : vector<8x128xf32> to vector<8x16xf32>
    %209 = arith.truncf %208 : vector<8x16xf32> to vector<8x16xbf16>
    %cst_97 = arith.constant dense<0.000000e+00> : vector<8x8xf32>
    %210 = tpu.matmul %205, %207, %cst_97 {dimension_numbers = #tpu.dot_dimension_numbers<[1], [1], [0], [0], [0, 0, 1, 0], [], []>} : vector<8x16xbf16>, vector<8x16xbf16>, vector<8x8xf32> -> vector<8x8xf32>
    %211 = vector.broadcast %24 : vector<1x8xf32> to vector<8x8xf32>
    %212 = arith.addf %210, %211 : vector<8x8xf32>
    %cst_98 = arith.constant dense<0xFF800000> : vector<8xf32>
    %213 = vector.multi_reduction <maximumf>, %212, %cst_98 [1] : vector<8x8xf32> to vector<8xf32>
    %214 = vector.shape_cast %213 : vector<8xf32> to vector<8x1xf32>
    %215 = vector.broadcast %214 : vector<8x1xf32> to vector<8x8xf32>
    %216 = arith.subf %212, %215 : vector<8x8xf32>
    %217 = math.exp %216 : vector<8x8xf32>
    %cst_99 = arith.constant dense<0.000000e+00> : vector<8xf32>
    %218 = vector.multi_reduction <add>, %217, %cst_99 [1] : vector<8x8xf32> to vector<8xf32>
    %219 = vector.shape_cast %218 : vector<8xf32> to vector<8x1xf32>
    %220 = tpu.reciprocal %219 {approx = true} : vector<8x1xf32> -> vector<8x1xf32>
    %221 = vector.broadcast %220 : vector<8x1xf32> to vector<8x8xf32>
    %222 = arith.mulf %217, %221 : vector<8x8xf32>
    %223 = arith.truncf %222 : vector<8x8xf32> to vector<8x8xbf16>
    %cst_100 = arith.constant dense<0.000000e+00> : vector<8x16xf32>
    %224 = tpu.matmul %223, %209, %cst_100 {dimension_numbers = #tpu.dot_dimension_numbers<[1], [0], [0], [1], [0, 0, 1, 1], [], []>} : vector<8x8xbf16>, vector<8x16xbf16>, vector<8x16xf32> -> vector<8x16xf32>
    %225 = arith.truncf %224 : vector<8x16xf32> to vector<8x16xbf16>
    %c1_101 = arith.constant 1 : index
    %c1_102 = arith.constant 1 : index
    %c0_103 = arith.constant 0 : index
    %c0_104 = arith.constant 0 : index
    %226 = vector.load %arg7[%c1_101, %c1_102, %c0_103, %c0_104] : memref<2x2x16x32xbf16, #tpu.memory_space<vmem>>, vector<1x1x16x32xbf16>
    %227 = vector.shape_cast %226 : vector<1x1x16x32xbf16> to vector<16x32xbf16>
    %cst_105 = arith.constant dense<0.000000e+00> : vector<8x32xf32>
    %228 = tpu.matmul %225, %227, %cst_105 {dimension_numbers = #tpu.dot_dimension_numbers<[1], [0], [0], [1], [0, 0, 1, 1], [], []>} : vector<8x16xbf16>, vector<16x32xbf16>, vector<8x32xf32> -> vector<8x32xf32>
    %229 = arith.addf %203, %228 : vector<8x32xf32>
    %c1_106 = arith.constant 1 : index
    %c0_107 = arith.constant 0 : index
    %c0_108 = arith.constant 0 : index
    %230 = vector.load %arg8[%c1_106, %c0_107, %c0_108] : memref<2x1x32xf32, #tpu.memory_space<vmem>>, vector<1x1x32xf32>
    %231 = vector.shape_cast %230 : vector<1x1x32xf32> to vector<1x32xf32>
    %232 = vector.broadcast %231 : vector<1x32xf32> to vector<8x32xf32>
    %233 = arith.addf %229, %232 : vector<8x32xf32>
    %234 = arith.addf %233, %168 : vector<8x32xf32>
    %c1_109 = arith.constant 1 : index
    %c0_110 = arith.constant 0 : index
    %c0_111 = arith.constant 0 : index
    %235 = vector.load %arg9[%c1_109, %c0_110, %c0_111] : memref<2x1x32xf32, #tpu.memory_space<vmem>>, vector<1x1x32xf32>
    %236 = vector.shape_cast %235 : vector<1x1x32xf32> to vector<1x32xf32>
    %c1_112 = arith.constant 1 : index
    %c0_113 = arith.constant 0 : index
    %c0_114 = arith.constant 0 : index
    %237 = vector.load %arg10[%c1_112, %c0_113, %c0_114] : memref<2x1x32xf32, #tpu.memory_space<vmem>>, vector<1x1x32xf32>
    %238 = vector.shape_cast %237 : vector<1x1x32xf32> to vector<1x32xf32>
    %cst_115 = arith.constant dense<0.000000e+00> : vector<8xf32>
    %239 = vector.multi_reduction <add>, %234, %cst_115 [1] : vector<8x32xf32> to vector<8xf32>
    %240 = vector.shape_cast %239 : vector<8xf32> to vector<8x1xf32>
    %cst_116 = arith.constant 3.200000e+01 : f32
    %241 = vector.broadcast %cst_116 : f32 to vector<8x1xf32>
    %242 = arith.divf %240, %241 : vector<8x1xf32>
    %243 = vector.broadcast %242 : vector<8x1xf32> to vector<8x32xf32>
    %244 = arith.subf %234, %243 : vector<8x32xf32>
    %245 = arith.mulf %244, %244 : vector<8x32xf32>
    %cst_117 = arith.constant dense<0.000000e+00> : vector<8xf32>
    %246 = vector.multi_reduction <add>, %245, %cst_117 [1] : vector<8x32xf32> to vector<8xf32>
    %247 = vector.shape_cast %246 : vector<8xf32> to vector<8x1xf32>
    %cst_118 = arith.constant 3.200000e+01 : f32
    %248 = vector.broadcast %cst_118 : f32 to vector<8x1xf32>
    %249 = arith.divf %247, %248 : vector<8x1xf32>
    %cst_119 = arith.constant 9.99999996E-13 : f32
    %250 = vector.broadcast %cst_119 : f32 to vector<8x1xf32>
    %251 = arith.addf %249, %250 : vector<8x1xf32>
    %252 = math.rsqrt %251 : vector<8x1xf32>
    %253 = vector.broadcast %252 : vector<8x1xf32> to vector<8x32xf32>
    %254 = arith.mulf %244, %253 : vector<8x32xf32>
    %255 = vector.broadcast %236 : vector<1x32xf32> to vector<8x32xf32>
    %256 = arith.mulf %254, %255 : vector<8x32xf32>
    %257 = vector.broadcast %238 : vector<1x32xf32> to vector<8x32xf32>
    %258 = arith.addf %256, %257 : vector<8x32xf32>
    %259 = arith.truncf %258 : vector<8x32xf32> to vector<8x32xbf16>
    %c1_120 = arith.constant 1 : index
    %c0_121 = arith.constant 0 : index
    %c0_122 = arith.constant 0 : index
    %260 = vector.load %arg11[%c1_120, %c0_121, %c0_122] : memref<2x32x128xbf16, #tpu.memory_space<vmem>>, vector<1x32x128xbf16>
    %261 = vector.shape_cast %260 : vector<1x32x128xbf16> to vector<32x128xbf16>
    %cst_123 = arith.constant dense<0.000000e+00> : vector<8x128xf32>
    %262 = tpu.matmul %259, %261, %cst_123 {dimension_numbers = #tpu.dot_dimension_numbers<[1], [0], [0], [1], [0, 0, 1, 1], [], []>} : vector<8x32xbf16>, vector<32x128xbf16>, vector<8x128xf32> -> vector<8x128xf32>
    %c1_124 = arith.constant 1 : index
    %c0_125 = arith.constant 0 : index
    %c0_126 = arith.constant 0 : index
    %263 = vector.load %arg12[%c1_124, %c0_125, %c0_126] : memref<2x1x128xf32, #tpu.memory_space<vmem>>, vector<1x1x128xf32>
    %264 = vector.shape_cast %263 : vector<1x1x128xf32> to vector<1x128xf32>
    %265 = vector.broadcast %264 : vector<1x128xf32> to vector<8x128xf32>
    %266 = arith.addf %262, %265 : vector<8x128xf32>
    %cst_127 = arith.constant 5.000000e-01 : f32
    %267 = vector.broadcast %cst_127 : f32 to vector<8x128xf32>
    %268 = arith.mulf %267, %266 : vector<8x128xf32>
    %cst_128 = arith.constant 4.471500e-02 : f32
    %269 = vector.broadcast %cst_128 : f32 to vector<8x128xf32>
    %270 = arith.mulf %269, %266 : vector<8x128xf32>
    %271 = arith.mulf %270, %266 : vector<8x128xf32>
    %272 = arith.mulf %271, %266 : vector<8x128xf32>
    %273 = arith.addf %266, %272 : vector<8x128xf32>
    %cst_129 = arith.constant 0.797884583 : f32
    %274 = vector.broadcast %cst_129 : f32 to vector<8x128xf32>
    %275 = arith.mulf %274, %273 : vector<8x128xf32>
    %276 = math.tanh %275 : vector<8x128xf32>
    %cst_130 = arith.constant 1.000000e+00 : f32
    %277 = vector.broadcast %cst_130 : f32 to vector<8x128xf32>
    %278 = arith.addf %277, %276 : vector<8x128xf32>
    %279 = arith.mulf %268, %278 : vector<8x128xf32>
    %280 = arith.truncf %279 : vector<8x128xf32> to vector<8x128xbf16>
    %c1_131 = arith.constant 1 : index
    %c0_132 = arith.constant 0 : index
    %c0_133 = arith.constant 0 : index
    %281 = vector.load %arg13[%c1_131, %c0_132, %c0_133] : memref<2x128x32xbf16, #tpu.memory_space<vmem>>, vector<1x128x32xbf16>
    %282 = vector.shape_cast %281 : vector<1x128x32xbf16> to vector<128x32xbf16>
    %cst_134 = arith.constant dense<0.000000e+00> : vector<8x32xf32>
    %283 = tpu.matmul %280, %282, %cst_134 {dimension_numbers = #tpu.dot_dimension_numbers<[1], [0], [0], [1], [0, 0, 1, 1], [], []>} : vector<8x128xbf16>, vector<128x32xbf16>, vector<8x32xf32> -> vector<8x32xf32>
    %c1_135 = arith.constant 1 : index
    %c0_136 = arith.constant 0 : index
    %c0_137 = arith.constant 0 : index
    %284 = vector.load %arg14[%c1_135, %c0_136, %c0_137] : memref<2x1x32xf32, #tpu.memory_space<vmem>>, vector<1x1x32xf32>
    %285 = vector.shape_cast %284 : vector<1x1x32xf32> to vector<1x32xf32>
    %286 = vector.broadcast %285 : vector<1x32xf32> to vector<8x32xf32>
    %287 = arith.addf %283, %286 : vector<8x32xf32>
    %288 = arith.addf %287, %258 : vector<8x32xf32>
    %c1_138 = arith.constant 1 : index
    %c0_139 = arith.constant 0 : index
    %c0_140 = arith.constant 0 : index
    %289 = vector.load %arg15[%c1_138, %c0_139, %c0_140] : memref<2x1x32xf32, #tpu.memory_space<vmem>>, vector<1x1x32xf32>
    %290 = vector.shape_cast %289 : vector<1x1x32xf32> to vector<1x32xf32>
    %c1_141 = arith.constant 1 : index
    %c0_142 = arith.constant 0 : index
    %c0_143 = arith.constant 0 : index
    %291 = vector.load %arg16[%c1_141, %c0_142, %c0_143] : memref<2x1x32xf32, #tpu.memory_space<vmem>>, vector<1x1x32xf32>
    %292 = vector.shape_cast %291 : vector<1x1x32xf32> to vector<1x32xf32>
    %cst_144 = arith.constant dense<0.000000e+00> : vector<8xf32>
    %293 = vector.multi_reduction <add>, %288, %cst_144 [1] : vector<8x32xf32> to vector<8xf32>
    %294 = vector.shape_cast %293 : vector<8xf32> to vector<8x1xf32>
    %cst_145 = arith.constant 3.200000e+01 : f32
    %295 = vector.broadcast %cst_145 : f32 to vector<8x1xf32>
    %296 = arith.divf %294, %295 : vector<8x1xf32>
    %297 = vector.broadcast %296 : vector<8x1xf32> to vector<8x32xf32>
    %298 = arith.subf %288, %297 : vector<8x32xf32>
    %299 = arith.mulf %298, %298 : vector<8x32xf32>
    %cst_146 = arith.constant dense<0.000000e+00> : vector<8xf32>
    %300 = vector.multi_reduction <add>, %299, %cst_146 [1] : vector<8x32xf32> to vector<8xf32>
    %301 = vector.shape_cast %300 : vector<8xf32> to vector<8x1xf32>
    %cst_147 = arith.constant 3.200000e+01 : f32
    %302 = vector.broadcast %cst_147 : f32 to vector<8x1xf32>
    %303 = arith.divf %301, %302 : vector<8x1xf32>
    %cst_148 = arith.constant 9.99999996E-13 : f32
    %304 = vector.broadcast %cst_148 : f32 to vector<8x1xf32>
    %305 = arith.addf %303, %304 : vector<8x1xf32>
    %306 = math.rsqrt %305 : vector<8x1xf32>
    %307 = vector.broadcast %306 : vector<8x1xf32> to vector<8x32xf32>
    %308 = arith.mulf %298, %307 : vector<8x32xf32>
    %309 = vector.broadcast %290 : vector<1x32xf32> to vector<8x32xf32>
    %310 = arith.mulf %308, %309 : vector<8x32xf32>
    %311 = vector.broadcast %292 : vector<1x32xf32> to vector<8x32xf32>
    %312 = arith.addf %310, %311 : vector<8x32xf32>
    %313 = arith.truncf %312 : vector<8x32xf32> to vector<8x32xbf16>
    %c0_149 = arith.constant 0 : index
    %c0_150 = arith.constant 0 : index
    %314 = vector.load %arg19[%c0_149, %c0_150] : memref<32x128xbf16, #tpu.memory_space<vmem>>, vector<32x128xbf16>
    %cst_151 = arith.constant dense<0.000000e+00> : vector<8x128xf32>
    %315 = tpu.matmul %313, %314, %cst_151 {dimension_numbers = #tpu.dot_dimension_numbers<[1], [0], [0], [1], [0, 0, 1, 1], [], []>} : vector<8x32xbf16>, vector<32x128xbf16>, vector<8x128xf32> -> vector<8x128xf32>
    %c0_152 = arith.constant 0 : index
    %c0_153 = arith.constant 0 : index
    %316 = vector.load %arg20[%c0_152, %c0_153] : memref<1x128xf32, #tpu.memory_space<vmem>>, vector<1x128xf32>
    %317 = vector.broadcast %316 : vector<1x128xf32> to vector<8x128xf32>
    %318 = arith.addf %315, %317 : vector<8x128xf32>
    %c0_154 = arith.constant 0 : index
    %c0_155 = arith.constant 0 : index
    %319 = vector.load %arg23[%c0_154, %c0_155] : memref<8x128xf32, #tpu.memory_space<vmem>>, vector<8x128xf32>
    tpu.vector_store %arg23[%c0_154, %c0_155], %318 {strides = array<i32>} : memref<8x128xf32, #tpu.memory_space<vmem>>, vector<8x128xf32>,
    %c0_156 = arith.constant 0 : index
    %c0_157 = arith.constant 0 : index
    %320 = vector.load %arg17[%c0_156, %c0_157] : memref<32x32xbf16, #tpu.memory_space<vmem>>, vector<32x32xbf16>
    %cst_158 = arith.constant dense<0.000000e+00> : vector<8x32xf32>
    %321 = tpu.matmul %313, %320, %cst_158 {dimension_numbers = #tpu.dot_dimension_numbers<[1], [0], [0], [1], [0, 0, 1, 1], [], []>} : vector<8x32xbf16>, vector<32x32xbf16>, vector<8x32xf32> -> vector<8x32xf32>
    %c0_159 = arith.constant 0 : index
    %c0_160 = arith.constant 0 : index
    %322 = vector.load %arg18[%c0_159, %c0_160] : memref<1x32xf32, #tpu.memory_space<vmem>>, vector<1x32xf32>
    %323 = vector.broadcast %322 : vector<1x32xf32> to vector<8x32xf32>
    %324 = arith.addf %321, %323 : vector<8x32xf32>
    %325 = math.tanh %324 : vector<8x32xf32>
    %326 = arith.truncf %325 : vector<8x32xf32> to vector<8x32xbf16>
    %c0_161 = arith.constant 0 : index
    %c0_162 = arith.constant 0 : index
    %327 = vector.load %arg21[%c0_161, %c0_162] : memref<32x128xbf16, #tpu.memory_space<vmem>>, vector<32x128xbf16>
    %cst_163 = arith.constant dense<0.000000e+00> : vector<8x128xf32>
    %328 = tpu.matmul %326, %327, %cst_163 {dimension_numbers = #tpu.dot_dimension_numbers<[1], [0], [0], [1], [0, 0, 1, 1], [], []>} : vector<8x32xbf16>, vector<32x128xbf16>, vector<8x128xf32> -> vector<8x128xf32>
    %c0_164 = arith.constant 0 : index
    %c0_165 = arith.constant 0 : index
    %329 = vector.load %arg22[%c0_164, %c0_165] : memref<1x128xf32, #tpu.memory_space<vmem>>, vector<1x128xf32>
    %330 = vector.broadcast %329 : vector<1x128xf32> to vector<8x128xf32>
    %331 = arith.addf %328, %330 : vector<8x128xf32>
    %c0_166 = arith.constant 0 : index
    %c0_167 = arith.constant 0 : index
    %332 = vector.load %arg24[%c0_166, %c0_167] : memref<8x128xf32, #tpu.memory_space<vmem>>, vector<8x128xf32>
    tpu.vector_store %arg24[%c0_166, %c0_167], %331 {strides = array<i32>} : memref<8x128xf32, #tpu.memory_space<vmem>>, vector<8x128xf32>,
    return
  }
  func.func @transform_0(%arg0: i32) -> (i32, i32) {
    %c0_i32 = arith.constant 0 : i32
    %c0_i32_0 = arith.constant 0 : i32
    return %arg0, %c0_i32 : i32, i32
  }
  func.func @transform_1(%arg0: i32) -> (i32, i32, i32) {
    %c0_i32 = arith.constant 0 : i32
    %c0_i32_0 = arith.constant 0 : i32
    %c0_i32_1 = arith.constant 0 : i32
    return %arg0, %c0_i32, %c0_i32_0 : i32, i32, i32
  }
  func.func @transform_2(%arg0: i32) -> (i32, i32) {
    %c0_i32 = arith.constant 0 : i32
    %c0_i32_0 = arith.constant 0 : i32
    %c0_i32_1 = arith.constant 0 : i32
    return %c0_i32, %c0_i32_0 : i32, i32
  }
  func.func @transform_3(%arg0: i32) -> (i32, i32) {
    %c0_i32 = arith.constant 0 : i32
    %c0_i32_0 = arith.constant 0 : i32
    %c0_i32_1 = arith.constant 0 : i32
    return %c0_i32, %c0_i32_0 : i32, i32
  }
  func.func @transform_4(%arg0: i32) -> (i32, i32, i32) {
    %c0_i32 = arith.constant 0 : i32
    %c0_i32_0 = arith.constant 0 : i32
    %c0_i32_1 = arith.constant 0 : i32
    %c0_i32_2 = arith.constant 0 : i32
    return %c0_i32, %c0_i32_0, %c0_i32_1 : i32, i32, i32
  }
  func.func @transform_5(%arg0: i32) -> (i32, i32, i32) {
    %c0_i32 = arith.constant 0 : i32
    %c0_i32_0 = arith.constant 0 : i32
    %c0_i32_1 = arith.constant 0 : i32
    %c0_i32_2 = arith.constant 0 : i32
    return %c0_i32, %c0_i32_0, %c0_i32_1 : i32, i32, i32
  }
  func.func @transform_6(%arg0: i32) -> (i32, i32, i32, i32) {
    %c0_i32 = arith.constant 0 : i32
    %c0_i32_0 = arith.constant 0 : i32
    %c0_i32_1 = arith.constant 0 : i32
    %c0_i32_2 = arith.constant 0 : i32
    %c0_i32_3 = arith.constant 0 : i32
    return %c0_i32, %c0_i32_0, %c0_i32_1, %c0_i32_2 : i32, i32, i32, i32
  }
  func.func @transform_7(%arg0: i32) -> (i32, i32, i32) {
    %c0_i32 = arith.constant 0 : i32
    %c0_i32_0 = arith.constant 0 : i32
    %c0_i32_1 = arith.constant 0 : i32
    %c0_i32_2 = arith.constant 0 : i32
    return %c0_i32, %c0_i32_0, %c0_i32_1 : i32, i32, i32
  }
  func.func @transform_8(%arg0: i32) -> (i32, i32, i32) {
    %c0_i32 = arith.constant 0 : i32
    %c0_i32_0 = arith.constant 0 : i32
    %c0_i32_1 = arith.constant 0 : i32
    %c0_i32_2 = arith.constant 0 : i32
    return %c0_i32, %c0_i32_0, %c0_i32_1 : i32, i32, i32
  }
  func.func @transform_9(%arg0: i32) -> (i32, i32, i32) {
    %c0_i32 = arith.constant 0 : i32
    %c0_i32_0 = arith.constant 0 : i32
    %c0_i32_1 = arith.constant 0 : i32
    %c0_i32_2 = arith.constant 0 : i32
    return %c0_i32, %c0_i32_0, %c0_i32_1 : i32, i32, i32
  }
  func.func @transform_10(%arg0: i32) -> (i32, i32, i32) {
    %c0_i32 = arith.constant 0 : i32
    %c0_i32_0 = arith.constant 0 : i32
    %c0_i32_1 = arith.constant 0 : i32
    %c0_i32_2 = arith.constant 0 : i32
    return %c0_i32, %c0_i32_0, %c0_i32_1 : i32, i32, i32
  }
  func.func @transform_11(%arg0: i32) -> (i32, i32, i32) {
    %c0_i32 = arith.constant 0 : i32
    %c0_i32_0 = arith.constant 0 : i32
    %c0_i32_1 = arith.constant 0 : i32
    %c0_i32_2 = arith.constant 0 : i32
    return %c0_i32, %c0_i32_0, %c0_i32_1 : i32, i32, i32
  }
  func.func @transform_12(%arg0: i32) -> (i32, i32, i32) {
    %c0_i32 = arith.constant 0 : i32
    %c0_i32_0 = arith.constant 0 : i32
    %c0_i32_1 = arith.constant 0 : i32
    %c0_i32_2 = arith.constant 0 : i32
    return %c0_i32, %c0_i32_0, %c0_i32_1 : i32, i32, i32
  }
  func.func @transform_13(%arg0: i32) -> (i32, i32, i32) {
    %c0_i32 = arith.constant 0 : i32
    %c0_i32_0 = arith.constant 0 : i32
    %c0_i32_1 = arith.constant 0 : i32
    %c0_i32_2 = arith.constant 0 : i32
    return %c0_i32, %c0_i32_0, %c0_i32_1 : i32, i32, i32
  }
  func.func @transform_14(%arg0: i32) -> (i32, i32, i32) {
    %c0_i32 = arith.constant 0 : i32
    %c0_i32_0 = arith.constant 0 : i32
    %c0_i32_1 = arith.constant 0 : i32
    %c0_i32_2 = arith.constant 0 : i32
    return %c0_i32, %c0_i32_0, %c0_i32_1 : i32, i32, i32
  }
  func.func @transform_15(%arg0: i32) -> (i32, i32, i32) {
    %c0_i32 = arith.constant 0 : i32
    %c0_i32_0 = arith.constant 0 : i32
    %c0_i32_1 = arith.constant 0 : i32
    %c0_i32_2 = arith.constant 0 : i32
    return %c0_i32, %c0_i32_0, %c0_i32_1 : i32, i32, i32
  }
  func.func @transform_16(%arg0: i32) -> (i32, i32) {
    %c0_i32 = arith.constant 0 : i32
    %c0_i32_0 = arith.constant 0 : i32
    %c0_i32_1 = arith.constant 0 : i32
    return %c0_i32, %c0_i32_0 : i32, i32
  }
  func.func @transform_17(%arg0: i32) -> (i32, i32) {
    %c0_i32 = arith.constant 0 : i32
    %c0_i32_0 = arith.constant 0 : i32
    %c0_i32_1 = arith.constant 0 : i32
    return %c0_i32, %c0_i32_0 : i32, i32
  }
  func.func @transform_18(%arg0: i32) -> (i32, i32) {
    %c0_i32 = arith.constant 0 : i32
    %c0_i32_0 = arith.constant 0 : i32
    %c0_i32_1 = arith.constant 0 : i32
    return %c0_i32, %c0_i32_0 : i32, i32
  }
  func.func @transform_19(%arg0: i32) -> (i32, i32) {
    %c0_i32 = arith.constant 0 : i32
    %c0_i32_0 = arith.constant 0 : i32
    %c0_i32_1 = arith.constant 0 : i32
    return %c0_i32, %c0_i32_0 : i32, i32
  }
  func.func @transform_20(%arg0: i32) -> (i32, i32) {
    %c0_i32 = arith.constant 0 : i32
    %c0_i32_0 = arith.constant 0 : i32
    %c0_i32_1 = arith.constant 0 : i32
    return %c0_i32, %c0_i32_0 : i32, i32
  }
  func.func @transform_21(%arg0: i32) -> (i32, i32) {
    %c0_i32 = arith.constant 0 : i32
    %c0_i32_0 = arith.constant 0 : i32
    %c0_i32_1 = arith.constant 0 : i32
    return %c0_i32, %c0_i32_0 : i32, i32
  }
  func.func @transform_22(%arg0: i32) -> (i32, i32) {
    %c0_i32 = arith.constant 0 : i32
    %c0_i32_0 = arith.constant 0 : i32
    return %arg0, %c0_i32 : i32, i32
  }
  func.func @transform_23(%arg0: i32) -> (i32, i32) {
    %c0_i32 = arith.constant 0 : i32
    %c0_i32_0 = arith.constant 0 : i32
    return %arg0, %c0_i32 : i32, i32
  }
}

</mosaic_0001>

<llo_original>
// kernel: joint_bert_forward.1
$region0: #{joint_bert_forward.1}
  #allocation0 [shape = 'u32[]', space=smem, size = 0x4, offset = 0x4, fixed_abs, tag = 'smem constant byte address 0x4 - core index']
  #allocation1 [shape = 'u32[144,128]{1,0:T(1,128)}', space=vmem, size = 0x12000, scoped, tag = 'internal scratch']
  %s0 = inlined_call_operand.vmem [shape: f32[16,32], index: 0, kind: input, shape index: {}]
  %s1 = inlined_call_operand.vmem [shape: f32[2,1,8], index: 1, kind: input, shape index: {}]
  %s2 = inlined_call_operand.vmem [shape: f32[1,32], index: 2, kind: input, shape index: {}]
  %s3 = inlined_call_operand.vmem [shape: f32[1,32], index: 3, kind: input, shape index: {}]
  %s4 = inlined_call_operand.vmem [shape: bf16[2,32,128], index: 4, kind: input, shape index: {}]
  %s5 = inlined_call_operand.vmem [shape: f32[2,1,128], index: 5, kind: input, shape index: {}]
  %s6 = inlined_call_operand.vmem [shape: bf16[2,2,16,32], index: 6, kind: input, shape index: {}]
  %s7 = inlined_call_operand.vmem [shape: f32[2,1,32], index: 7, kind: input, shape index: {}]
  %s8 = inlined_call_operand.vmem [shape: f32[2,1,32], index: 8, kind: input, shape index: {}]
  %s9 = inlined_call_operand.vmem [shape: f32[2,1,32], index: 9, kind: input, shape index: {}]
  %s10 = inlined_call_operand.vmem [shape: bf16[2,32,128], index: 10, kind: input, shape index: {}]
  %s11 = inlined_call_operand.vmem [shape: f32[2,1,128], index: 11, kind: input, shape index: {}]
  %s12 = inlined_call_operand.vmem [shape: bf16[2,128,32], index: 12, kind: input, shape index: {}]
  %s13 = inlined_call_operand.vmem [shape: f32[2,1,32], index: 13, kind: input, shape index: {}]
  %s14 = inlined_call_operand.vmem [shape: f32[2,1,32], index: 14, kind: input, shape index: {}]
  %s15 = inlined_call_operand.vmem [shape: f32[2,1,32], index: 15, kind: input, shape index: {}]
  %s16 = inlined_call_operand.vmem [shape: bf16[32,32], index: 16, kind: input, shape index: {}]
  %s17 = inlined_call_operand.vmem [shape: f32[1,32], index: 17, kind: input, shape index: {}]
  %s18 = inlined_call_operand.vmem [shape: bf16[32,128], index: 18, kind: input, shape index: {}]
  %s19 = inlined_call_operand.vmem [shape: f32[1,128], index: 19, kind: input, shape index: {}]
  %s20 = inlined_call_operand.vmem [shape: bf16[32,128], index: 20, kind: input, shape index: {}]
  %s21 = inlined_call_operand.vmem [shape: f32[1,128], index: 21, kind: input, shape index: {}]
  %s22 = inlined_call_operand.vmem [shape: f32[16,128], index: 22, kind: output, shape index: {0}]
  %s23 = inlined_call_operand.vmem [shape: f32[16,128], index: 23, kind: output, shape index: {1}]
  %24 = xla_tuple %s22, %s23
  %s25 = sld [smem:[#allocation0]]
  $region129: #{joint_bert_forward.1} parent=0
    _
  %s27 = ssub.s32 1, %s25
  %s28 = scalar_select 0, %s27, %s25
  loop: start=0, step=1, limit=4
  $region2: #{joint_bert_forward.1} parent=0 // loop_pre_header
    _
  $region3: #{joint_bert_forward.1} parent=0 // loop_header
    %s30 = sphi 0, %s34
    %p31 = scmp.ge.s32.totalorder %s30, 4
    %s40 = sphi 0, %s42
    %s43 = sphi 0, %s40
    %s44 = sphi 0, %s43
    %s60 = sphi 0, %s44
    %s66 = sphi 0, %s68
    %s69 = sphi 0, %s66
    %s70 = sphi 0, %s69
    %s86 = sphi 0, %s70
    %s90 = sphi 0, %s90
    %s92 = sphi 0, %s90
    %s93 = sphi 0, %s92
    %s107 = sphi 0, %s93
    %s111 = sphi 0, %s111
    %s113 = sphi 0, %s111
    %s114 = sphi 0, %s113
    %s128 = sphi 0, %s114
    %s132 = sphi 0, %s132
    %s134 = sphi 0, %s132
    %s135 = sphi 0, %s134
    %s149 = sphi 0, %s135
    %s153 = sphi 0, %s153
    %s155 = sphi 0, %s153
    %s156 = sphi 0, %s155
    %s170 = sphi 0, %s156
    %s174 = sphi 0, %s174
    %s176 = sphi 0, %s174
    %s177 = sphi 0, %s176
    %s191 = sphi 0, %s177
    %s195 = sphi 0, %s195
    %s197 = sphi 0, %s195
    %s198 = sphi 0, %s197
    %s212 = sphi 0, %s198
    %s216 = sphi 0, %s216
    %s218 = sphi 0, %s216
    %s219 = sphi 0, %s218
    %s233 = sphi 0, %s219
    %s237 = sphi 0, %s237
    %s239 = sphi 0, %s237
    %s240 = sphi 0, %s239
    %s254 = sphi 0, %s240
    %s258 = sphi 0, %s258
    %s260 = sphi 0, %s258
    %s261 = sphi 0, %s260
    %s275 = sphi 0, %s261
    %s279 = sphi 0, %s279
    %s281 = sphi 0, %s279
    %s282 = sphi 0, %s281
    %s296 = sphi 0, %s282
    %s300 = sphi 0, %s300
    %s302 = sphi 0, %s300
    %s303 = sphi 0, %s302
    %s317 = sphi 0, %s303
    %s321 = sphi 0, %s321
    %s323 = sphi 0, %s321
    %s324 = sphi 0, %s323
    %s338 = sphi 0, %s324
    %s342 = sphi 0, %s342
    %s344 = sphi 0, %s342
    %s345 = sphi 0, %s344
    %s359 = sphi 0, %s345
    %s363 = sphi 0, %s363
    %s365 = sphi 0, %s363
    %s366 = sphi 0, %s365
    %s380 = sphi 0, %s366
    %s384 = sphi 0, %s384
    %s386 = sphi 0, %s384
    %s387 = sphi 0, %s386
    %s401 = sphi 0, %s387
    %s405 = sphi 0, %s405
    %s407 = sphi 0, %s405
    %s408 = sphi 0, %s407
    %s422 = sphi 0, %s408
    %s426 = sphi 0, %s426
    %s428 = sphi 0, %s426
    %s429 = sphi 0, %s428
    %s443 = sphi 0, %s429
    %s447 = sphi 0, %s447
    %s449 = sphi 0, %s447
    %s450 = sphi 0, %s449
    %s464 = sphi 0, %s450
    %s468 = sphi 0, %s468
    %s470 = sphi 0, %s468
    %s471 = sphi 0, %s470
    %s485 = sphi 0, %s471
    %s489 = sphi 0, %s489
    %s491 = sphi 0, %s489
    %s492 = sphi 0, %s491
    %s506 = sphi 0, %s492
    %s512 = sphi 0, %s514
    %s515 = sphi 0, %s512
    %s516 = sphi 0, %s515
    %s532 = sphi 0, %s516
    %s538 = sphi 0, %s540
    %s541 = sphi 0, %s538
    %s542 = sphi 0, %s541
    %s558 = sphi 0, %s542
  $region4: #{joint_bert_forward.1} parent=0 // loop_header_branch
    %33 = sbr.rel (%p31) target = $region8
  $region5: #{joint_bert_forward.1} parent=0 // loop_body
    %s35 = ssub.s32 %s30, 1
    %s36 = ssub.s32 %s30, 2
    %s37 = sadd.s32 %s30, 1
    %s38 = ssub.s32 %s30, %s37
    %p39 = scmp.eq.s32.totalorder %s38, 0
    %s41 = sadd.s32 %s40, 1
    %s42 = scalar_select %p39, %s40, %s41
    %p45 = pneg %p39
    %p46 = scmp.eq.s32.totalorder %s30, 1
    %p47 = por %p45, %p46
    %p48 = scmp.ne.s32.totalorder %s40, %s43
    %p49 = scmp.eq.s32.totalorder %s30, 0
    %p50 = por %p48, %p49
    %p51 = scmp.ne.s32.totalorder %s40, %s43
    %p52 = scmp.eq.s32.totalorder %s35, 1
    %p53 = por %p51, %p52
    %p54 = scmp.ne.s32.totalorder %s43, %s44
    %p55 = scmp.eq.s32.totalorder %s35, 0
    %p56 = por %p54, %p55
    %p57 = scmp.ne.s32.totalorder %s43, %s44
    %p58 = scmp.eq.s32.totalorder %s36, 1
    %p59 = por %p57, %p58
    %p61 = scmp.ne.s32.totalorder %s44, %s60
    %p62 = scmp.eq.s32.totalorder %s36, 0
    %p63 = por %p61, %p62
    %s64 = ssub.s32 %s30, %s37
    %p65 = scmp.eq.s32.totalorder %s64, 0
    %s67 = sadd.s32 %s66, 1
    %s68 = scalar_select %p65, %s66, %s67
    %p71 = pneg %p65
    %p72 = scmp.eq.s32.totalorder %s30, 1
    %p73 = por %p71, %p72
    %p74 = scmp.ne.s32.totalorder %s66, %s69
    %p75 = scmp.eq.s32.totalorder %s30, 0
    %p76 = por %p74, %p75
    %p77 = scmp.ne.s32.totalorder %s66, %s69
    %p78 = scmp.eq.s32.totalorder %s35, 1
    %p79 = por %p77, %p78
    %p80 = scmp.ne.s32.totalorder %s69, %s70
    %p81 = scmp.eq.s32.totalorder %s35, 0
    %p82 = por %p80, %p81
    %p83 = scmp.ne.s32.totalorder %s69, %s70
    %p84 = scmp.eq.s32.totalorder %s36, 1
    %p85 = por %p83, %p84
    %p87 = scmp.ne.s32.totalorder %s70, %s86
    %p88 = scmp.eq.s32.totalorder %s36, 0
    %p89 = por %p87, %p88
    %s91 = sadd.s32 %s90, 1
    %p94 = scmp.eq.s32.totalorder %s30, 1
    %p95 = scmp.ne.s32.totalorder %s90, %s92
    %p96 = scmp.eq.s32.totalorder %s30, 0
    %p97 = por %p95, %p96
    %p98 = scmp.ne.s32.totalorder %s90, %s92
    %p99 = scmp.eq.s32.totalorder %s35, 1
    %p100 = por %p98, %p99
    %p101 = scmp.ne.s32.totalorder %s92, %s93
    %p102 = scmp.eq.s32.totalorder %s35, 0
    %p103 = por %p101, %p102
    %p104 = scmp.ne.s32.totalorder %s92, %s93
    %p105 = scmp.eq.s32.totalorder %s36, 1
    %p106 = por %p104, %p105
    %p108 = scmp.ne.s32.totalorder %s93, %s107
    %p109 = scmp.eq.s32.totalorder %s36, 0
    %p110 = por %p108, %p109
    %s112 = sadd.s32 %s111, 1
    %p115 = scmp.eq.s32.totalorder %s30, 1
    %p116 = scmp.ne.s32.totalorder %s111, %s113
    %p117 = scmp.eq.s32.totalorder %s30, 0
    %p118 = por %p116, %p117
    %p119 = scmp.ne.s32.totalorder %s111, %s113
    %p120 = scmp.eq.s32.totalorder %s35, 1
    %p121 = por %p119, %p120
    %p122 = scmp.ne.s32.totalorder %s113, %s114
    %p123 = scmp.eq.s32.totalorder %s35, 0
    %p124 = por %p122, %p123
    %p125 = scmp.ne.s32.totalorder %s113, %s114
    %p126 = scmp.eq.s32.totalorder %s36, 1
    %p127 = por %p125, %p126
    %p129 = scmp.ne.s32.totalorder %s114, %s128
    %p130 = scmp.eq.s32.totalorder %s36, 0
    %p131 = por %p129, %p130
    %s133 = sadd.s32 %s132, 1
    %p136 = scmp.eq.s32.totalorder %s30, 1
    %p137 = scmp.ne.s32.totalorder %s132, %s134
    %p138 = scmp.eq.s32.totalorder %s30, 0
    %p139 = por %p137, %p138
    %p140 = scmp.ne.s32.totalorder %s132, %s134
    %p141 = scmp.eq.s32.totalorder %s35, 1
    %p142 = por %p140, %p141
    %p143 = scmp.ne.s32.totalorder %s134, %s135
    %p144 = scmp.eq.s32.totalorder %s35, 0
    %p145 = por %p143, %p144
    %p146 = scmp.ne.s32.totalorder %s134, %s135
    %p147 = scmp.eq.s32.totalorder %s36, 1
    %p148 = por %p146, %p147
    %p150 = scmp.ne.s32.totalorder %s135, %s149
    %p151 = scmp.eq.s32.totalorder %s36, 0
    %p152 = por %p150, %p151
    %s154 = sadd.s32 %s153, 1
    %p157 = scmp.eq.s32.totalorder %s30, 1
    %p158 = scmp.ne.s32.totalorder %s153, %s155
    %p159 = scmp.eq.s32.totalorder %s30, 0
    %p160 = por %p158, %p159
    %p161 = scmp.ne.s32.totalorder %s153, %s155
    %p162 = scmp.eq.s32.totalorder %s35, 1
    %p163 = por %p161, %p162
    %p164 = scmp.ne.s32.totalorder %s155, %s156
    %p165 = scmp.eq.s32.totalorder %s35, 0
    %p166 = por %p164, %p165
    %p167 = scmp.ne.s32.totalorder %s155, %s156
    %p168 = scmp.eq.s32.totalorder %s36, 1
    %p169 = por %p167, %p168
    %p171 = scmp.ne.s32.totalorder %s156, %s170
    %p172 = scmp.eq.s32.totalorder %s36, 0
    %p173 = por %p171, %p172
    %s175 = sadd.s32 %s174, 1
    %p178 = scmp.eq.s32.totalorder %s30, 1
    %p179 = scmp.ne.s32.totalorder %s174, %s176
    %p180 = scmp.eq.s32.totalorder %s30, 0
    %p181 = por %p179, %p180
    %p182 = scmp.ne.s32.totalorder %s174, %s176
    %p183 = scmp.eq.s32.totalorder %s35, 1
    %p184 = por %p182, %p183
    %p185 = scmp.ne.s32.totalorder %s176, %s177
    %p186 = scmp.eq.s32.totalorder %s35, 0
    %p187 = por %p185, %p186
    %p188 = scmp.ne.s32.totalorder %s176, %s177
    %p189 = scmp.eq.s32.totalorder %s36, 1
    %p190 = por %p188, %p189
    %p192 = scmp.ne.s32.totalorder %s177, %s191
    %p193 = scmp.eq.s32.totalorder %s36, 0
    %p194 = por %p192, %p193
    %s196 = sadd.s32 %s195, 1
    %p199 = scmp.eq.s32.totalorder %s30, 1
    %p200 = scmp.ne.s32.totalorder %s195, %s197
    %p201 = scmp.eq.s32.totalorder %s30, 0
    %p202 = por %p200, %p201
    %p203 = scmp.ne.s32.totalorder %s195, %s197
    %p204 = scmp.eq.s32.totalorder %s35, 1
    %p205 = por %p203, %p204
    %p206 = scmp.ne.s32.totalorder %s197, %s198
    %p207 = scmp.eq.s32.totalorder %s35, 0
    %p208 = por %p206, %p207
    %p209 = scmp.ne.s32.totalorder %s197, %s198
    %p210 = scmp.eq.s32.totalorder %s36, 1
    %p211 = por %p209, %p210
    %p213 = scmp.ne.s32.totalorder %s198, %s212
    %p214 = scmp.eq.s32.totalorder %s36, 0
    %p215 = por %p213, %p214
    %s217 = sadd.s32 %s216, 1
    %p220 = scmp.eq.s32.totalorder %s30, 1
    %p221 = scmp.ne.s32.totalorder %s216, %s218
    %p222 = scmp.eq.s32.totalorder %s30, 0
    %p223 = por %p221, %p222
    %p224 = scmp.ne.s32.totalorder %s216, %s218
    %p225 = scmp.eq.s32.totalorder %s35, 1
    %p226 = por %p224, %p225
    %p227 = scmp.ne.s32.totalorder %s218, %s219
    %p228 = scmp.eq.s32.totalorder %s35, 0
    %p229 = por %p227, %p228
    %p230 = scmp.ne.s32.totalorder %s218, %s219
    %p231 = scmp.eq.s32.totalorder %s36, 1
    %p232 = por %p230, %p231
    %p234 = scmp.ne.s32.totalorder %s219, %s233
    %p235 = scmp.eq.s32.totalorder %s36, 0
    %p236 = por %p234, %p235
    %s238 = sadd.s32 %s237, 1
    %p241 = scmp.eq.s32.totalorder %s30, 1
    %p242 = scmp.ne.s32.totalorder %s237, %s239
    %p243 = scmp.eq.s32.totalorder %s30, 0
    %p244 = por %p242, %p243
    %p245 = scmp.ne.s32.totalorder %s237, %s239
    %p246 = scmp.eq.s32.totalorder %s35, 1
    %p247 = por %p245, %p246
    %p248 = scmp.ne.s32.totalorder %s239, %s240
    %p249 = scmp.eq.s32.totalorder %s35, 0
    %p250 = por %p248, %p249
    %p251 = scmp.ne.s32.totalorder %s239, %s240
    %p252 = scmp.eq.s32.totalorder %s36, 1
    %p253 = por %p251, %p252
    %p255 = scmp.ne.s32.totalorder %s240, %s254
    %p256 = scmp.eq.s32.totalorder %s36, 0
    %p257 = por %p255, %p256
    %s259 = sadd.s32 %s258, 1
    %p262 = scmp.eq.s32.totalorder %s30, 1
    %p263 = scmp.ne.s32.totalorder %s258, %s260
    %p264 = scmp.eq.s32.totalorder %s30, 0
    %p265 = por %p263, %p264
    %p266 = scmp.ne.s32.totalorder %s258, %s260
    %p267 = scmp.eq.s32.totalorder %s35, 1
    %p268 = por %p266, %p267
    %p269 = scmp.ne.s32.totalorder %s260, %s261
    %p270 = scmp.eq.s32.totalorder %s35, 0
    %p271 = por %p269, %p270
    %p272 = scmp.ne.s32.totalorder %s260, %s261
    %p273 = scmp.eq.s32.totalorder %s36, 1
    %p274 = por %p272, %p273
    %p276 = scmp.ne.s32.totalorder %s261, %s275
    %p277 = scmp.eq.s32.totalorder %s36, 0
    %p278 = por %p276, %p277
    %s280 = sadd.s32 %s279, 1
    %p283 = scmp.eq.s32.totalorder %s30, 1
    %p284 = scmp.ne.s32.totalorder %s279, %s281
    %p285 = scmp.eq.s32.totalorder %s30, 0
    %p286 = por %p284, %p285
    %p287 = scmp.ne.s32.totalorder %s279, %s281
    %p288 = scmp.eq.s32.totalorder %s35, 1
    %p289 = por %p287, %p288
    %p290 = scmp.ne.s32.totalorder %s281, %s282
    %p291 = scmp.eq.s32.totalorder %s35, 0
    %p292 = por %p290, %p291
    %p293 = scmp.ne.s32.totalorder %s281, %s282
    %p294 = scmp.eq.s32.totalorder %s36, 1
    %p295 = por %p293, %p294
    %p297 = scmp.ne.s32.totalorder %s282, %s296
    %p298 = scmp.eq.s32.totalorder %s36, 0
    %p299 = por %p297, %p298
    %s301 = sadd.s32 %s300, 1
    %p304 = scmp.eq.s32.totalorder %s30, 1
    %p305 = scmp.ne.s32.totalorder %s300, %s302
    %p306 = scmp.eq.s32.totalorder %s30, 0
    %p307 = por %p305, %p306
    %p308 = scmp.ne.s32.totalorder %s300, %s302
    %p309 = scmp.eq.s32.totalorder %s35, 1
    %p310 = por %p308, %p309
    %p311 = scmp.ne.s32.totalorder %s302, %s303
    %p312 = scmp.eq.s32.totalorder %s35, 0
    %p313 = por %p311, %p312
    %p314 = scmp.ne.s32.totalorder %s302, %s303
    %p315 = scmp.eq.s32.totalorder %s36, 1
    %p316 = por %p314, %p315
    %p318 = scmp.ne.s32.totalorder %s303, %s317
    %p319 = scmp.eq.s32.totalorder %s36, 0
    %p320 = por %p318, %p319
    %s322 = sadd.s32 %s321, 1
    %p325 = scmp.eq.s32.totalorder %s30, 1
    %p326 = scmp.ne.s32.totalorder %s321, %s323
    %p327 = scmp.eq.s32.totalorder %s30, 0
    %p328 = por %p326, %p327
    %p329 = scmp.ne.s32.totalorder %s321, %s323
    %p330 = scmp.eq.s32.totalorder %s35, 1
    %p331 = por %p329, %p330
    %p332 = scmp.ne.s32.totalorder %s323, %s324
    %p333 = scmp.eq.s32.totalorder %s35, 0
    %p334 = por %p332, %p333
    %p335 = scmp.ne.s32.totalorder %s323, %s324
    %p336 = scmp.eq.s32.totalorder %s36, 1
    %p337 = por %p335, %p336
    %p339 = scmp.ne.s32.totalorder %s324, %s338
    %p340 = scmp.eq.s32.totalorder %s36, 0
    %p341 = por %p339, %p340
    %s343 = sadd.s32 %s342, 1
    %p346 = scmp.eq.s32.totalorder %s30, 1
    %p347 = scmp.ne.s32.totalorder %s342, %s344
    %p348 = scmp.eq.s32.totalorder %s30, 0
    %p349 = por %p347, %p348
    %p350 = scmp.ne.s32.totalorder %s342, %s344
    %p351 = scmp.eq.s32.totalorder %s35, 1
    %p352 = por %p350, %p351
    %p353 = scmp.ne.s32.totalorder %s344, %s345
    %p354 = scmp.eq.s32.totalorder %s35, 0
    %p355 = por %p353, %p354
    %p356 = scmp.ne.s32.totalorder %s344, %s345
    %p357 = scmp.eq.s32.totalorder %s36, 1
    %p358 = por %p356, %p357
    %p360 = scmp.ne.s32.totalorder %s345, %s359
    %p361 = scmp.eq.s32.totalorder %s36, 0
    %p362 = por %p360, %p361
    %s364 = sadd.s32 %s363, 1
    %p367 = scmp.eq.s32.totalorder %s30, 1
    %p368 = scmp.ne.s32.totalorder %s363, %s365
    %p369 = scmp.eq.s32.totalorder %s30, 0
    %p370 = por %p368, %p369
    %p371 = scmp.ne.s32.totalorder %s363, %s365
    %p372 = scmp.eq.s32.totalorder %s35, 1
    %p373 = por %p371, %p372
    %p374 = scmp.ne.s32.totalorder %s365, %s366
    %p375 = scmp.eq.s32.totalorder %s35, 0
    %p376 = por %p374, %p375
    %p377 = scmp.ne.s32.totalorder %s365, %s366
    %p378 = scmp.eq.s32.totalorder %s36, 1
    %p379 = por %p377, %p378
    %p381 = scmp.ne.s32.totalorder %s366, %s380
    %p382 = scmp.eq.s32.totalorder %s36, 0
    %p383 = por %p381, %p382
    %s385 = sadd.s32 %s384, 1
    %p388 = scmp.eq.s32.totalorder %s30, 1
    %p389 = scmp.ne.s32.totalorder %s384, %s386
    %p390 = scmp.eq.s32.totalorder %s30, 0
    %p391 = por %p389, %p390
    %p392 = scmp.ne.s32.totalorder %s384, %s386
    %p393 = scmp.eq.s32.totalorder %s35, 1
    %p394 = por %p392, %p393
    %p395 = scmp.ne.s32.totalorder %s386, %s387
    %p396 = scmp.eq.s32.totalorder %s35, 0
    %p397 = por %p395, %p396
    %p398 = scmp.ne.s32.totalorder %s386, %s387
    %p399 = scmp.eq.s32.totalorder %s36, 1
    %p400 = por %p398, %p399
    %p402 = scmp.ne.s32.totalorder %s387, %s401
    %p403 = scmp.eq.s32.totalorder %s36, 0
    %p404 = por %p402, %p403
    %s406 = sadd.s32 %s405, 1
    %p409 = scmp.eq.s32.totalorder %s30, 1
    %p410 = scmp.ne.s32.totalorder %s405, %s407
    %p411 = scmp.eq.s32.totalorder %s30, 0
    %p412 = por %p410, %p411
    %p413 = scmp.ne.s32.totalorder %s405, %s407
    %p414 = scmp.eq.s32.totalorder %s35, 1
    %p415 = por %p413, %p414
    %p416 = scmp.ne.s32.totalorder %s407, %s408
    %p417 = scmp.eq.s32.totalorder %s35, 0
    %p418 = por %p416, %p417
    %p419 = scmp.ne.s32.totalorder %s407, %s408
    %p420 = scmp.eq.s32.totalorder %s36, 1
    %p421 = por %p419, %p420
    %p423 = scmp.ne.s32.totalorder %s408, %s422
    %p424 = scmp.eq.s32.totalorder %s36, 0
    %p425 = por %p423, %p424
    %s427 = sadd.s32 %s426, 1
    %p430 = scmp.eq.s32.totalorder %s30, 1
    %p431 = scmp.ne.s32.totalorder %s426, %s428
    %p432 = scmp.eq.s32.totalorder %s30, 0
    %p433 = por %p431, %p432
    %p434 = scmp.ne.s32.totalorder %s426, %s428
    %p435 = scmp.eq.s32.totalorder %s35, 1
    %p436 = por %p434, %p435
    %p437 = scmp.ne.s32.totalorder %s428, %s429
    %p438 = scmp.eq.s32.totalorder %s35, 0
    %p439 = por %p437, %p438
    %p440 = scmp.ne.s32.totalorder %s428, %s429
    %p441 = scmp.eq.s32.totalorder %s36, 1
    %p442 = por %p440, %p441
    %p444 = scmp.ne.s32.totalorder %s429, %s443
    %p445 = scmp.eq.s32.totalorder %s36, 0
    %p446 = por %p444, %p445
    %s448 = sadd.s32 %s447, 1
    %p451 = scmp.eq.s32.totalorder %s30, 1
    %p452 = scmp.ne.s32.totalorder %s447, %s449
    %p453 = scmp.eq.s32.totalorder %s30, 0
    %p454 = por %p452, %p453
    %p455 = scmp.ne.s32.totalorder %s447, %s449
    %p456 = scmp.eq.s32.totalorder %s35, 1
    %p457 = por %p455, %p456
    %p458 = scmp.ne.s32.totalorder %s449, %s450
    %p459 = scmp.eq.s32.totalorder %s35, 0
    %p460 = por %p458, %p459
    %p461 = scmp.ne.s32.totalorder %s449, %s450
    %p462 = scmp.eq.s32.totalorder %s36, 1
    %p463 = por %p461, %p462
    %p465 = scmp.ne.s32.totalorder %s450, %s464
    %p466 = scmp.eq.s32.totalorder %s36, 0
    %p467 = por %p465, %p466
    %s469 = sadd.s32 %s468, 1
    %p472 = scmp.eq.s32.totalorder %s30, 1
    %p473 = scmp.ne.s32.totalorder %s468, %s470
    %p474 = scmp.eq.s32.totalorder %s30, 0
    %p475 = por %p473, %p474
    %p476 = scmp.ne.s32.totalorder %s468, %s470
    %p477 = scmp.eq.s32.totalorder %s35, 1
    %p478 = por %p476, %p477
    %p479 = scmp.ne.s32.totalorder %s470, %s471
    %p480 = scmp.eq.s32.totalorder %s35, 0
    %p481 = por %p479, %p480
    %p482 = scmp.ne.s32.totalorder %s470, %s471
    %p483 = scmp.eq.s32.totalorder %s36, 1
    %p484 = por %p482, %p483
    %p486 = scmp.ne.s32.totalorder %s471, %s485
    %p487 = scmp.eq.s32.totalorder %s36, 0
    %p488 = por %p486, %p487
    %s490 = sadd.s32 %s489, 1
    %p493 = scmp.eq.s32.totalorder %s30, 1
    %p494 = scmp.ne.s32.totalorder %s489, %s491
    %p495 = scmp.eq.s32.totalorder %s30, 0
    %p496 = por %p494, %p495
    %p497 = scmp.ne.s32.totalorder %s489, %s491
    %p498 = scmp.eq.s32.totalorder %s35, 1
    %p499 = por %p497, %p498
    %p500 = scmp.ne.s32.totalorder %s491, %s492
    %p501 = scmp.eq.s32.totalorder %s35, 0
    %p502 = por %p500, %p501
    %p503 = scmp.ne.s32.totalorder %s491, %s492
    %p504 = scmp.eq.s32.totalorder %s36, 1
    %p505 = por %p503, %p504
    %p507 = scmp.ne.s32.totalorder %s492, %s506
    %p508 = scmp.eq.s32.totalorder %s36, 0
    %p509 = por %p507, %p508
    %s510 = ssub.s32 %s30, %s37
    %p511 = scmp.eq.s32.totalorder %s510, 0
    %s513 = sadd.s32 %s512, 1
    %s514 = scalar_select %p511, %s512, %s513
    %p517 = pneg %p511
    %p518 = scmp.eq.s32.totalorder %s30, 1
    %p519 = por %p517, %p518
    %p520 = scmp.ne.s32.totalorder %s512, %s515
    %p521 = scmp.eq.s32.totalorder %s30, 0
    %p522 = por %p520, %p521
    %p523 = scmp.ne.s32.totalorder %s512, %s515
    %p524 = scmp.eq.s32.totalorder %s35, 1
    %p525 = por %p523, %p524
    %p526 = scmp.ne.s32.totalorder %s515, %s516
    %p527 = scmp.eq.s32.totalorder %s35, 0
    %p528 = por %p526, %p527
    %p529 = scmp.ne.s32.totalorder %s515, %s516
    %p530 = scmp.eq.s32.totalorder %s36, 1
    %p531 = por %p529, %p530
    %p533 = scmp.ne.s32.totalorder %s516, %s532
    %p534 = scmp.eq.s32.totalorder %s36, 0
    %p535 = por %p533, %p534
    %s536 = ssub.s32 %s30, %s37
    %p537 = scmp.eq.s32.totalorder %s536, 0
    %s539 = sadd.s32 %s538, 1
    %s540 = scalar_select %p537, %s538, %s539
    %p543 = pneg %p537
    %p544 = scmp.eq.s32.totalorder %s30, 1
    %p545 = por %p543, %p544
    %p546 = scmp.ne.s32.totalorder %s538, %s541
    %p547 = scmp.eq.s32.totalorder %s30, 0
    %p548 = por %p546, %p547
    %p549 = scmp.ne.s32.totalorder %s538, %s541
    %p550 = scmp.eq.s32.totalorder %s35, 1
    %p551 = por %p549, %p550
    %p552 = scmp.ne.s32.totalorder %s541, %s542
    %p553 = scmp.eq.s32.totalorder %s35, 0
    %p554 = por %p552, %p553
    %p555 = scmp.ne.s32.totalorder %s541, %s542
    %p556 = scmp.eq.s32.totalorder %s36, 1
    %p557 = por %p555, %p556
    %p559 = scmp.ne.s32.totalorder %s542, %s558
    %p560 = scmp.eq.s32.totalorder %s36, 0
    %p561 = por %p559, %p560
    %p562 = scmp.le.s32.totalorder 1, %s30
    %p563 = scmp.lt.s32.totalorder %s30, 3
    %p564 = pnand %p562, %p563
    %p565 = pneg %p564
    // Predicated region
    $region9: #{joint_bert_forward.1} parent=5 // pred_check
      _
    $region10: #{joint_bert_forward.1} parent=5 // pred_check_branch
      %567 = sbr.rel (%p564) target = $region12
    $region11: #{joint_bert_forward.1} parent=5 // pred_region
      %s568 = ssub.s32 %s30, 1
      // Predicated region
      $region13: #{joint_bert_forward.1} parent=11 // pred_check
        %p569 = pneg %p103
      $region14: #{joint_bert_forward.1} parent=11 // pred_check_branch
        %571 = sbr.rel (%p569) target = $region16
      $region15: #{joint_bert_forward.1} parent=11 // pred_region
        _
      $region16: #{joint_bert_forward.1} parent=11 // pred_fallthru
        _
      // Predicated region
      $region17: #{joint_bert_forward.1} parent=11 // pred_check
        %p572 = pneg %p124
      $region18: #{joint_bert_forward.1} parent=11 // pred_check_branch
        %574 = sbr.rel (%p572) target = $region20
      $region19: #{joint_bert_forward.1} parent=11 // pred_region
        _
      $region20: #{joint_bert_forward.1} parent=11 // pred_fallthru
        _
      // Predicated region
      $region21: #{joint_bert_forward.1} parent=11 // pred_check
        %p575 = pneg %p145
      $region22: #{joint_bert_forward.1} parent=11 // pred_check_branch
        %577 = sbr.rel (%p575) target = $region24
      $region23: #{joint_bert_forward.1} parent=11 // pred_region
        _
      $region24: #{joint_bert_forward.1} parent=11 // pred_fallthru
        _
      // Predicated region
      $region25: #{joint_bert_forward.1} parent=11 // pred_check
        %p578 = pneg %p166
      $region26: #{joint_bert_forward.1} parent=11 // pred_check_branch
        %580 = sbr.rel (%p578) target = $region28
      $region27: #{joint_bert_forward.1} parent=11 // pred_region
        _
      $region28: #{joint_bert_forward.1} parent=11 // pred_fallthru
        _
      // Predicated region
      $region29: #{joint_bert_forward.1} parent=11 // pred_check
        %p581 = pneg %p187
      $region30: #{joint_bert_forward.1} parent=11 // pred_check_branch
        %583 = sbr.rel (%p581) target = $region32
      $region31: #{joint_bert_forward.1} parent=11 // pred_region
        _
      $region32: #{joint_bert_forward.1} parent=11 // pred_fallthru
        _
      // Predicated region
      $region33: #{joint_bert_forward.1} parent=11 // pred_check
        %p584 = pneg %p208
      $region34: #{joint_bert_forward.1} parent=11 // pred_check_branch
        %586 = sbr.rel (%p584) target = $region36
      $region35: #{joint_bert_forward.1} parent=11 // pred_region
        _
      $region36: #{joint_bert_forward.1} parent=11 // pred_fallthru
        _
      // Predicated region
      $region37: #{joint_bert_forward.1} parent=11 // pred_check
        %p587 = pneg %p229
      $region38: #{joint_bert_forward.1} parent=11 // pred_check_branch
        %589 = sbr.rel (%p587) target = $region40
      $region39: #{joint_bert_forward.1} parent=11 // pred_region
        _
      $region40: #{joint_bert_forward.1} parent=11 // pred_fallthru
        _
      // Predicated region
      $region41: #{joint_bert_forward.1} parent=11 // pred_check
        %p590 = pneg %p250
      $region42: #{joint_bert_forward.1} parent=11 // pred_check_branch
        %592 = sbr.rel (%p590) target = $region44
      $region43: #{joint_bert_forward.1} parent=11 // pred_region
        _
      $region44: #{joint_bert_forward.1} parent=11 // pred_fallthru
        _
      // Predicated region
      $region45: #{joint_bert_forward.1} parent=11 // pred_check
        %p593 = pneg %p271
      $region46: #{joint_bert_forward.1} parent=11 // pred_check_branch
        %595 = sbr.rel (%p593) target = $region48
      $region47: #{joint_bert_forward.1} parent=11 // pred_region
        _
      $region48: #{joint_bert_forward.1} parent=11 // pred_fallthru
        _
      // Predicated region
      $region49: #{joint_bert_forward.1} parent=11 // pred_check
        %p596 = pneg %p292
      $region50: #{joint_bert_forward.1} parent=11 // pred_check_branch
        %598 = sbr.rel (%p596) target = $region52
      $region51: #{joint_bert_forward.1} parent=11 // pred_region
        _
      $region52: #{joint_bert_forward.1} parent=11 // pred_fallthru
        _
      // Predicated region
      $region53: #{joint_bert_forward.1} parent=11 // pred_check
        %p599 = pneg %p313
      $region54: #{joint_bert_forward.1} parent=11 // pred_check_branch
        %601 = sbr.rel (%p599) target = $region56
      $region55: #{joint_bert_forward.1} parent=11 // pred_region
        _
      $region56: #{joint_bert_forward.1} parent=11 // pred_fallthru
        _
      // Predicated region
      $region57: #{joint_bert_forward.1} parent=11 // pred_check
        %p602 = pneg %p334
      $region58: #{joint_bert_forward.1} parent=11 // pred_check_branch
        %604 = sbr.rel (%p602) target = $region60
      $region59: #{joint_bert_forward.1} parent=11 // pred_region
        _
      $region60: #{joint_bert_forward.1} parent=11 // pred_fallthru
        _
      // Predicated region
      $region61: #{joint_bert_forward.1} parent=11 // pred_check
        %p605 = pneg %p355
      $region62: #{joint_bert_forward.1} parent=11 // pred_check_branch
        %607 = sbr.rel (%p605) target = $region64
      $region63: #{joint_bert_forward.1} parent=11 // pred_region
        _
      $region64: #{joint_bert_forward.1} parent=11 // pred_fallthru
        _
      // Predicated region
      $region65: #{joint_bert_forward.1} parent=11 // pred_check
        %p608 = pneg %p376
      $region66: #{joint_bert_forward.1} parent=11 // pred_check_branch
        %610 = sbr.rel (%p608) target = $region68
      $region67: #{joint_bert_forward.1} parent=11 // pred_region
        _
      $region68: #{joint_bert_forward.1} parent=11 // pred_fallthru
        _
      // Predicated region
      $region69: #{joint_bert_forward.1} parent=11 // pred_check
        %p611 = pneg %p397
      $region70: #{joint_bert_forward.1} parent=11 // pred_check_branch
        %613 = sbr.rel (%p611) target = $region72
      $region71: #{joint_bert_forward.1} parent=11 // pred_region
        _
      $region72: #{joint_bert_forward.1} parent=11 // pred_fallthru
        _
      // Predicated region
      $region73: #{joint_bert_forward.1} parent=11 // pred_check
        %p614 = pneg %p418
      $region74: #{joint_bert_forward.1} parent=11 // pred_check_branch
        %616 = sbr.rel (%p614) target = $region76
      $region75: #{joint_bert_forward.1} parent=11 // pred_region
        _
      $region76: #{joint_bert_forward.1} parent=11 // pred_fallthru
        _
      // Predicated region
      $region77: #{joint_bert_forward.1} parent=11 // pred_check
        %p617 = pneg %p439
      $region78: #{joint_bert_forward.1} parent=11 // pred_check_branch
        %619 = sbr.rel (%p617) target = $region80
      $region79: #{joint_bert_forward.1} parent=11 // pred_region
        _
      $region80: #{joint_bert_forward.1} parent=11 // pred_fallthru
        _
      // Predicated region
      $region81: #{joint_bert_forward.1} parent=11 // pred_check
        %p620 = pneg %p460
      $region82: #{joint_bert_forward.1} parent=11 // pred_check_branch
        %622 = sbr.rel (%p620) target = $region84
      $region83: #{joint_bert_forward.1} parent=11 // pred_region
        _
      $region84: #{joint_bert_forward.1} parent=11 // pred_fallthru
        _
      // Predicated region
      $region85: #{joint_bert_forward.1} parent=11 // pred_check
        %p623 = pneg %p481
      $region86: #{joint_bert_forward.1} parent=11 // pred_check_branch
        %625 = sbr.rel (%p623) target = $region88
      $region87: #{joint_bert_forward.1} parent=11 // pred_region
        _
      $region88: #{joint_bert_forward.1} parent=11 // pred_fallthru
        _
      // Predicated region
      $region89: #{joint_bert_forward.1} parent=11 // pred_check
        %p626 = pneg %p502
      $region90: #{joint_bert_forward.1} parent=11 // pred_check_branch
        %628 = sbr.rel (%p626) target = $region92
      $region91: #{joint_bert_forward.1} parent=11 // pred_region
        _
      $region92: #{joint_bert_forward.1} parent=11 // pred_fallthru
        _
    $region12: #{joint_bert_forward.1} parent=5 // pred_fallthru
      _
    %p629 = scmp.lt.s32.totalorder %s30, 2
    // Predicated region
    $region93: #{joint_bert_forward.1} parent=5 // pred_check
      %p630 = pneg %p629
    $region94: #{joint_bert_forward.1} parent=5 // pred_check_branch
      %632 = sbr.rel (%p630) target = $region96
    $region95: #{joint_bert_forward.1} parent=5 // pred_region
      // Predicated region
      $region97: #{joint_bert_forward.1} parent=95 // pred_check
        %p633 = pneg %p50
      $region98: #{joint_bert_forward.1} parent=95 // pred_check_branch
        %635 = sbr.rel (%p633) target = $region100
      $region99: #{joint_bert_forward.1} parent=95 // pred_region
        %p636 = scmp.lt.s32.totalorder %s30, 1
        %s637 = scalar_select %p636, %s30, 1
        %s638 = smul.addr %s637, 8
        %s639 = scalar_lea.vmem %s0, %s638
      $region100: #{joint_bert_forward.1} parent=95 // pred_fallthru
        _
      // Predicated region
      $region101: #{joint_bert_forward.1} parent=95 // pred_check
        %p640 = pneg %p76
      $region102: #{joint_bert_forward.1} parent=95 // pred_check_branch
        %642 = sbr.rel (%p640) target = $region104
      $region103: #{joint_bert_forward.1} parent=95 // pred_region
        %p643 = scmp.lt.s32.totalorder %s30, 1
        %s644 = scalar_select %p643, %s30, 1
        %s645 = scalar_lea.vmem %s1, %s644
      $region104: #{joint_bert_forward.1} parent=95 // pred_fallthru
        _
    $region96: #{joint_bert_forward.1} parent=5 // pred_fallthru
      _
    %p646 = scmp.le.s32.totalorder 1, %s30
    %p647 = scmp.lt.s32.totalorder %s30, 3
    %p648 = pnand %p646, %p647
    %p649 = pneg %p648
    // Predicated region
    $region105: #{joint_bert_forward.1} parent=5 // pred_check
      _
    $region106: #{joint_bert_forward.1} parent=5 // pred_check_branch
      %651 = sbr.rel (%p648) target = $region108
    $region107: #{joint_bert_forward.1} parent=5 // pred_region
      %s652 = ssub.s32 %s30, 1
      %p653 = scmp.lt.s32.totalorder %s35, 1
      %s654 = scalar_select %p653, %s35, 1
      %s655 = smul.addr %s654, 8
      %s656 = scalar_lea.vmem %s0, %s655
      %p657 = pneg %p56
      %p658 = pneg %p53
      %p659 = scmp.lt.s32.totalorder %s35, 1
      %s660 = scalar_select %p659, %s35, 1
      %s661 = scalar_lea.vmem %s1, %s660
      %p662 = pneg %p82
      %p663 = pneg %p79
      %p664 = pneg %p103
      %p665 = pneg %p100
      %p666 = pneg %p124
      %p667 = pneg %p121
      %p668 = pneg %p145
      %p669 = pneg %p142
      %p670 = pneg %p166
      %p671 = pneg %p163
      %p672 = pneg %p187
      %p673 = pneg %p184
      %p674 = pneg %p208
      %p675 = pneg %p205
      %p676 = pneg %p229
      %p677 = pneg %p226
      %p678 = pneg %p250
      %p679 = pneg %p247
      %p680 = pneg %p271
      %p681 = pneg %p268
      %p682 = pneg %p292
      %p683 = pneg %p289
      %p684 = pneg %p313
      %p685 = pneg %p310
      %p686 = pneg %p334
      %p687 = pneg %p331
      %p688 = pneg %p355
      %p689 = pneg %p352
      %p690 = pneg %p376
      %p691 = pneg %p373
      %p692 = pneg %p397
      %p693 = pneg %p394
      %p694 = pneg %p418
      %p695 = pneg %p415
      %p696 = pneg %p439
      %p697 = pneg %p436
      %p698 = pneg %p460
      %p699 = pneg %p457
      %p700 = pneg %p481
      %p701 = pneg %p478
      %p702 = pneg %p502
      %p703 = pneg %p499
      %p704 = pneg %p528
      %p705 = pneg %p525
      %p706 = scmp.lt.s32.totalorder %s35, 1
      %s707 = scalar_select %p706, %s35, 1
      %s708 = smul.addr %s707, 8
      %s709 = scalar_lea.vmem %s22, %s708
      %p710 = pneg %p554
      %p711 = pneg %p551
      %p712 = scmp.lt.s32.totalorder %s35, 1
      %s713 = scalar_select %p712, %s35, 1
      %s714 = smul.addr %s713, 8
      %s715 = scalar_lea.vmem %s23, %s714
      %p716 = scmp.lt.s32.totalorder %s35, 1
      %s717 = scalar_select %p716, %s35, 1
      %s718 = smul.addr %s717, 8
      %s719 = scalar_lea.vmem %s0, %s718
      %p720 = scmp.lt.s32.totalorder %s35, 1
      %s721 = scalar_select %p720, %s35, 1
      %s722 = scalar_lea.vmem %s1, %s721
      %p723 = scmp.lt.s32.totalorder %s35, 1
      %s724 = scalar_select %p723, %s35, 1
      %s725 = smul.addr %s724, 8
      %s726 = scalar_lea.vmem %s22, %s725
      %p727 = scmp.lt.s32.totalorder %s35, 1
      %s728 = scalar_select %p727, %s35, 1
      %s729 = smul.addr %s728, 8
      %s730 = scalar_lea.vmem %s23, %s729
      %v732 = vld [vmem:[%s719] sm:$0xff]
      %v733 = vld [vmem:[%s2] sm:$0x1]
      %v734 = vld [vmem:[%s3] sm:$0x1]
      %vm735 = vcmask 261120
      %v736 = vsel %vm735, %v732, 0.0
      %737 = vadd.xlane.f32.xlu0 %v736
      %v738 = vpop.xlane.xlu0 %737
      %v739 = vrcp.pop 32.0
      %v740 = vmul.f32 %v738, %v739
      %v741 = vsub.f32 %v732, %v740
      %v742 = vmul.f32 %v741, %v741
      %v743 = vsel %vm735, %v742, 0.0
      %744 = vadd.xlane.f32.xlu0 %v743
      %v745 = vpop.xlane.xlu0 %744
      %v746 = vmul.f32 %v745, %v739
      %v747 = vadd.f32 %v746, 1e-12
      %v748 = vrsqrt.pop %v747
      %v749 = vmul.f32 %v741, %v748
      %v751 = vlaneseq
      %v752 = vshrl.u32 %v751, 7
      %v753 = vsub.s32 0, %v752
      %v754 = vrot.slane %v733, %v753
      %v756 = vmul.f32 %v749, %v754
      %v758 = vlaneseq
      %v759 = vshrl.u32 %v758, 7
      %v760 = vsub.s32 0, %v759
      %v761 = vrot.slane %v734, %v760
      %v763 = vadd.f32 %v756, %v761
      %v764 = vld [vmem:[%s722] sm:$0x1]
      %v765 = vpack.c.bf16 %v763, %v763
      %v766 = vld [vmem:[%s4] sm:$0xf]
      %v767 = vld [vmem:[%s4 + $0x4] sm:$0xf]
      %v768 = vld [vmem:[%s4 + $0x8] sm:$0xf]
      %v769 = vld [vmem:[%s4 + $0xc] sm:$0xf]
      %v770 = vld [vmem:[%s5] sm:$0x1]
      %v772 = vlaneseq
      %v773 = vshrl.u32 %v772, 7
      %v774 = vsub.s32 0, %v773
      %v775 = vrot.slane %v770, %v774
      %v781 = vunpack.c.l.b16 %v766
      %v782 = vunpack.c.l.b16 %v767
      %v783 = vunpack.c.l.b16 %v768
      %v784 = vunpack.c.l.b16 %v769
      %v785 = vpack.c.b16 %v782, %v781
      %v786 = vpack.c.b16 %v784, %v783
      %v790 = vsel %vm735, %v765, 0
      %792 = vmatprep.subr.bf16.mxu0 0
      %793 = vmatpush1.bf16.msra.mxu0 %v785
      %794 = vmatprep.subr.bf16.mxu0 0
      %795 = vmatpush1.bf16.msra.mxu0 %v786
      %796 = vmatprep.subr.bf16.mxu0 0
      %797 = vmatpush1.bf16.msra.mxu0 0
      %798 = vmatprep.subr.bf16.mxu0 0
      %799 = vmatpush1.bf16.msra.mxu0 0
      %800 = vmatprep.subr.bf16.mxu0 0
      %801 = vmatpush1.bf16.msra.mxu0 0
      %802 = vmatprep.subr.bf16.mxu0 0
      %803 = vmatpush1.bf16.msra.mxu0 0
      %804 = vmatprep.subr.bf16.mxu0 0
      %805 = vmatpush1.bf16.msra.mxu0 0
      %806 = vmatprep.subr.bf16.mxu0 0
      %807 = vmatpush1.bf16.msra.mxu0 0
      %808 = vmatprep.subr.bf16.mxu0 0
      %809 = vmatpush1.bf16.msra.mxu0 0
      %810 = vmatprep.subr.bf16.mxu0 0
      %811 = vmatpush1.bf16.msra.mxu0 0
      %812 = vmatprep.subr.bf16.mxu0 0
      %813 = vmatpush1.bf16.msra.mxu0 0
      %814 = vmatprep.subr.bf16.mxu0 0
      %815 = vmatpush1.bf16.msra.mxu0 0
      %816 = vmatprep.subr.bf16.mxu0 0
      %817 = vmatpush1.bf16.msra.mxu0 0
      %818 = vmatprep.subr.bf16.mxu0 0
      %819 = vmatpush1.bf16.msra.mxu0 0
      %820 = vmatprep.subr.bf16.mxu0 0
      %821 = vmatpush1.bf16.msra.mxu0 0
      %822 = vmatprep.subr.bf16.mxu0 0
      %823 = vmatpush1.bf16.msra.mxu0 0
      %824 = vmatprep.mubr.bf16.mxu0 0
      %825 = vmatmul.mubr.bf16.gmra.mrb[0].mxu0 %v790
      %v826 = vpop.f32.mrb[0].mxu0
      %v827 = vadd.f32 %v775, %v826
      %v828 = vpop.f32.mrb[0].mxu0
      %v829 = vpop.f32.mrb[0].mxu0
      %v830 = vpop.f32.mrb[0].mxu0
      %831 = vdwg.mxu0
      %v832 = vpack.c.bf16 %v827, %v827
      %v834 = vlaneseq
      %v835 = vshrl.u32 %v834, 7
      %v836 = vsub.s32 0, %v835
      %v837 = vrot.slane %v764, %v836
      %840 = vrot.lane.b32.xlu0 %v832, 96
      %v841 = vpop.permute.xlu0 %840
      %vm842 = vcmask 130048
      %v844 = vsel %vm842, %v832, 0
      %v847 = vsel %vm842, %v841, 0
      %849 = vmatprep.subr.bf16.mxu0 0
      %850 = vmatpush1.bf16.xpose.msra.mxu0 %v847
      %851 = vmatprep.subr.bf16.mxu0 0
      %852 = vmatpush1.bf16.xpose.msra.mxu0 0
      %853 = vmatprep.subr.bf16.mxu0 0
      %854 = vmatpush1.bf16.xpose.msra.mxu0 0
      %855 = vmatprep.subr.bf16.mxu0 0
      %856 = vmatpush1.bf16.xpose.msra.mxu0 0
      %857 = vmatprep.subr.bf16.mxu0 0
      %858 = vmatpush1.bf16.xpose.msra.mxu0 0
      %859 = vmatprep.subr.bf16.mxu0 0
      %860 = vmatpush1.bf16.xpose.msra.mxu0 0
      %861 = vmatprep.subr.bf16.mxu0 0
      %862 = vmatpush1.bf16.xpose.msra.mxu0 0
      %863 = vmatprep.subr.bf16.mxu0 0
      %864 = vmatpush1.bf16.xpose.msra.mxu0 0
      %865 = vmatprep.subr.bf16.mxu0 0
      %866 = vmatpush1.bf16.xpose.msra.mxu0 0
      %867 = vmatprep.subr.bf16.mxu0 0
      %868 = vmatpush1.bf16.xpose.msra.mxu0 0
      %869 = vmatprep.subr.bf16.mxu0 0
      %870 = vmatpush1.bf16.xpose.msra.mxu0 0
      %871 = vmatprep.subr.bf16.mxu0 0
      %872 = vmatpush1.bf16.xpose.msra.mxu0 0
      %873 = vmatprep.subr.bf16.mxu0 0
      %874 = vmatpush1.bf16.xpose.msra.mxu0 0
      %875 = vmatprep.subr.bf16.mxu0 0
      %876 = vmatpush1.bf16.xpose.msra.mxu0 0
      %877 = vmatprep.subr.bf16.mxu0 0
      %878 = vmatpush1.bf16.xpose.msra.mxu0 0
      %879 = vmatprep.subr.bf16.mxu0 0
      %880 = vmatpush1.bf16.xpose.msra.mxu0 0
      %881 = vmatprep.mubr.bf16.mxu0 0
      %882 = vmatmul.mubr.bf16.gmra.mrb[0].mxu0 %v844
      %v883 = vpop.f32.mrb[0].mxu0
      %v884 = vadd.f32 %v837, %v883
      %v885 = vpop.f32.mrb[0].mxu0
      %v886 = vpop.f32.mrb[0].mxu0
      %v887 = vpop.f32.mrb[0].mxu0
      %888 = vdwg.mxu0
      %vm889 = vcmask 64512
      %v890 = vsel %vm889, %v884, -inf
      %891 = vmax.xlane.f32.xlu0 %v890
      %v892 = vpop.xlane.xlu0 %891
      %v893 = vsub.f32 %v884, %v892
      %v894 = vmul.f32 %v893, 1.442695
      %v895 = vpow.pop %v894
      %v896 = vsel %vm889, %v895, 0.0
      %897 = vadd.xlane.f32.xlu0 %v896
      %v898 = vpop.xlane.xlu0 %897
      %v899 = vrcp.pop %v898
      %v900 = vmul.f32 %v895, %v899
      %v901 = vpack.c.bf16 %v900, %v900
      %902 = vrot.lane.b32.xlu0 %v832, 64
      %v903 = vpop.permute.xlu0 %902
      %v905 = vsel %vm889, %v901, 0
      %vm907 = vcmask 1043456
      %v909 = vsel %vm907, %v903, 0
      %911 = vmatprep.subr.bf16.mxu0 0
      %912 = vmatpush1.bf16.msra.mxu0 %v909
      %913 = vmatprep.subr.bf16.mxu0 0
      %914 = vmatpush1.bf16.msra.mxu0 0
      %915 = vmatprep.subr.bf16.mxu0 0
      %916 = vmatpush1.bf16.msra.mxu0 0
      %917 = vmatprep.subr.bf16.mxu0 0
      %918 = vmatpush1.bf16.msra.mxu0 0
      %919 = vmatprep.subr.bf16.mxu0 0
      %920 = vmatpush1.bf16.msra.mxu0 0
      %921 = vmatprep.subr.bf16.mxu0 0
      %922 = vmatpush1.bf16.msra.mxu0 0
      %923 = vmatprep.subr.bf16.mxu0 0
      %924 = vmatpush1.bf16.msra.mxu0 0
      %925 = vmatprep.subr.bf16.mxu0 0
      %926 = vmatpush1.bf16.msra.mxu0 0
      %927 = vmatprep.subr.bf16.mxu0 0
      %928 = vmatpush1.bf16.msra.mxu0 0
      %929 = vmatprep.subr.bf16.mxu0 0
      %930 = vmatpush1.bf16.msra.mxu0 0
      %931 = vmatprep.subr.bf16.mxu0 0
      %932 = vmatpush1.bf16.msra.mxu0 0
      %933 = vmatprep.subr.bf16.mxu0 0
      %934 = vmatpush1.bf16.msra.mxu0 0
      %935 = vmatprep.subr.bf16.mxu0 0
      %936 = vmatpush1.bf16.msra.mxu0 0
      %937 = vmatprep.subr.bf16.mxu0 0
      %938 = vmatpush1.bf16.msra.mxu0 0
      %939 = vmatprep.subr.bf16.mxu0 0
      %940 = vmatpush1.bf16.msra.mxu0 0
      %941 = vmatprep.subr.bf16.mxu0 0
      %942 = vmatpush1.bf16.msra.mxu0 0
      %943 = vmatprep.mubr.bf16.mxu0 0
      %944 = vmatmul.mubr.bf16.gmra.mrb[0].mxu0 %v905
      %v945 = vpop.f32.mrb[0].mxu0
      %v946 = vadd.f32 0.0, %v945
      %v947 = vpop.f32.mrb[0].mxu0
      %v948 = vpop.f32.mrb[0].mxu0
      %v949 = vpop.f32.mrb[0].mxu0
      %950 = vdwg.mxu0
      %v951 = vpack.c.bf16 %v946, %v946
      %v952 = vld [vmem:[%s6] sm:$0xf]
      %v953 = vld [vmem:[%s6 + $0x4] sm:$0xf]
      %954 = vrot.lane.b32.xlu0 %v832, 112
      %v955 = vpop.permute.xlu0 %954
      %956 = vrot.lane.b32.xlu0 %v832, 80
      %v957 = vpop.permute.xlu0 %956
      %v959 = vsel %vm842, %v955, 0
      %v962 = vsel %vm842, %v957, 0
      %964 = vmatprep.subr.bf16.mxu0 0
      %965 = vmatpush1.bf16.xpose.msra.mxu0 %v962
      %966 = vmatprep.subr.bf16.mxu0 0
      %967 = vmatpush1.bf16.xpose.msra.mxu0 0
      %968 = vmatprep.subr.bf16.mxu0 0
      %969 = vmatpush1.bf16.xpose.msra.mxu0 0
      %970 = vmatprep.subr.bf16.mxu0 0
      %971 = vmatpush1.bf16.xpose.msra.mxu0 0
      %972 = vmatprep.subr.bf16.mxu0 0
      %973 = vmatpush1.bf16.xpose.msra.mxu0 0
      %974 = vmatprep.subr.bf16.mxu0 0
      %975 = vmatpush1.bf16.xpose.msra.mxu0 0
      %976 = vmatprep.subr.bf16.mxu0 0
      %977 = vmatpush1.bf16.xpose.msra.mxu0 0
      %978 = vmatprep.subr.bf16.mxu0 0
      %979 = vmatpush1.bf16.xpose.msra.mxu0 0
      %980 = vmatprep.subr.bf16.mxu0 0
      %981 = vmatpush1.bf16.xpose.msra.mxu0 0
      %982 = vmatprep.subr.bf16.mxu0 0
      %983 = vmatpush1.bf16.xpose.msra.mxu0 0
      %984 = vmatprep.subr.bf16.mxu0 0
      %985 = vmatpush1.bf16.xpose.msra.mxu0 0
      %986 = vmatprep.subr.bf16.mxu0 0
      %987 = vmatpush1.bf16.xpose.msra.mxu0 0
      %988 = vmatprep.subr.bf16.mxu0 0
      %989 = vmatpush1.bf16.xpose.msra.mxu0 0
      %990 = vmatprep.subr.bf16.mxu0 0
      %991 = vmatpush1.bf16.xpose.msra.mxu0 0
      %992 = vmatprep.subr.bf16.mxu0 0
      %993 = vmatpush1.bf16.xpose.msra.mxu0 0
      %994 = vmatprep.subr.bf16.mxu0 0
      %995 = vmatpush1.bf16.xpose.msra.mxu0 0
      %996 = vmatprep.mubr.bf16.mxu0 0
      %997 = vmatmul.mubr.bf16.gmra.mrb[0].mxu0 %v959
      %v998 = vpop.f32.mrb[0].mxu0
      %v999 = vadd.f32 %v837, %v998
      %v1000 = vpop.f32.mrb[0].mxu0
      %v1001 = vpop.f32.mrb[0].mxu0
      %v1002 = vpop.f32.mrb[0].mxu0
      %1003 = vdwg.mxu0
      %v1004 = vsel %vm889, %v999, -inf
      %1005 = vmax.xlane.f32.xlu0 %v1004
      %v1006 = vpop.xlane.xlu0 %1005
      %v1007 = vsub.f32 %v999, %v1006
      %v1008 = vmul.f32 %v1007, 1.442695
      %v1009 = vpow.pop %v1008
      %v1010 = vsel %vm889, %v1009, 0.0
      %1011 = vadd.xlane.f32.xlu0 %v1010
      %v1012 = vpop.xlane.xlu0 %1011
      %v1013 = vrcp.pop %v1012
      %v1014 = vmul.f32 %v1009, %v1013
      %v1015 = vpack.c.bf16 %v1014, %v1014
      %1016 = vrot.lane.b32.xlu0 %v832, 48
      %v1017 = vpop.permute.xlu0 %1016
      %v1019 = vsel %vm889, %v1015, 0
      %v1022 = vsel %vm907, %v1017, 0
      %1024 = vmatprep.subr.bf16.mxu0 0
      %1025 = vmatpush1.bf16.msra.mxu0 %v1022
      %1026 = vmatprep.subr.bf16.mxu0 0
      %1027 = vmatpush1.bf16.msra.mxu0 0
      %1028 = vmatprep.subr.bf16.mxu0 0
      %1029 = vmatpush1.bf16.msra.mxu0 0
      %1030 = vmatprep.subr.bf16.mxu0 0
      %1031 = vmatpush1.bf16.msra.mxu0 0
      %1032 = vmatprep.subr.bf16.mxu0 0
      %1033 = vmatpush1.bf16.msra.mxu0 0
      %1034 = vmatprep.subr.bf16.mxu0 0
      %1035 = vmatpush1.bf16.msra.mxu0 0
      %1036 = vmatprep.subr.bf16.mxu0 0
      %1037 = vmatpush1.bf16.msra.mxu0 0
      %1038 = vmatprep.subr.bf16.mxu0 0
      %1039 = vmatpush1.bf16.msra.mxu0 0
      %1040 = vmatprep.subr.bf16.mxu0 0
      %1041 = vmatpush1.bf16.msra.mxu0 0
      %1042 = vmatprep.subr.bf16.mxu0 0
      %1043 = vmatpush1.bf16.msra.mxu0 0
      %1044 = vmatprep.subr.bf16.mxu0 0
      %1045 = vmatpush1.bf16.msra.mxu0 0
      %1046 = vmatprep.subr.bf16.mxu0 0
      %1047 = vmatpush1.bf16.msra.mxu0 0
      %1048 = vmatprep.subr.bf16.mxu0 0
      %1049 = vmatpush1.bf16.msra.mxu0 0
      %1050 = vmatprep.subr.bf16.mxu0 0
      %1051 = vmatpush1.bf16.msra.mxu0 0
      %1052 = vmatprep.subr.bf16.mxu0 0
      %1053 = vmatpush1.bf16.msra.mxu0 0
      %1054 = vmatprep.subr.bf16.mxu0 0
      %1055 = vmatpush1.bf16.msra.mxu0 0
      %1056 = vmatprep.mubr.bf16.mxu0 0
      %1057 = vmatmul.mubr.bf16.gmra.mrb[0].mxu0 %v1019
      %v1058 = vpop.f32.mrb[0].mxu0
      %v1059 = vadd.f32 0.0, %v1058
      %v1060 = vpop.f32.mrb[0].mxu0
      %v1061 = vpop.f32.mrb[0].mxu0
      %v1062 = vpop.f32.mrb[0].mxu0
      %1063 = vdwg.mxu0
      %v1064 = vpack.c.bf16 %v1059, %v1059
      %s1065 = scalar_lea.vmem %s6, 8
      %v1066 = vld [vmem:[%s1065] sm:$0xf]
      %v1067 = vld [vmem:[%s1065 + $0x4] sm:$0xf]
      %v1070 = vunpack.c.l.b16 %v1066
      %v1071 = vunpack.c.l.b16 %v1067
      %v1072 = vpack.c.b16 %v1071, %v1070
      %v1075 = vsel %vm842, %v1064, 0
      %1077 = vmatprep.subr.bf16.mxu0 0
      %1078 = vmatpush1.bf16.msra.mxu0 %v1072
      %1079 = vmatprep.subr.bf16.mxu0 0
      %1080 = vmatpush1.bf16.msra.mxu0 0
      %1081 = vmatprep.subr.bf16.mxu0 0
      %1082 = vmatpush1.bf16.msra.mxu0 0
      %1083 = vmatprep.subr.bf16.mxu0 0
      %1084 = vmatpush1.bf16.msra.mxu0 0
      %1085 = vmatprep.subr.bf16.mxu0 0
      %1086 = vmatpush1.bf16.msra.mxu0 0
      %1087 = vmatprep.subr.bf16.mxu0 0
      %1088 = vmatpush1.bf16.msra.mxu0 0
      %1089 = vmatprep.subr.bf16.mxu0 0
      %1090 = vmatpush1.bf16.msra.mxu0 0
      %1091 = vmatprep.subr.bf16.mxu0 0
      %1092 = vmatpush1.bf16.msra.mxu0 0
      %1093 = vmatprep.subr.bf16.mxu0 0
      %1094 = vmatpush1.bf16.msra.mxu0 0
      %1095 = vmatprep.subr.bf16.mxu0 0
      %1096 = vmatpush1.bf16.msra.mxu0 0
      %1097 = vmatprep.subr.bf16.mxu0 0
      %1098 = vmatpush1.bf16.msra.mxu0 0
      %1099 = vmatprep.subr.bf16.mxu0 0
      %1100 = vmatpush1.bf16.msra.mxu0 0
      %1101 = vmatprep.subr.bf16.mxu0 0
      %1102 = vmatpush1.bf16.msra.mxu0 0
      %1103 = vmatprep.subr.bf16.mxu0 0
      %1104 = vmatpush1.bf16.msra.mxu0 0
      %1105 = vmatprep.subr.bf16.mxu0 0
      %1106 = vmatpush1.bf16.msra.mxu0 0
      %1107 = vmatprep.subr.bf16.mxu0 0
      %1108 = vmatpush1.bf16.msra.mxu0 0
      %1109 = vmatprep.mubr.bf16.mxu0 0
      %1110 = vmatmul.mubr.bf16.gmra.mrb[0].mxu0 %v1075
      %v1111 = vpop.f32.mrb[0].mxu0
      %v1112 = vadd.f32 0.0, %v1111
      %v1113 = vpop.f32.mrb[0].mxu0
      %v1114 = vpop.f32.mrb[0].mxu0
      %v1115 = vpop.f32.mrb[0].mxu0
      %1116 = vdwg.mxu0
      %v1119 = vunpack.c.l.b16 %v952
      %v1120 = vunpack.c.l.b16 %v953
      %v1121 = vpack.c.b16 %v1120, %v1119
      %v1124 = vsel %vm842, %v951, 0
      %1126 = vmatprep.subr.bf16.mxu0 0
      %1127 = vmatpush1.bf16.msra.mxu0 %v1121
      %1128 = vmatprep.subr.bf16.mxu0 0
      %1129 = vmatpush1.bf16.msra.mxu0 0
      %1130 = vmatprep.subr.bf16.mxu0 0
      %1131 = vmatpush1.bf16.msra.mxu0 0
      %1132 = vmatprep.subr.bf16.mxu0 0
      %1133 = vmatpush1.bf16.msra.mxu0 0
      %1134 = vmatprep.subr.bf16.mxu0 0
      %1135 = vmatpush1.bf16.msra.mxu0 0
      %1136 = vmatprep.subr.bf16.mxu0 0
      %1137 = vmatpush1.bf16.msra.mxu0 0
      %1138 = vmatprep.subr.bf16.mxu0 0
      %1139 = vmatpush1.bf16.msra.mxu0 0
      %1140 = vmatprep.subr.bf16.mxu0 0
      %1141 = vmatpush1.bf16.msra.mxu0 0
      %1142 = vmatprep.subr.bf16.mxu0 0
      %1143 = vmatpush1.bf16.msra.mxu0 0
      %1144 = vmatprep.subr.bf16.mxu0 0
      %1145 = vmatpush1.bf16.msra.mxu0 0
      %1146 = vmatprep.subr.bf16.mxu0 0
      %1147 = vmatpush1.bf16.msra.mxu0 0
      %1148 = vmatprep.subr.bf16.mxu0 0
      %1149 = vmatpush1.bf16.msra.mxu0 0
      %1150 = vmatprep.subr.bf16.mxu0 0
      %1151 = vmatpush1.bf16.msra.mxu0 0
      %1152 = vmatprep.subr.bf16.mxu0 0
      %1153 = vmatpush1.bf16.msra.mxu0 0
      %1154 = vmatprep.subr.bf16.mxu0 0
      %1155 = vmatpush1.bf16.msra.mxu0 0
      %1156 = vmatprep.subr.bf16.mxu0 0
      %1157 = vmatpush1.bf16.msra.mxu0 0
      %1158 = vmatprep.mubr.bf16.mxu0 0
      %1159 = vmatmul.mubr.bf16.gmra.mrb[0].mxu0 %v1124
      %v1160 = vpop.f32.mrb[0].mxu0
      %v1161 = vadd.f32 %v1112, %v1160
      %v1162 = vpop.f32.mrb[0].mxu0
      %v1163 = vpop.f32.mrb[0].mxu0
      %v1164 = vpop.f32.mrb[0].mxu0
      %1165 = vdwg.mxu0
      %v1166 = vld [vmem:[%s7] sm:$0x1]
      %v1168 = vlaneseq
      %v1169 = vshrl.u32 %v1168, 7
      %v1170 = vsub.s32 0, %v1169
      %v1171 = vrot.slane %v1166, %v1170
      %v1173 = vadd.f32 %v1161, %v1171
      %v1174 = vadd.f32 %v1173, %v763
      %v1175 = vld [vmem:[%s8] sm:$0x1]
      %v1176 = vld [vmem:[%s9] sm:$0x1]
      %v1177 = vsel %vm735, %v1174, 0.0
      %1178 = vadd.xlane.f32.xlu0 %v1177
      %v1179 = vpop.xlane.xlu0 %1178
      %v1180 = vmul.f32 %v1179, %v739
      %v1181 = vsub.f32 %v1174, %v1180
      %v1182 = vmul.f32 %v1181, %v1181
      %v1183 = vsel %vm735, %v1182, 0.0
      %1184 = vadd.xlane.f32.xlu0 %v1183
      %v1185 = vpop.xlane.xlu0 %1184
      %v1186 = vmul.f32 %v1185, %v739
      %v1187 = vadd.f32 %v1186, 1e-12
      %v1188 = vrsqrt.pop %v1187
      %v1189 = vmul.f32 %v1181, %v1188
      %v1191 = vlaneseq
      %v1192 = vshrl.u32 %v1191, 7
      %v1193 = vsub.s32 0, %v1192
      %v1194 = vrot.slane %v1175, %v1193
      %v1196 = vmul.f32 %v1189, %v1194
      %v1198 = vlaneseq
      %v1199 = vshrl.u32 %v1198, 7
      %v1200 = vsub.s32 0, %v1199
      %v1201 = vrot.slane %v1176, %v1200
      %v1203 = vadd.f32 %v1196, %v1201
      %v1204 = vpack.c.bf16 %v1203, %v1203
      %v1205 = vld [vmem:[%s10] sm:$0xf]
      %v1206 = vld [vmem:[%s10 + $0x4] sm:$0xf]
      %v1207 = vld [vmem:[%s10 + $0x8] sm:$0xf]
      %v1208 = vld [vmem:[%s10 + $0xc] sm:$0xf]
      %v1209 = vld [vmem:[%s11] sm:$0x1]
      %v1211 = vlaneseq
      %v1212 = vshrl.u32 %v1211, 7
      %v1213 = vsub.s32 0, %v1212
      %v1214 = vrot.slane %v1209, %v1213
      %v1220 = vunpack.c.l.b16 %v1205
      %v1221 = vunpack.c.l.b16 %v1206
      %v1222 = vunpack.c.l.b16 %v1207
      %v1223 = vunpack.c.l.b16 %v1208
      %v1224 = vpack.c.b16 %v1221, %v1220
      %v1225 = vpack.c.b16 %v1223, %v1222
      %v1229 = vsel %vm735, %v1204, 0
      %1231 = vmatprep.subr.bf16.mxu0 0
      %1232 = vmatpush1.bf16.msra.mxu0 %v1224
      %1233 = vmatprep.subr.bf16.mxu0 0
      %1234 = vmatpush1.bf16.msra.mxu0 %v1225
      %1235 = vmatprep.subr.bf16.mxu0 0
      %1236 = vmatpush1.bf16.msra.mxu0 0
      %1237 = vmatprep.subr.bf16.mxu0 0
      %1238 = vmatpush1.bf16.msra.mxu0 0
      %1239 = vmatprep.subr.bf16.mxu0 0
      %1240 = vmatpush1.bf16.msra.mxu0 0
      %1241 = vmatprep.subr.bf16.mxu0 0
      %1242 = vmatpush1.bf16.msra.mxu0 0
      %1243 = vmatprep.subr.bf16.mxu0 0
      %1244 = vmatpush1.bf16.msra.mxu0 0
      %1245 = vmatprep.subr.bf16.mxu0 0
      %1246 = vmatpush1.bf16.msra.mxu0 0
      %1247 = vmatprep.subr.bf16.mxu0 0
      %1248 = vmatpush1.bf16.msra.mxu0 0
      %1249 = vmatprep.subr.bf16.mxu0 0
      %1250 = vmatpush1.bf16.msra.mxu0 0
      %1251 = vmatprep.subr.bf16.mxu0 0
      %1252 = vmatpush1.bf16.msra.mxu0 0
      %1253 = vmatprep.subr.bf16.mxu0 0
      %1254 = vmatpush1.bf16.msra.mxu0 0
      %1255 = vmatprep.subr.bf16.mxu0 0
      %1256 = vmatpush1.bf16.msra.mxu0 0
      %1257 = vmatprep.subr.bf16.mxu0 0
      %1258 = vmatpush1.bf16.msra.mxu0 0
      %1259 = vmatprep.subr.bf16.mxu0 0
      %1260 = vmatpush1.bf16.msra.mxu0 0
      %1261 = vmatprep.subr.bf16.mxu0 0
      %1262 = vmatpush1.bf16.msra.mxu0 0
      %1263 = vmatprep.mubr.bf16.mxu0 0
      %1264 = vmatmul.mubr.bf16.gmra.mrb[0].mxu0 %v1229
      %v1265 = vpop.f32.mrb[0].mxu0
      %v1266 = vadd.f32 %v1214, %v1265
      %v1267 = vpop.f32.mrb[0].mxu0
      %v1268 = vpop.f32.mrb[0].mxu0
      %v1269 = vpop.f32.mrb[0].mxu0
      %1270 = vdwg.mxu0
      %v1271 = vmul.f32 %v1266, 0.5
      %v1272 = vmul.f32 %v1266, 0.044715
      %v1273 = vmul.f32 %v1272, %v1266
      %v1274 = vmul.f32 %v1273, %v1266
      %v1275 = vadd.f32 %v1266, %v1274
      %v1276 = vmul.f32 %v1275, 0.7978846
      %v1277 = vtanh.pop %v1276
      %v1278 = vadd.f32 %v1277, 1.0
      %v1279 = vmul.f32 %v1271, %v1278
      %v1280 = vpack.c.bf16 %v1279, %v1279
      %v1281 = vld [vmem:[%s12] sm:$0xf]
      %v1282 = vld [vmem:[%s12 + $0x4] sm:$0xf]
      %v1283 = vld [vmem:[%s12 + $0x8] sm:$0xf]
      %v1284 = vld [vmem:[%s12 + $0xc] sm:$0xf]
      %v1285 = vld [vmem:[%s12 + $0x10] sm:$0xf]
      %v1286 = vld [vmem:[%s12 + $0x14] sm:$0xf]
      %v1287 = vld [vmem:[%s12 + $0x18] sm:$0xf]
      %v1288 = vld [vmem:[%s12 + $0x1c] sm:$0xf]
      %v1289 = vld [vmem:[%s12 + $0x20] sm:$0xf]
      %v1290 = vld [vmem:[%s12 + $0x24] sm:$0xf]
      %v1291 = vld [vmem:[%s12 + $0x28] sm:$0xf]
      %v1292 = vld [vmem:[%s12 + $0x2c] sm:$0xf]
      %v1293 = vld [vmem:[%s12 + $0x30] sm:$0xf]
      %v1294 = vld [vmem:[%s12 + $0x34] sm:$0xf]
      %v1295 = vld [vmem:[%s12 + $0x38] sm:$0xf]
      %v1296 = vld [vmem:[%s12 + $0x3c] sm:$0xf]
      %v1297 = vld [vmem:[%s13] sm:$0x1]
      %v1299 = vlaneseq
      %v1300 = vshrl.u32 %v1299, 7
      %v1301 = vsub.s32 0, %v1300
      %v1302 = vrot.slane %v1297, %v1301
      %v1320 = vunpack.c.l.b16 %v1281
      %v1321 = vunpack.c.l.b16 %v1282
      %v1322 = vunpack.c.l.b16 %v1283
      %v1323 = vunpack.c.l.b16 %v1284
      %v1324 = vunpack.c.l.b16 %v1285
      %v1325 = vunpack.c.l.b16 %v1286
      %v1326 = vunpack.c.l.b16 %v1287
      %v1327 = vunpack.c.l.b16 %v1288
      %v1328 = vunpack.c.l.b16 %v1289
      %v1329 = vunpack.c.l.b16 %v1290
      %v1330 = vunpack.c.l.b16 %v1291
      %v1331 = vunpack.c.l.b16 %v1292
      %v1332 = vunpack.c.l.b16 %v1293
      %v1333 = vunpack.c.l.b16 %v1294
      %v1334 = vunpack.c.l.b16 %v1295
      %v1335 = vunpack.c.l.b16 %v1296
      %v1336 = vpack.c.b16 %v1321, %v1320
      %v1337 = vpack.c.b16 %v1323, %v1322
      %v1338 = vpack.c.b16 %v1325, %v1324
      %v1339 = vpack.c.b16 %v1327, %v1326
      %v1340 = vpack.c.b16 %v1329, %v1328
      %v1341 = vpack.c.b16 %v1331, %v1330
      %v1342 = vpack.c.b16 %v1333, %v1332
      %v1343 = vpack.c.b16 %v1335, %v1334
      %1352 = vmatprep.subr.bf16.mxu0 0
      %1353 = vmatpush1.bf16.msra.mxu0 %v1336
      %1354 = vmatprep.subr.bf16.mxu0 0
      %1355 = vmatpush1.bf16.msra.mxu0 %v1337
      %1356 = vmatprep.subr.bf16.mxu0 0
      %1357 = vmatpush1.bf16.msra.mxu0 %v1338
      %1358 = vmatprep.subr.bf16.mxu0 0
      %1359 = vmatpush1.bf16.msra.mxu0 %v1339
      %1360 = vmatprep.subr.bf16.mxu0 0
      %1361 = vmatpush1.bf16.msra.mxu0 %v1340
      %1362 = vmatprep.subr.bf16.mxu0 0
      %1363 = vmatpush1.bf16.msra.mxu0 %v1341
      %1364 = vmatprep.subr.bf16.mxu0 0
      %1365 = vmatpush1.bf16.msra.mxu0 %v1342
      %1366 = vmatprep.subr.bf16.mxu0 0
      %1367 = vmatpush1.bf16.msra.mxu0 %v1343
      %1368 = vmatprep.subr.bf16.mxu0 0
      %1369 = vmatpush1.bf16.msra.mxu0 0
      %1370 = vmatprep.subr.bf16.mxu0 0
      %1371 = vmatpush1.bf16.msra.mxu0 0
      %1372 = vmatprep.subr.bf16.mxu0 0
      %1373 = vmatpush1.bf16.msra.mxu0 0
      %1374 = vmatprep.subr.bf16.mxu0 0
      %1375 = vmatpush1.bf16.msra.mxu0 0
      %1376 = vmatprep.subr.bf16.mxu0 0
      %1377 = vmatpush1.bf16.msra.mxu0 0
      %1378 = vmatprep.subr.bf16.mxu0 0
      %1379 = vmatpush1.bf16.msra.mxu0 0
      %1380 = vmatprep.subr.bf16.mxu0 0
      %1381 = vmatpush1.bf16.msra.mxu0 0
      %1382 = vmatprep.subr.bf16.mxu0 0
      %1383 = vmatpush1.bf16.msra.mxu0 0
      %1384 = vmatprep.mubr.bf16.mxu0 0
      %1385 = vmatmul.mubr.bf16.gmra.mrb[0].mxu0 %v1280
      %v1386 = vpop.f32.mrb[0].mxu0
      %v1387 = vadd.f32 %v1302, %v1386
      %v1388 = vpop.f32.mrb[0].mxu0
      %v1389 = vpop.f32.mrb[0].mxu0
      %v1390 = vpop.f32.mrb[0].mxu0
      %1391 = vdwg.mxu0
      %v1392 = vadd.f32 %v1387, %v1203
      %v1393 = vld [vmem:[%s14] sm:$0x1]
      %v1394 = vld [vmem:[%s15] sm:$0x1]
      %v1395 = vsel %vm735, %v1392, 0.0
      %1396 = vadd.xlane.f32.xlu0 %v1395
      %v1397 = vpop.xlane.xlu0 %1396
      %v1398 = vmul.f32 %v1397, %v739
      %v1399 = vsub.f32 %v1392, %v1398
      %v1400 = vmul.f32 %v1399, %v1399
      %v1401 = vsel %vm735, %v1400, 0.0
      %1402 = vadd.xlane.f32.xlu0 %v1401
      %v1403 = vpop.xlane.xlu0 %1402
      %v1404 = vmul.f32 %v1403, %v739
      %v1405 = vadd.f32 %v1404, 1e-12
      %v1406 = vrsqrt.pop %v1405
      %v1407 = vmul.f32 %v1399, %v1406
      %v1409 = vlaneseq
      %v1410 = vshrl.u32 %v1409, 7
      %v1411 = vsub.s32 0, %v1410
      %v1412 = vrot.slane %v1393, %v1411
      %v1414 = vmul.f32 %v1407, %v1412
      %v1416 = vlaneseq
      %v1417 = vshrl.u32 %v1416, 7
      %v1418 = vsub.s32 0, %v1417
      %v1419 = vrot.slane %v1394, %v1418
      %v1421 = vadd.f32 %v1414, %v1419
      %v1422 = vpack.c.bf16 %v1421, %v1421
      %s1423 = scalar_lea.vmem %s4, 16
      %v1424 = vld [vmem:[%s1423] sm:$0xf]
      %v1425 = vld [vmem:[%s1423 + $0x4] sm:$0xf]
      %v1426 = vld [vmem:[%s1423 + $0x8] sm:$0xf]
      %v1427 = vld [vmem:[%s1423 + $0xc] sm:$0xf]
      %s1428 = scalar_lea.vmem %s5, 1
      %v1429 = vld [vmem:[%s1428] sm:$0x1]
      %v1431 = vlaneseq
      %v1432 = vshrl.u32 %v1431, 7
      %v1433 = vsub.s32 0, %v1432
      %v1434 = vrot.slane %v1429, %v1433
      %v1440 = vunpack.c.l.b16 %v1424
      %v1441 = vunpack.c.l.b16 %v1425
      %v1442 = vunpack.c.l.b16 %v1426
      %v1443 = vunpack.c.l.b16 %v1427
      %v1444 = vpack.c.b16 %v1441, %v1440
      %v1445 = vpack.c.b16 %v1443, %v1442
      %v1449 = vsel %vm735, %v1422, 0
      %1451 = vmatprep.subr.bf16.mxu0 0
      %1452 = vmatpush1.bf16.msra.mxu0 %v1444
      %1453 = vmatprep.subr.bf16.mxu0 0
      %1454 = vmatpush1.bf16.msra.mxu0 %v1445
      %1455 = vmatprep.subr.bf16.mxu0 0
      %1456 = vmatpush1.bf16.msra.mxu0 0
      %1457 = vmatprep.subr.bf16.mxu0 0
      %1458 = vmatpush1.bf16.msra.mxu0 0
      %1459 = vmatprep.subr.bf16.mxu0 0
      %1460 = vmatpush1.bf16.msra.mxu0 0
      %1461 = vmatprep.subr.bf16.mxu0 0
      %1462 = vmatpush1.bf16.msra.mxu0 0
      %1463 = vmatprep.subr.bf16.mxu0 0
      %1464 = vmatpush1.bf16.msra.mxu0 0
      %1465 = vmatprep.subr.bf16.mxu0 0
      %1466 = vmatpush1.bf16.msra.mxu0 0
      %1467 = vmatprep.subr.bf16.mxu0 0
      %1468 = vmatpush1.bf16.msra.mxu0 0
      %1469 = vmatprep.subr.bf16.mxu0 0
      %1470 = vmatpush1.bf16.msra.mxu0 0
      %1471 = vmatprep.subr.bf16.mxu0 0
      %1472 = vmatpush1.bf16.msra.mxu0 0
      %1473 = vmatprep.subr.bf16.mxu0 0
      %1474 = vmatpush1.bf16.msra.mxu0 0
      %1475 = vmatprep.subr.bf16.mxu0 0
      %1476 = vmatpush1.bf16.msra.mxu0 0
      %1477 = vmatprep.subr.bf16.mxu0 0
      %1478 = vmatpush1.bf16.msra.mxu0 0
      %1479 = vmatprep.subr.bf16.mxu0 0
      %1480 = vmatpush1.bf16.msra.mxu0 0
      %1481 = vmatprep.subr.bf16.mxu0 0
      %1482 = vmatpush1.bf16.msra.mxu0 0
      %1483 = vmatprep.mubr.bf16.mxu0 0
      %1484 = vmatmul.mubr.bf16.gmra.mrb[0].mxu0 %v1449
      %v1485 = vpop.f32.mrb[0].mxu0
      %v1486 = vadd.f32 %v1434, %v1485
      %v1487 = vpop.f32.mrb[0].mxu0
      %v1488 = vpop.f32.mrb[0].mxu0
      %v1489 = vpop.f32.mrb[0].mxu0
      %1490 = vdwg.mxu0
      %v1491 = vpack.c.bf16 %v1486, %v1486
      %1493 = vrot.lane.b32.xlu0 %v1491, 96
      %v1494 = vpop.permute.xlu0 %1493
      %v1496 = vsel %vm842, %v1491, 0
      %v1499 = vsel %vm842, %v1494, 0
      %1501 = vmatprep.subr.bf16.mxu0 0
      %1502 = vmatpush1.bf16.xpose.msra.mxu0 %v1499
      %1503 = vmatprep.subr.bf16.mxu0 0
      %1504 = vmatpush1.bf16.xpose.msra.mxu0 0
      %1505 = vmatprep.subr.bf16.mxu0 0
      %1506 = vmatpush1.bf16.xpose.msra.mxu0 0
      %1507 = vmatprep.subr.bf16.mxu0 0
      %1508 = vmatpush1.bf16.xpose.msra.mxu0 0
      %1509 = vmatprep.subr.bf16.mxu0 0
      %1510 = vmatpush1.bf16.xpose.msra.mxu0 0
      %1511 = vmatprep.subr.bf16.mxu0 0
      %1512 = vmatpush1.bf16.xpose.msra.mxu0 0
      %1513 = vmatprep.subr.bf16.mxu0 0
      %1514 = vmatpush1.bf16.xpose.msra.mxu0 0
      %1515 = vmatprep.subr.bf16.mxu0 0
      %1516 = vmatpush1.bf16.xpose.msra.mxu0 0
      %1517 = vmatprep.subr.bf16.mxu0 0
      %1518 = vmatpush1.bf16.xpose.msra.mxu0 0
      %1519 = vmatprep.subr.bf16.mxu0 0
      %1520 = vmatpush1.bf16.xpose.msra.mxu0 0
      %1521 = vmatprep.subr.bf16.mxu0 0
      %1522 = vmatpush1.bf16.xpose.msra.mxu0 0
      %1523 = vmatprep.subr.bf16.mxu0 0
      %1524 = vmatpush1.bf16.xpose.msra.mxu0 0
      %1525 = vmatprep.subr.bf16.mxu0 0
      %1526 = vmatpush1.bf16.xpose.msra.mxu0 0
      %1527 = vmatprep.subr.bf16.mxu0 0
      %1528 = vmatpush1.bf16.xpose.msra.mxu0 0
      %1529 = vmatprep.subr.bf16.mxu0 0
      %1530 = vmatpush1.bf16.xpose.msra.mxu0 0
      %1531 = vmatprep.subr.bf16.mxu0 0
      %1532 = vmatpush1.bf16.xpose.msra.mxu0 0
      %1533 = vmatprep.mubr.bf16.mxu0 0
      %1534 = vmatmul.mubr.bf16.gmra.mrb[0].mxu0 %v1496
      %v1535 = vpop.f32.mrb[0].mxu0
      %v1536 = vadd.f32 %v837, %v1535
      %v1537 = vpop.f32.mrb[0].mxu0
      %v1538 = vpop.f32.mrb[0].mxu0
      %v1539 = vpop.f32.mrb[0].mxu0
      %1540 = vdwg.mxu0
      %v1541 = vsel %vm889, %v1536, -inf
      %1542 = vmax.xlane.f32.xlu0 %v1541
      %v1543 = vpop.xlane.xlu0 %1542
      %v1544 = vsub.f32 %v1536, %v1543
      %v1545 = vmul.f32 %v1544, 1.442695
      %v1546 = vpow.pop %v1545
      %v1547 = vsel %vm889, %v1546, 0.0
      %1548 = vadd.xlane.f32.xlu0 %v1547
      %v1549 = vpop.xlane.xlu0 %1548
      %v1550 = vrcp.pop %v1549
      %v1551 = vmul.f32 %v1546, %v1550
      %v1552 = vpack.c.bf16 %v1551, %v1551
      %1553 = vrot.lane.b32.xlu0 %v1491, 64
      %v1554 = vpop.permute.xlu0 %1553
      %v1556 = vsel %vm889, %v1552, 0
      %v1559 = vsel %vm907, %v1554, 0
      %1561 = vmatprep.subr.bf16.mxu0 0
      %1562 = vmatpush1.bf16.msra.mxu0 %v1559
      %1563 = vmatprep.subr.bf16.mxu0 0
      %1564 = vmatpush1.bf16.msra.mxu0 0
      %1565 = vmatprep.subr.bf16.mxu0 0
      %1566 = vmatpush1.bf16.msra.mxu0 0
      %1567 = vmatprep.subr.bf16.mxu0 0
      %1568 = vmatpush1.bf16.msra.mxu0 0
      %1569 = vmatprep.subr.bf16.mxu0 0
      %1570 = vmatpush1.bf16.msra.mxu0 0
      %1571 = vmatprep.subr.bf16.mxu0 0
      %1572 = vmatpush1.bf16.msra.mxu0 0
      %1573 = vmatprep.subr.bf16.mxu0 0
      %1574 = vmatpush1.bf16.msra.mxu0 0
      %1575 = vmatprep.subr.bf16.mxu0 0
      %1576 = vmatpush1.bf16.msra.mxu0 0
      %1577 = vmatprep.subr.bf16.mxu0 0
      %1578 = vmatpush1.bf16.msra.mxu0 0
      %1579 = vmatprep.subr.bf16.mxu0 0
      %1580 = vmatpush1.bf16.msra.mxu0 0
      %1581 = vmatprep.subr.bf16.mxu0 0
      %1582 = vmatpush1.bf16.msra.mxu0 0
      %1583 = vmatprep.subr.bf16.mxu0 0
      %1584 = vmatpush1.bf16.msra.mxu0 0
      %1585 = vmatprep.subr.bf16.mxu0 0
      %1586 = vmatpush1.bf16.msra.mxu0 0
      %1587 = vmatprep.subr.bf16.mxu0 0
      %1588 = vmatpush1.bf16.msra.mxu0 0
      %1589 = vmatprep.subr.bf16.mxu0 0
      %1590 = vmatpush1.bf16.msra.mxu0 0
      %1591 = vmatprep.subr.bf16.mxu0 0
      %1592 = vmatpush1.bf16.msra.mxu0 0
      %1593 = vmatprep.mubr.bf16.mxu0 0
      %1594 = vmatmul.mubr.bf16.gmra.mrb[0].mxu0 %v1556
      %v1595 = vpop.f32.mrb[0].mxu0
      %v1596 = vadd.f32 0.0, %v1595
      %v1597 = vpop.f32.mrb[0].mxu0
      %v1598 = vpop.f32.mrb[0].mxu0
      %v1599 = vpop.f32.mrb[0].mxu0
      %1600 = vdwg.mxu0
      %v1601 = vpack.c.bf16 %v1596, %v1596
      %s1602 = scalar_lea.vmem %s6, 16
      %v1603 = vld [vmem:[%s1602] sm:$0xf]
      %v1604 = vld [vmem:[%s1602 + $0x4] sm:$0xf]
      %1605 = vrot.lane.b32.xlu0 %v1491, 112
      %v1606 = vpop.permute.xlu0 %1605
      %1607 = vrot.lane.b32.xlu0 %v1491, 80
      %v1608 = vpop.permute.xlu0 %1607
      %v1610 = vsel %vm842, %v1606, 0
      %v1613 = vsel %vm842, %v1608, 0
      %1615 = vmatprep.subr.bf16.mxu0 0
      %1616 = vmatpush1.bf16.xpose.msra.mxu0 %v1613
      %1617 = vmatprep.subr.bf16.mxu0 0
      %1618 = vmatpush1.bf16.xpose.msra.mxu0 0
      %1619 = vmatprep.subr.bf16.mxu0 0
      %1620 = vmatpush1.bf16.xpose.msra.mxu0 0
      %1621 = vmatprep.subr.bf16.mxu0 0
      %1622 = vmatpush1.bf16.xpose.msra.mxu0 0
      %1623 = vmatprep.subr.bf16.mxu0 0
      %1624 = vmatpush1.bf16.xpose.msra.mxu0 0
      %1625 = vmatprep.subr.bf16.mxu0 0
      %1626 = vmatpush1.bf16.xpose.msra.mxu0 0
      %1627 = vmatprep.subr.bf16.mxu0 0
      %1628 = vmatpush1.bf16.xpose.msra.mxu0 0
      %1629 = vmatprep.subr.bf16.mxu0 0
      %1630 = vmatpush1.bf16.xpose.msra.mxu0 0
      %1631 = vmatprep.subr.bf16.mxu0 0
      %1632 = vmatpush1.bf16.xpose.msra.mxu0 0
      %1633 = vmatprep.subr.bf16.mxu0 0
      %1634 = vmatpush1.bf16.xpose.msra.mxu0 0
      %1635 = vmatprep.subr.bf16.mxu0 0
      %1636 = vmatpush1.bf16.xpose.msra.mxu0 0
      %1637 = vmatprep.subr.bf16.mxu0 0
      %1638 = vmatpush1.bf16.xpose.msra.mxu0 0
      %1639 = vmatprep.subr.bf16.mxu0 0
      %1640 = vmatpush1.bf16.xpose.msra.mxu0 0
      %1641 = vmatprep.subr.bf16.mxu0 0
      %1642 = vmatpush1.bf16.xpose.msra.mxu0 0
      %1643 = vmatprep.subr.bf16.mxu0 0
      %1644 = vmatpush1.bf16.xpose.msra.mxu0 0
      %1645 = vmatprep.subr.bf16.mxu0 0
      %1646 = vmatpush1.bf16.xpose.msra.mxu0 0
      %1647 = vmatprep.mubr.bf16.mxu0 0
      %1648 = vmatmul.mubr.bf16.gmra.mrb[0].mxu0 %v1610
      %v1649 = vpop.f32.mrb[0].mxu0
      %v1650 = vadd.f32 %v837, %v1649
      %v1651 = vpop.f32.mrb[0].mxu0
      %v1652 = vpop.f32.mrb[0].mxu0
      %v1653 = vpop.f32.mrb[0].mxu0
      %1654 = vdwg.mxu0
      %v1655 = vsel %vm889, %v1650, -inf
      %1656 = vmax.xlane.f32.xlu0 %v1655
      %v1657 = vpop.xlane.xlu0 %1656
      %v1658 = vsub.f32 %v1650, %v1657
      %v1659 = vmul.f32 %v1658, 1.442695
      %v1660 = vpow.pop %v1659
      %v1661 = vsel %vm889, %v1660, 0.0
      %1662 = vadd.xlane.f32.xlu0 %v1661
      %v1663 = vpop.xlane.xlu0 %1662
      %v1664 = vrcp.pop %v1663
      %v1665 = vmul.f32 %v1660, %v1664
      %v1666 = vpack.c.bf16 %v1665, %v1665
      %1667 = vrot.lane.b32.xlu0 %v1491, 48
      %v1668 = vpop.permute.xlu0 %1667
      %v1670 = vsel %vm889, %v1666, 0
      %v1673 = vsel %vm907, %v1668, 0
      %1675 = vmatprep.subr.bf16.mxu0 0
      %1676 = vmatpush1.bf16.msra.mxu0 %v1673
      %1677 = vmatprep.subr.bf16.mxu0 0
      %1678 = vmatpush1.bf16.msra.mxu0 0
      %1679 = vmatprep.subr.bf16.mxu0 0
      %1680 = vmatpush1.bf16.msra.mxu0 0
      %1681 = vmatprep.subr.bf16.mxu0 0
      %1682 = vmatpush1.bf16.msra.mxu0 0
      %1683 = vmatprep.subr.bf16.mxu0 0
      %1684 = vmatpush1.bf16.msra.mxu0 0
      %1685 = vmatprep.subr.bf16.mxu0 0
      %1686 = vmatpush1.bf16.msra.mxu0 0
      %1687 = vmatprep.subr.bf16.mxu0 0
      %1688 = vmatpush1.bf16.msra.mxu0 0
      %1689 = vmatprep.subr.bf16.mxu0 0
      %1690 = vmatpush1.bf16.msra.mxu0 0
      %1691 = vmatprep.subr.bf16.mxu0 0
      %1692 = vmatpush1.bf16.msra.mxu0 0
      %1693 = vmatprep.subr.bf16.mxu0 0
      %1694 = vmatpush1.bf16.msra.mxu0 0
      %1695 = vmatprep.subr.bf16.mxu0 0
      %1696 = vmatpush1.bf16.msra.mxu0 0
      %1697 = vmatprep.subr.bf16.mxu0 0
      %1698 = vmatpush1.bf16.msra.mxu0 0
      %1699 = vmatprep.subr.bf16.mxu0 0
      %1700 = vmatpush1.bf16.msra.mxu0 0
      %1701 = vmatprep.subr.bf16.mxu0 0
      %1702 = vmatpush1.bf16.msra.mxu0 0
      %1703 = vmatprep.subr.bf16.mxu0 0
      %1704 = vmatpush1.bf16.msra.mxu0 0
      %1705 = vmatprep.subr.bf16.mxu0 0
      %1706 = vmatpush1.bf16.msra.mxu0 0
      %1707 = vmatprep.mubr.bf16.mxu0 0
      %1708 = vmatmul.mubr.bf16.gmra.mrb[0].mxu0 %v1670
      %v1709 = vpop.f32.mrb[0].mxu0
      %v1710 = vadd.f32 0.0, %v1709
      %v1711 = vpop.f32.mrb[0].mxu0
      %v1712 = vpop.f32.mrb[0].mxu0
      %v1713 = vpop.f32.mrb[0].mxu0
      %1714 = vdwg.mxu0
      %v1715 = vpack.c.bf16 %v1710, %v1710
      %s1716 = scalar_lea.vmem %s6, 24
      %v1717 = vld [vmem:[%s1716] sm:$0xf]
      %v1718 = vld [vmem:[%s1716 + $0x4] sm:$0xf]
      %v1721 = vunpack.c.l.b16 %v1717
      %v1722 = vunpack.c.l.b16 %v1718
      %v1723 = vpack.c.b16 %v1722, %v1721
      %v1726 = vsel %vm842, %v1715, 0
      %1728 = vmatprep.subr.bf16.mxu0 0
      %1729 = vmatpush1.bf16.msra.mxu0 %v1723
      %1730 = vmatprep.subr.bf16.mxu0 0
      %1731 = vmatpush1.bf16.msra.mxu0 0
      %1732 = vmatprep.subr.bf16.mxu0 0
      %1733 = vmatpush1.bf16.msra.mxu0 0
      %1734 = vmatprep.subr.bf16.mxu0 0
      %1735 = vmatpush1.bf16.msra.mxu0 0
      %1736 = vmatprep.subr.bf16.mxu0 0
      %1737 = vmatpush1.bf16.msra.mxu0 0
      %1738 = vmatprep.subr.bf16.mxu0 0
      %1739 = vmatpush1.bf16.msra.mxu0 0
      %1740 = vmatprep.subr.bf16.mxu0 0
      %1741 = vmatpush1.bf16.msra.mxu0 0
      %1742 = vmatprep.subr.bf16.mxu0 0
      %1743 = vmatpush1.bf16.msra.mxu0 0
      %1744 = vmatprep.subr.bf16.mxu0 0
      %1745 = vmatpush1.bf16.msra.mxu0 0
      %1746 = vmatprep.subr.bf16.mxu0 0
      %1747 = vmatpush1.bf16.msra.mxu0 0
      %1748 = vmatprep.subr.bf16.mxu0 0
      %1749 = vmatpush1.bf16.msra.mxu0 0
      %1750 = vmatprep.subr.bf16.mxu0 0
      %1751 = vmatpush1.bf16.msra.mxu0 0
      %1752 = vmatprep.subr.bf16.mxu0 0
      %1753 = vmatpush1.bf16.msra.mxu0 0
      %1754 = vmatprep.subr.bf16.mxu0 0
      %1755 = vmatpush1.bf16.msra.mxu0 0
      %1756 = vmatprep.subr.bf16.mxu0 0
      %1757 = vmatpush1.bf16.msra.mxu0 0
      %1758 = vmatprep.subr.bf16.mxu0 0
      %1759 = vmatpush1.bf16.msra.mxu0 0
      %1760 = vmatprep.mubr.bf16.mxu0 0
      %1761 = vmatmul.mubr.bf16.gmra.mrb[0].mxu0 %v1726
      %v1762 = vpop.f32.mrb[0].mxu0
      %v1763 = vadd.f32 0.0, %v1762
      %v1764 = vpop.f32.mrb[0].mxu0
      %v1765 = vpop.f32.mrb[0].mxu0
      %v1766 = vpop.f32.mrb[0].mxu0
      %1767 = vdwg.mxu0
      %v1770 = vunpack.c.l.b16 %v1603
      %v1771 = vunpack.c.l.b16 %v1604
      %v1772 = vpack.c.b16 %v1771, %v1770
      %v1775 = vsel %vm842, %v1601, 0
      %1777 = vmatprep.subr.bf16.mxu0 0
      %1778 = vmatpush1.bf16.msra.mxu0 %v1772
      %1779 = vmatprep.subr.bf16.mxu0 0
      %1780 = vmatpush1.bf16.msra.mxu0 0
      %1781 = vmatprep.subr.bf16.mxu0 0
      %1782 = vmatpush1.bf16.msra.mxu0 0
      %1783 = vmatprep.subr.bf16.mxu0 0
      %1784 = vmatpush1.bf16.msra.mxu0 0
      %1785 = vmatprep.subr.bf16.mxu0 0
      %1786 = vmatpush1.bf16.msra.mxu0 0
      %1787 = vmatprep.subr.bf16.mxu0 0
      %1788 = vmatpush1.bf16.msra.mxu0 0
      %1789 = vmatprep.subr.bf16.mxu0 0
      %1790 = vmatpush1.bf16.msra.mxu0 0
      %1791 = vmatprep.subr.bf16.mxu0 0
      %1792 = vmatpush1.bf16.msra.mxu0 0
      %1793 = vmatprep.subr.bf16.mxu0 0
      %1794 = vmatpush1.bf16.msra.mxu0 0
      %1795 = vmatprep.subr.bf16.mxu0 0
      %1796 = vmatpush1.bf16.msra.mxu0 0
      %1797 = vmatprep.subr.bf16.mxu0 0
      %1798 = vmatpush1.bf16.msra.mxu0 0
      %1799 = vmatprep.subr.bf16.mxu0 0
      %1800 = vmatpush1.bf16.msra.mxu0 0
      %1801 = vmatprep.subr.bf16.mxu0 0
      %1802 = vmatpush1.bf16.msra.mxu0 0
      %1803 = vmatprep.subr.bf16.mxu0 0
      %1804 = vmatpush1.bf16.msra.mxu0 0
      %1805 = vmatprep.subr.bf16.mxu0 0
      %1806 = vmatpush1.bf16.msra.mxu0 0
      %1807 = vmatprep.subr.bf16.mxu0 0
      %1808 = vmatpush1.bf16.msra.mxu0 0
      %1809 = vmatprep.mubr.bf16.mxu0 0
      %1810 = vmatmul.mubr.bf16.gmra.mrb[0].mxu0 %v1775
      %v1811 = vpop.f32.mrb[0].mxu0
      %v1812 = vadd.f32 %v1763, %v1811
      %v1813 = vpop.f32.mrb[0].mxu0
      %v1814 = vpop.f32.mrb[0].mxu0
      %v1815 = vpop.f32.mrb[0].mxu0
      %1816 = vdwg.mxu0
      %s1817 = scalar_lea.vmem %s7, 1
      %v1818 = vld [vmem:[%s1817] sm:$0x1]
      %v1820 = vlaneseq
      %v1821 = vshrl.u32 %v1820, 7
      %v1822 = vsub.s32 0, %v1821
      %v1823 = vrot.slane %v1818, %v1822
      %v1825 = vadd.f32 %v1812, %v1823
      %v1826 = vadd.f32 %v1825, %v1421
      %s1827 = scalar_lea.vmem %s8, 1
      %v1828 = vld [vmem:[%s1827] sm:$0x1]
      %s1829 = scalar_lea.vmem %s9, 1
      %v1830 = vld [vmem:[%s1829] sm:$0x1]
      %v1831 = vsel %vm735, %v1826, 0.0
      %1832 = vadd.xlane.f32.xlu0 %v1831
      %v1833 = vpop.xlane.xlu0 %1832
      %v1834 = vmul.f32 %v1833, %v739
      %v1835 = vsub.f32 %v1826, %v1834
      %v1836 = vmul.f32 %v1835, %v1835
      %v1837 = vsel %vm735, %v1836, 0.0
      %1838 = vadd.xlane.f32.xlu0 %v1837
      %v1839 = vpop.xlane.xlu0 %1838
      %v1840 = vmul.f32 %v1839, %v739
      %v1841 = vadd.f32 %v1840, 1e-12
      %v1842 = vrsqrt.pop %v1841
      %v1843 = vmul.f32 %v1835, %v1842
      %v1845 = vlaneseq
      %v1846 = vshrl.u32 %v1845, 7
      %v1847 = vsub.s32 0, %v1846
      %v1848 = vrot.slane %v1828, %v1847
      %v1850 = vmul.f32 %v1843, %v1848
      %v1852 = vlaneseq
      %v1853 = vshrl.u32 %v1852, 7
      %v1854 = vsub.s32 0, %v1853
      %v1855 = vrot.slane %v1830, %v1854
      %v1857 = vadd.f32 %v1850, %v1855
      %v1858 = vpack.c.bf16 %v1857, %v1857
      %s1859 = scalar_lea.vmem %s10, 16
      %v1860 = vld [vmem:[%s1859] sm:$0xf]
      %v1861 = vld [vmem:[%s1859 + $0x4] sm:$0xf]
      %v1862 = vld [vmem:[%s1859 + $0x8] sm:$0xf]
      %v1863 = vld [vmem:[%s1859 + $0xc] sm:$0xf]
      %s1864 = scalar_lea.vmem %s11, 1
      %v1865 = vld [vmem:[%s1864] sm:$0x1]
      %v1867 = vlaneseq
      %v1868 = vshrl.u32 %v1867, 7
      %v1869 = vsub.s32 0, %v1868
      %v1870 = vrot.slane %v1865, %v1869
      %v1876 = vunpack.c.l.b16 %v1860
      %v1877 = vunpack.c.l.b16 %v1861
      %v1878 = vunpack.c.l.b16 %v1862
      %v1879 = vunpack.c.l.b16 %v1863
      %v1880 = vpack.c.b16 %v1877, %v1876
      %v1881 = vpack.c.b16 %v1879, %v1878
      %v1885 = vsel %vm735, %v1858, 0
      %1887 = vmatprep.subr.bf16.mxu0 0
      %1888 = vmatpush1.bf16.msra.mxu0 %v1880
      %1889 = vmatprep.subr.bf16.mxu0 0
      %1890 = vmatpush1.bf16.msra.mxu0 %v1881
      %1891 = vmatprep.subr.bf16.mxu0 0
      %1892 = vmatpush1.bf16.msra.mxu0 0
      %1893 = vmatprep.subr.bf16.mxu0 0
      %1894 = vmatpush1.bf16.msra.mxu0 0
      %1895 = vmatprep.subr.bf16.mxu0 0
      %1896 = vmatpush1.bf16.msra.mxu0 0
      %1897 = vmatprep.subr.bf16.mxu0 0
      %1898 = vmatpush1.bf16.msra.mxu0 0
      %1899 = vmatprep.subr.bf16.mxu0 0
      %1900 = vmatpush1.bf16.msra.mxu0 0
      %1901 = vmatprep.subr.bf16.mxu0 0
      %1902 = vmatpush1.bf16.msra.mxu0 0
      %1903 = vmatprep.subr.bf16.mxu0 0
      %1904 = vmatpush1.bf16.msra.mxu0 0
      %1905 = vmatprep.subr.bf16.mxu0 0
      %1906 = vmatpush1.bf16.msra.mxu0 0
      %1907 = vmatprep.subr.bf16.mxu0 0
      %1908 = vmatpush1.bf16.msra.mxu0 0
      %1909 = vmatprep.subr.bf16.mxu0 0
      %1910 = vmatpush1.bf16.msra.mxu0 0
      %1911 = vmatprep.subr.bf16.mxu0 0
      %1912 = vmatpush1.bf16.msra.mxu0 0
      %1913 = vmatprep.subr.bf16.mxu0 0
      %1914 = vmatpush1.bf16.msra.mxu0 0
      %1915 = vmatprep.subr.bf16.mxu0 0
      %1916 = vmatpush1.bf16.msra.mxu0 0
      %1917 = vmatprep.subr.bf16.mxu0 0
      %1918 = vmatpush1.bf16.msra.mxu0 0
      %1919 = vmatprep.mubr.bf16.mxu0 0
      %1920 = vmatmul.mubr.bf16.gmra.mrb[0].mxu0 %v1885
      %v1921 = vpop.f32.mrb[0].mxu0
      %v1922 = vadd.f32 %v1870, %v1921
      %v1923 = vpop.f32.mrb[0].mxu0
      %v1924 = vpop.f32.mrb[0].mxu0
      %v1925 = vpop.f32.mrb[0].mxu0
      %1926 = vdwg.mxu0
      %v1927 = vmul.f32 %v1922, 0.5
      %v1928 = vmul.f32 %v1922, 0.044715
      %v1929 = vmul.f32 %v1928, %v1922
      %v1930 = vmul.f32 %v1929, %v1922
      %v1931 = vadd.f32 %v1922, %v1930
      %v1932 = vmul.f32 %v1931, 0.7978846
      %v1933 = vtanh.pop %v1932
      %v1934 = vadd.f32 %v1933, 1.0
      %v1935 = vmul.f32 %v1927, %v1934
      %v1936 = vpack.c.bf16 %v1935, %v1935
      %s1937 = scalar_lea.vmem %s12, 64
      %v1938 = vld [vmem:[%s1937] sm:$0xf]
      %v1939 = vld [vmem:[%s1937 + $0x4] sm:$0xf]
      %v1940 = vld [vmem:[%s1937 + $0x8] sm:$0xf]
      %v1941 = vld [vmem:[%s1937 + $0xc] sm:$0xf]
      %v1942 = vld [vmem:[%s1937 + $0x10] sm:$0xf]
      %v1943 = vld [vmem:[%s1937 + $0x14] sm:$0xf]
      %v1944 = vld [vmem:[%s1937 + $0x18] sm:$0xf]
      %v1945 = vld [vmem:[%s1937 + $0x1c] sm:$0xf]
      %v1946 = vld [vmem:[%s1937 + $0x20] sm:$0xf]
      %v1947 = vld [vmem:[%s1937 + $0x24] sm:$0xf]
      %v1948 = vld [vmem:[%s1937 + $0x28] sm:$0xf]
      %v1949 = vld [vmem:[%s1937 + $0x2c] sm:$0xf]
      %v1950 = vld [vmem:[%s1937 + $0x30] sm:$0xf]
      %v1951 = vld [vmem:[%s1937 + $0x34] sm:$0xf]
      %v1952 = vld [vmem:[%s1937 + $0x38] sm:$0xf]
      %v1953 = vld [vmem:[%s1937 + $0x3c] sm:$0xf]
      %s1954 = scalar_lea.vmem %s13, 1
      %v1955 = vld [vmem:[%s1954] sm:$0x1]
      %v1957 = vlaneseq
      %v1958 = vshrl.u32 %v1957, 7
      %v1959 = vsub.s32 0, %v1958
      %v1960 = vrot.slane %v1955, %v1959
      %v1978 = vunpack.c.l.b16 %v1938
      %v1979 = vunpack.c.l.b16 %v1939
      %v1980 = vunpack.c.l.b16 %v1940
      %v1981 = vunpack.c.l.b16 %v1941
      %v1982 = vunpack.c.l.b16 %v1942
      %v1983 = vunpack.c.l.b16 %v1943
      %v1984 = vunpack.c.l.b16 %v1944
      %v1985 = vunpack.c.l.b16 %v1945
      %v1986 = vunpack.c.l.b16 %v1946
      %v1987 = vunpack.c.l.b16 %v1947
      %v1988 = vunpack.c.l.b16 %v1948
      %v1989 = vunpack.c.l.b16 %v1949
      %v1990 = vunpack.c.l.b16 %v1950
      %v1991 = vunpack.c.l.b16 %v1951
      %v1992 = vunpack.c.l.b16 %v1952
      %v1993 = vunpack.c.l.b16 %v1953
      %v1994 = vpack.c.b16 %v1979, %v1978
      %v1995 = vpack.c.b16 %v1981, %v1980
      %v1996 = vpack.c.b16 %v1983, %v1982
      %v1997 = vpack.c.b16 %v1985, %v1984
      %v1998 = vpack.c.b16 %v1987, %v1986
      %v1999 = vpack.c.b16 %v1989, %v1988
      %v2000 = vpack.c.b16 %v1991, %v1990
      %v2001 = vpack.c.b16 %v1993, %v1992
      %2010 = vmatprep.subr.bf16.mxu0 0
      %2011 = vmatpush1.bf16.msra.mxu0 %v1994
      %2012 = vmatprep.subr.bf16.mxu0 0
      %2013 = vmatpush1.bf16.msra.mxu0 %v1995
      %2014 = vmatprep.subr.bf16.mxu0 0
      %2015 = vmatpush1.bf16.msra.mxu0 %v1996
      %2016 = vmatprep.subr.bf16.mxu0 0
      %2017 = vmatpush1.bf16.msra.mxu0 %v1997
      %2018 = vmatprep.subr.bf16.mxu0 0
      %2019 = vmatpush1.bf16.msra.mxu0 %v1998
      %2020 = vmatprep.subr.bf16.mxu0 0
      %2021 = vmatpush1.bf16.msra.mxu0 %v1999
      %2022 = vmatprep.subr.bf16.mxu0 0
      %2023 = vmatpush1.bf16.msra.mxu0 %v2000
      %2024 = vmatprep.subr.bf16.mxu0 0
      %2025 = vmatpush1.bf16.msra.mxu0 %v2001
      %2026 = vmatprep.subr.bf16.mxu0 0
      %2027 = vmatpush1.bf16.msra.mxu0 0
      %2028 = vmatprep.subr.bf16.mxu0 0
      %2029 = vmatpush1.bf16.msra.mxu0 0
      %2030 = vmatprep.subr.bf16.mxu0 0
      %2031 = vmatpush1.bf16.msra.mxu0 0
      %2032 = vmatprep.subr.bf16.mxu0 0
      %2033 = vmatpush1.bf16.msra.mxu0 0
      %2034 = vmatprep.subr.bf16.mxu0 0
      %2035 = vmatpush1.bf16.msra.mxu0 0
      %2036 = vmatprep.subr.bf16.mxu0 0
      %2037 = vmatpush1.bf16.msra.mxu0 0
      %2038 = vmatprep.subr.bf16.mxu0 0
      %2039 = vmatpush1.bf16.msra.mxu0 0
      %2040 = vmatprep.subr.bf16.mxu0 0
      %2041 = vmatpush1.bf16.msra.mxu0 0
      %2042 = vmatprep.mubr.bf16.mxu0 0
      %2043 = vmatmul.mubr.bf16.gmra.mrb[0].mxu0 %v1936
      %v2044 = vpop.f32.mrb[0].mxu0
      %v2045 = vadd.f32 %v1960, %v2044
      %v2046 = vpop.f32.mrb[0].mxu0
      %v2047 = vpop.f32.mrb[0].mxu0
      %v2048 = vpop.f32.mrb[0].mxu0
      %2049 = vdwg.mxu0
      %v2050 = vadd.f32 %v2045, %v1857
      %s2051 = scalar_lea.vmem %s14, 1
      %v2052 = vld [vmem:[%s2051] sm:$0x1]
      %s2053 = scalar_lea.vmem %s15, 1
      %v2054 = vld [vmem:[%s2053] sm:$0x1]
      %v2055 = vsel %vm735, %v2050, 0.0
      %2056 = vadd.xlane.f32.xlu0 %v2055
      %v2057 = vpop.xlane.xlu0 %2056
      %v2058 = vmul.f32 %v2057, %v739
      %v2059 = vsub.f32 %v2050, %v2058
      %v2060 = vmul.f32 %v2059, %v2059
      %v2061 = vsel %vm735, %v2060, 0.0
      %2062 = vadd.xlane.f32.xlu0 %v2061
      %v2063 = vpop.xlane.xlu0 %2062
      %v2064 = vmul.f32 %v2063, %v739
      %v2065 = vadd.f32 %v2064, 1e-12
      %v2066 = vrsqrt.pop %v2065
      %v2067 = vmul.f32 %v2059, %v2066
      %v2069 = vlaneseq
      %v2070 = vshrl.u32 %v2069, 7
      %v2071 = vsub.s32 0, %v2070
      %v2072 = vrot.slane %v2052, %v2071
      %v2074 = vmul.f32 %v2067, %v2072
      %v2076 = vlaneseq
      %v2077 = vshrl.u32 %v2076, 7
      %v2078 = vsub.s32 0, %v2077
      %v2079 = vrot.slane %v2054, %v2078
      %v2081 = vadd.f32 %v2074, %v2079
      %v2082 = vpack.c.bf16 %v2081, %v2081
      %v2083 = vld [vmem:[%s18] sm:$0xf]
      %v2084 = vld [vmem:[%s18 + $0x4] sm:$0xf]
      %v2085 = vld [vmem:[%s18 + $0x8] sm:$0xf]
      %v2086 = vld [vmem:[%s18 + $0xc] sm:$0xf]
      %v2087 = vld [vmem:[%s19] sm:$0x1]
      %v2089 = vlaneseq
      %v2090 = vshrl.u32 %v2089, 7
      %v2091 = vsub.s32 0, %v2090
      %v2092 = vrot.slane %v2087, %v2091
      %v2098 = vunpack.c.l.b16 %v2083
      %v2099 = vunpack.c.l.b16 %v2084
      %v2100 = vunpack.c.l.b16 %v2085
      %v2101 = vunpack.c.l.b16 %v2086
      %v2102 = vpack.c.b16 %v2099, %v2098
      %v2103 = vpack.c.b16 %v2101, %v2100
      %v2107 = vsel %vm735, %v2082, 0
      %2109 = vmatprep.subr.bf16.mxu0 0
      %2110 = vmatpush1.bf16.msra.mxu0 %v2102
      %2111 = vmatprep.subr.bf16.mxu0 0
      %2112 = vmatpush1.bf16.msra.mxu0 %v2103
      %2113 = vmatprep.subr.bf16.mxu0 0
      %2114 = vmatpush1.bf16.msra.mxu0 0
      %2115 = vmatprep.subr.bf16.mxu0 0
      %2116 = vmatpush1.bf16.msra.mxu0 0
      %2117 = vmatprep.subr.bf16.mxu0 0
      %2118 = vmatpush1.bf16.msra.mxu0 0
      %2119 = vmatprep.subr.bf16.mxu0 0
      %2120 = vmatpush1.bf16.msra.mxu0 0
      %2121 = vmatprep.subr.bf16.mxu0 0
      %2122 = vmatpush1.bf16.msra.mxu0 0
      %2123 = vmatprep.subr.bf16.mxu0 0
      %2124 = vmatpush1.bf16.msra.mxu0 0
      %2125 = vmatprep.subr.bf16.mxu0 0
      %2126 = vmatpush1.bf16.msra.mxu0 0
      %2127 = vmatprep.subr.bf16.mxu0 0
      %2128 = vmatpush1.bf16.msra.mxu0 0
      %2129 = vmatprep.subr.bf16.mxu0 0
      %2130 = vmatpush1.bf16.msra.mxu0 0
      %2131 = vmatprep.subr.bf16.mxu0 0
      %2132 = vmatpush1.bf16.msra.mxu0 0
      %2133 = vmatprep.subr.bf16.mxu0 0
      %2134 = vmatpush1.bf16.msra.mxu0 0
      %2135 = vmatprep.subr.bf16.mxu0 0
      %2136 = vmatpush1.bf16.msra.mxu0 0
      %2137 = vmatprep.subr.bf16.mxu0 0
      %2138 = vmatpush1.bf16.msra.mxu0 0
      %2139 = vmatprep.subr.bf16.mxu0 0
      %2140 = vmatpush1.bf16.msra.mxu0 0
      %2141 = vmatprep.mubr.bf16.mxu0 0
      %2142 = vmatmul.mubr.bf16.gmra.mrb[0].mxu0 %v2107
      %v2143 = vpop.f32.mrb[0].mxu0
      %v2144 = vadd.f32 %v2092, %v2143
      %v2145 = vpop.f32.mrb[0].mxu0
      %v2146 = vpop.f32.mrb[0].mxu0
      %v2147 = vpop.f32.mrb[0].mxu0
      %2148 = vdwg.mxu0
      %2149 = vst [vmem:[%s726] sm:$0xff] %v2144
      %v2150 = vld [vmem:[%s16] sm:$0xf]
      %v2151 = vld [vmem:[%s16 + $0x4] sm:$0xf]
      %v2152 = vld [vmem:[%s16 + $0x8] sm:$0xf]
      %v2153 = vld [vmem:[%s16 + $0xc] sm:$0xf]
      %v2154 = vld [vmem:[%s17] sm:$0x1]
      %v2156 = vlaneseq
      %v2157 = vshrl.u32 %v2156, 7
      %v2158 = vsub.s32 0, %v2157
      %v2159 = vrot.slane %v2154, %v2158
      %v2165 = vunpack.c.l.b16 %v2150
      %v2166 = vunpack.c.l.b16 %v2151
      %v2167 = vunpack.c.l.b16 %v2152
      %v2168 = vunpack.c.l.b16 %v2153
      %v2169 = vpack.c.b16 %v2166, %v2165
      %v2170 = vpack.c.b16 %v2168, %v2167
      %2173 = vmatprep.subr.bf16.mxu0 0
      %2174 = vmatpush1.bf16.msra.mxu0 %v2169
      %2175 = vmatprep.subr.bf16.mxu0 0
      %2176 = vmatpush1.bf16.msra.mxu0 %v2170
      %2177 = vmatprep.subr.bf16.mxu0 0
      %2178 = vmatpush1.bf16.msra.mxu0 0
      %2179 = vmatprep.subr.bf16.mxu0 0
      %2180 = vmatpush1.bf16.msra.mxu0 0
      %2181 = vmatprep.subr.bf16.mxu0 0
      %2182 = vmatpush1.bf16.msra.mxu0 0
      %2183 = vmatprep.subr.bf16.mxu0 0
      %2184 = vmatpush1.bf16.msra.mxu0 0
      %2185 = vmatprep.subr.bf16.mxu0 0
      %2186 = vmatpush1.bf16.msra.mxu0 0
      %2187 = vmatprep.subr.bf16.mxu0 0
      %2188 = vmatpush1.bf16.msra.mxu0 0
      %2189 = vmatprep.subr.bf16.mxu0 0
      %2190 = vmatpush1.bf16.msra.mxu0 0
      %2191 = vmatprep.subr.bf16.mxu0 0
      %2192 = vmatpush1.bf16.msra.mxu0 0
      %2193 = vmatprep.subr.bf16.mxu0 0
      %2194 = vmatpush1.bf16.msra.mxu0 0
      %2195 = vmatprep.subr.bf16.mxu0 0
      %2196 = vmatpush1.bf16.msra.mxu0 0
      %2197 = vmatprep.subr.bf16.mxu0 0
      %2198 = vmatpush1.bf16.msra.mxu0 0
      %2199 = vmatprep.subr.bf16.mxu0 0
      %2200 = vmatpush1.bf16.msra.mxu0 0
      %2201 = vmatprep.subr.bf16.mxu0 0
      %2202 = vmatpush1.bf16.msra.mxu0 0
      %2203 = vmatprep.subr.bf16.mxu0 0
      %2204 = vmatpush1.bf16.msra.mxu0 0
      %2205 = vmatprep.mubr.bf16.mxu0 0
      %2206 = vmatmul.mubr.bf16.gmra.mrb[0].mxu0 %v2107
      %v2207 = vpop.f32.mrb[0].mxu0
      %v2208 = vadd.f32 %v2159, %v2207
      %v2209 = vpop.f32.mrb[0].mxu0
      %v2210 = vpop.f32.mrb[0].mxu0
      %v2211 = vpop.f32.mrb[0].mxu0
      %2212 = vdwg.mxu0
      %v2213 = vtanh.pop %v2208
      %v2214 = vpack.c.bf16 %v2213, %v2213
      %v2215 = vld [vmem:[%s20] sm:$0xf]
      %v2216 = vld [vmem:[%s20 + $0x4] sm:$0xf]
      %v2217 = vld [vmem:[%s20 + $0x8] sm:$0xf]
      %v2218 = vld [vmem:[%s20 + $0xc] sm:$0xf]
      %v2219 = vld [vmem:[%s21] sm:$0x1]
      %v2221 = vlaneseq
      %v2222 = vshrl.u32 %v2221, 7
      %v2223 = vsub.s32 0, %v2222
      %v2224 = vrot.slane %v2219, %v2223
      %v2230 = vunpack.c.l.b16 %v2215
      %v2231 = vunpack.c.l.b16 %v2216
      %v2232 = vunpack.c.l.b16 %v2217
      %v2233 = vunpack.c.l.b16 %v2218
      %v2234 = vpack.c.b16 %v2231, %v2230
      %v2235 = vpack.c.b16 %v2233, %v2232
      %v2239 = vsel %vm735, %v2214, 0
      %2241 = vmatprep.subr.bf16.mxu0 0
      %2242 = vmatpush1.bf16.msra.mxu0 %v2234
      %2243 = vmatprep.subr.bf16.mxu0 0
      %2244 = vmatpush1.bf16.msra.mxu0 %v2235
      %2245 = vmatprep.subr.bf16.mxu0 0
      %2246 = vmatpush1.bf16.msra.mxu0 0
      %2247 = vmatprep.subr.bf16.mxu0 0
      %2248 = vmatpush1.bf16.msra.mxu0 0
      %2249 = vmatprep.subr.bf16.mxu0 0
      %2250 = vmatpush1.bf16.msra.mxu0 0
      %2251 = vmatprep.subr.bf16.mxu0 0
      %2252 = vmatpush1.bf16.msra.mxu0 0
      %2253 = vmatprep.subr.bf16.mxu0 0
      %2254 = vmatpush1.bf16.msra.mxu0 0
      %2255 = vmatprep.subr.bf16.mxu0 0
      %2256 = vmatpush1.bf16.msra.mxu0 0
      %2257 = vmatprep.subr.bf16.mxu0 0
      %2258 = vmatpush1.bf16.msra.mxu0 0
      %2259 = vmatprep.subr.bf16.mxu0 0
      %2260 = vmatpush1.bf16.msra.mxu0 0
      %2261 = vmatprep.subr.bf16.mxu0 0
      %2262 = vmatpush1.bf16.msra.mxu0 0
      %2263 = vmatprep.subr.bf16.mxu0 0
      %2264 = vmatpush1.bf16.msra.mxu0 0
      %2265 = vmatprep.subr.bf16.mxu0 0
      %2266 = vmatpush1.bf16.msra.mxu0 0
      %2267 = vmatprep.subr.bf16.mxu0 0
      %2268 = vmatpush1.bf16.msra.mxu0 0
      %2269 = vmatprep.subr.bf16.mxu0 0
      %2270 = vmatpush1.bf16.msra.mxu0 0
      %2271 = vmatprep.subr.bf16.mxu0 0
      %2272 = vmatpush1.bf16.msra.mxu0 0
      %2273 = vmatprep.mubr.bf16.mxu0 0
      %2274 = vmatmul.mubr.bf16.gmra.mrb[0].mxu0 %v2239
      %v2275 = vpop.f32.mrb[0].mxu0
      %v2276 = vadd.f32 %v2224, %v2275
      %v2277 = vpop.f32.mrb[0].mxu0
      %v2278 = vpop.f32.mrb[0].mxu0
      %v2279 = vpop.f32.mrb[0].mxu0
      %2280 = vdwg.mxu0
      %2281 = vst [vmem:[%s730] sm:$0xff] %v2276
      %p2282 = scmp.lt.s32.totalorder %s35, 1
      %s2283 = scalar_select %p2282, %s35, 1
      %s2284 = smul.addr %s2283, 8
      %s2285 = scalar_lea.vmem %s22, %s2284
      %p2286 = scmp.lt.s32.totalorder %s35, 1
      %s2287 = scalar_select %p2286, %s35, 1
      %s2288 = smul.addr %s2287, 8
      %s2289 = scalar_lea.vmem %s23, %s2288
      // Predicated region
      $region109: #{joint_bert_forward.1} parent=107 // pred_check
        %p2290 = pneg %p525
      $region110: #{joint_bert_forward.1} parent=107 // pred_check_branch
        %2292 = sbr.rel (%p2290) target = $region112
      $region111: #{joint_bert_forward.1} parent=107 // pred_region
        _
      $region112: #{joint_bert_forward.1} parent=107 // pred_fallthru
        _
      // Predicated region
      $region113: #{joint_bert_forward.1} parent=107 // pred_check
        %p2293 = pneg %p551
      $region114: #{joint_bert_forward.1} parent=107 // pred_check_branch
        %2295 = sbr.rel (%p2293) target = $region116
      $region115: #{joint_bert_forward.1} parent=107 // pred_region
        _
      $region116: #{joint_bert_forward.1} parent=107 // pred_fallthru
        _
    $region108: #{joint_bert_forward.1} parent=5 // pred_fallthru
      _
    %p2296 = scmp.le.s32.totalorder 2, %s30
    // Predicated region
    $region117: #{joint_bert_forward.1} parent=5 // pred_check
      %p2297 = pneg %p2296
    $region118: #{joint_bert_forward.1} parent=5 // pred_check_branch
      %2299 = sbr.rel (%p2297) target = $region120
    $region119: #{joint_bert_forward.1} parent=5 // pred_region
      %s2300 = ssub.s32 %s30, 2
      // Predicated region
      $region121: #{joint_bert_forward.1} parent=119 // pred_check
        %p2301 = pneg %p531
      $region122: #{joint_bert_forward.1} parent=119 // pred_check_branch
        %2303 = sbr.rel (%p2301) target = $region124
      $region123: #{joint_bert_forward.1} parent=119 // pred_region
        %p2304 = scmp.lt.s32.totalorder %s36, 1
        %s2305 = scalar_select %p2304, %s36, 1
        %s2306 = smul.addr %s2305, 8
        %s2307 = scalar_lea.vmem %s22, %s2306
      $region124: #{joint_bert_forward.1} parent=119 // pred_fallthru
        _
      // Predicated region
      $region125: #{joint_bert_forward.1} parent=119 // pred_check
        %p2308 = pneg %p557
      $region126: #{joint_bert_forward.1} parent=119 // pred_check_branch
        %2310 = sbr.rel (%p2308) target = $region128
      $region127: #{joint_bert_forward.1} parent=119 // pred_region
        %p2311 = scmp.lt.s32.totalorder %s36, 1
        %s2312 = scalar_select %p2311, %s36, 1
        %s2313 = smul.addr %s2312, 8
        %s2314 = scalar_lea.vmem %s23, %s2313
      $region128: #{joint_bert_forward.1} parent=119 // pred_fallthru
        _
    $region120: #{joint_bert_forward.1} parent=5 // pred_fallthru
      _
  $region6: #{joint_bert_forward.1} parent=0 // loop_footer
    %s34 = sadd.s32 1, %s30
  $region7: #{joint_bert_forward.1} parent=0 // loop_footer_branch
    %29 = sbr.rel target = $region3
  $region8: #{joint_bert_forward.1} parent=0 // loop_exit
    _

</llo_original>
